<compile_context>
chip_gen: v7x
topology: tpu7x:2x2x1
jax: 0.10.0
libtpu: 0.0.40
codegen_flags: <defaults>
</compile_context>

<pallas_src>
import math

import numpy as np
import jax
import jax.numpy as jnp
from jax.experimental import pallas as pl
from jax.experimental.pallas import tpu as pltpu


# ---------------------------------------------------------------------------
# Fused kernel: conv1 (pre-im2col'd) -> conv2 -> conv3 -> 4 x Linear
# ---------------------------------------------------------------------------
def _cnn_fused_kernel(a1_ref, w1_ref, b1_ref,
                      s2_ref, w2_ref, b2_ref,
                      s3_ref, w3_ref, b3_ref,
                      lw0_ref, lb0_ref, lw1_ref, lb1_ref,
                      lw2_ref, lb2_ref, lw3_ref, lb3_ref,
                      o_ref):
    f32 = jnp.float32

    def dense(x, w, b, relu=True):
        y = jnp.dot(x, w, preferred_element_type=f32) + b
        return jnp.maximum(y, 0.0) if relu else y

    # conv1: host supplied the (B*8*8, Cin*8*8) patch matrix -> one MXU matmul.
    act1 = dense(a1_ref[...], w1_ref[...], b1_ref[...])              # (B*64, 32)

    # conv2 (k=4, s=2, 8x8 -> 3x3):  out = relu(b2 + sum_p S2_p @ act1 @ W2_p)
    # S2_p is a constant 0/1 row-selection matrix, so the overlapping-patch
    # gather becomes two small matmuls per tap (no strided gathers in-kernel).
    acc2 = jnp.zeros((s2_ref.shape[1], w2_ref.shape[2]), f32)        # (B*9, 64)
    for p in range(s2_ref.shape[0]):                                 # 16 taps
        rows = jnp.dot(s2_ref[p], act1, preferred_element_type=f32)  # (B*9, 32)
        acc2 = acc2 + jnp.dot(rows, w2_ref[p], preferred_element_type=f32)
    act2 = jnp.maximum(acc2 + b2_ref[...], 0.0)                      # (B*9, 64)

    # conv3 (k=3, s=1, 3x3 -> 1x1): same selection trick, 9 taps.
    acc3 = jnp.zeros((s3_ref.shape[1], w3_ref.shape[2]), f32)        # (B, 64)
    for p in range(s3_ref.shape[0]):
        rows = jnp.dot(s3_ref[p], act2, preferred_element_type=f32)  # (B, 64)
        acc3 = acc3 + jnp.dot(rows, w3_ref[p], preferred_element_type=f32)
    act3 = jnp.maximum(acc3 + b3_ref[...], 0.0)                      # (B, 64) == Flatten

    # MLP head.
    h = dense(act3, lw0_ref[...], lb0_ref[...])                      # (B, 512)
    h = dense(h, lw1_ref[...], lb1_ref[...])                         # (B, 64)
    h = dense(h, lw2_ref[...], lb2_ref[...])                         # (B, 64)
    o_ref[...] = dense(h, lw3_ref[...], lb3_ref[...], relu=False)    # (B, out)


# ---------------------------------------------------------------------------
# Host-side conv1 patch matrix: 4 contiguous block slices (k=8 = 2 blocks of
# stride 4), no 64-slice python im2col.  Columns ordered (dh, dw, rh, rw, c)
# with kh = 4*dh + rh, kw = 4*dw + rw — matches the weight layout from
# prepare_params.
# ---------------------------------------------------------------------------
def _conv1_patches(x):
    B, C, H, W = x.shape
    assert H == 36 and W == 36, "architecture requires 36x36 input"
    xh = jnp.transpose(x, (0, 2, 3, 1))                # NHWC
    xb = xh.reshape(B, 9, 4, 9, 4, C)                  # (n, Hb, rh, Wb, rw, c)
    blocks = []
    for dh in (0, 1):
        for dw in (0, 1):
            s = xb[:, dh:dh + 8, :, dw:dw + 8, :, :]   # (n, ho, rh, wo, rw, c)
            s = s.transpose(0, 1, 3, 2, 4, 5)          # (n, ho, wo, rh, rw, c)
            blocks.append(s.reshape(B * 64, 16 * C))
    return jnp.concatenate(blocks, axis=1)             # (B*64, 64*C)


# ---------------------------------------------------------------------------
# Constant 0/1 selection matrices for conv2 / conv3 (built once at init).
# ---------------------------------------------------------------------------
def _build_selectors(batch):
    s2 = np.zeros((16, batch * 9, batch * 64), np.float32)
    for kh in range(4):
        for kw in range(4):
            p = kh * 4 + kw
            for n in range(batch):
                for ho in range(3):
                    for wo in range(3):
                        r = n * 9 + ho * 3 + wo
                        q = n * 64 + (2 * ho + kh) * 8 + (2 * wo + kw)
                        s2[p, r, q] = 1.0
    s3 = np.zeros((9, batch, batch * 9), np.float32)
    for p in range(9):
        for n in range(batch):
            s3[p, n, n * 9 + p] = 1.0
    return jnp.asarray(s2), jnp.asarray(s3)


# ---------------------------------------------------------------------------
# One-time weight layout prep (PyTorch layout -> kernel layout).
# ---------------------------------------------------------------------------
def prepare_params(tp, batch):
    co1, C, _, _ = tp["cw0"].shape                      # (32, C, 8, 8)
    w1 = tp["cw0"].transpose(2, 3, 1, 0)                # (kh, kw, c, cout)
    w1 = w1.reshape(2, 4, 2, 4, C, co1)                 # (dh, rh, dw, rw, c, cout)
    w1 = w1.transpose(0, 2, 1, 3, 4, 5).reshape(64 * C, co1)
    s2, s3 = _build_selectors(batch)
    kp = {
        "w1": w1, "b1": tp["cb0"].reshape(1, -1),
        "s2": s2,
        "w2": tp["cw1"].transpose(2, 3, 1, 0).reshape(16, 32, 64),
        "b2": tp["cb1"].reshape(1, -1),
        "s3": s3,
        "w3": tp["cw2"].transpose(2, 3, 1, 0).reshape(9, 64, 64),
        "b3": tp["cb2"].reshape(1, -1),
    }
    for i in range(4):
        kp[f"lw{i}"] = tp[f"lw{i}"].T                   # (in, out)
        kp[f"lb{i}"] = tp[f"lb{i}"].reshape(1, -1)
    return kp


# ---------------------------------------------------------------------------
# Forward: one pallas_call, everything resident in VMEM, single grid step.
# ---------------------------------------------------------------------------
def cnn_forward(x, kp):
    batch = x.shape[0]
    a1 = _conv1_patches(x)
    args = (a1, kp["w1"], kp["b1"], kp["s2"], kp["w2"], kp["b2"],
            kp["s3"], kp["w3"], kp["b3"],
            kp["lw0"], kp["lb0"], kp["lw1"], kp["lb1"],
            kp["lw2"], kp["lb2"], kp["lw3"], kp["lb3"])
    out_ch = kp["lw3"].shape[1]

    def full_spec(a):
        nd = a.ndim
        return pl.BlockSpec(tuple(a.shape), lambda i, nd=nd: (0,) * nd)

    return pl.pallas_call(
        _cnn_fused_kernel,
        out_shape=jax.ShapeDtypeStruct((batch, out_ch), jnp.float32),
        grid=(1,),
        in_specs=[full_spec(a) for a in args],
        out_specs=pl.BlockSpec((batch, out_ch), lambda i: (0, 0)),
        compiler_params=pltpu.CompilerParams(
            dimension_semantics=("arbitrary",)),
    )(*args)


# ---------------------------------------------------------------------------
# PyTorch-layout parameter init (uniform +-1/sqrt(fan_in)) and pure-JAX
# reference (lax.conv, HIGHEST precision) for a correctness check.
# ---------------------------------------------------------------------------
def init_torch_params(key, in_channels, out_channels):
    ks = jax.random.split(key, 14)
    p = {}
    conv_defs = [(32, in_channels, 8), (64, 32, 4), (64, 64, 3)]
    for i, (co, ci, k) in enumerate(conv_defs):
        bound = 1.0 / math.sqrt(ci * k * k)
        p[f"cw{i}"] = jax.random.uniform(ks[2 * i], (co, ci, k, k), jnp.float32, -bound, bound)
        p[f"cb{i}"] = jax.random.uniform(ks[2 * i + 1], (co,), jnp.float32, -bound, bound)
    lin_defs = [(512, 64), (64, 512), (64, 64), (out_channels, 64)]
    for i, (fo, fi) in enumerate(lin_defs):
        bound = 1.0 / math.sqrt(fi)
        p[f"lw{i}"] = jax.random.uniform(ks[6 + 2 * i], (fo, fi), jnp.float32, -bound, bound)
        p[f"lb{i}"] = jax.random.uniform(ks[7 + 2 * i], (fo,), jnp.float32, -bound, bound)
    return p


def reference_forward(x, tp):
    dn = ("NCHW", "OIHW", "NCHW")
    hi = jax.lax.Precision.HIGHEST

    def conv(y, w, b, s):
        y = jax.lax.conv_general_dilated(y, w, (s, s), "VALID",
                                         dimension_numbers=dn, precision=hi)
        return jnp.maximum(y + b[None, :, None, None], 0.0)

    y = conv(x, tp["cw0"], tp["cb0"], 4)
    y = conv(y, tp["cw1"], tp["cb1"], 2)
    y = conv(y, tp["cw2"], tp["cb2"], 1)
    y = y.reshape(y.shape[0], -1)
    for i in range(3):
        y = jnp.maximum(jnp.dot(y, tp[f"lw{i}"].T, precision=hi) + tp[f"lb{i}"], 0.0)
    return jnp.dot(y, tp["lw3"].T, precision=hi) + tp["lb3"]


if __name__ == "__main__":
    key = jax.random.PRNGKey(0)
    k_param, k_input = jax.random.split(key)

    batch, in_channels, out_channels, spatial = 2, 4, 6, 36
    torch_params = init_torch_params(k_param, in_channels, out_channels)
    kparams = prepare_params(torch_params, batch)

    x = jax.random.normal(k_input, (batch, in_channels, spatial, spatial),
                          jnp.float32)

    out = jax.block_until_ready(jax.jit(cnn_forward)(x, kparams))
    assert out.shape == (batch, out_channels), out.shape

    ref = jax.block_until_ready(jax.jit(reference_forward)(x, torch_params))
    err = float(jnp.max(jnp.abs(out - ref)))
    assert err < 5e-3, f"kernel mismatch vs reference: max abs err = {err}"

    print("KERNEL_OK")
</pallas_src>

<mosaic_0001>
module attributes {stable_mosaic.version = 11 : i64} {
  func.func @_cnn_fused_kernel(%arg0: i32, %arg1: memref<128x256xf32, #tpu.memory_space<vmem>>, %arg2: memref<256x32xf32, #tpu.memory_space<vmem>>, %arg3: memref<1x32xf32, #tpu.memory_space<vmem>>, %arg4: memref<16x18x128xf32, #tpu.memory_space<vmem>>, %arg5: memref<16x32x64xf32, #tpu.memory_space<vmem>>, %arg6: memref<1x64xf32, #tpu.memory_space<vmem>>, %arg7: memref<9x2x18xf32, #tpu.memory_space<vmem>>, %arg8: memref<9x64x64xf32, #tpu.memory_space<vmem>>, %arg9: memref<1x64xf32, #tpu.memory_space<vmem>>, %arg10: memref<64x512xf32, #tpu.memory_space<vmem>>, %arg11: memref<1x512xf32, #tpu.memory_space<vmem>>, %arg12: memref<512x64xf32, #tpu.memory_space<vmem>>, %arg13: memref<1x64xf32, #tpu.memory_space<vmem>>, %arg14: memref<64x64xf32, #tpu.memory_space<vmem>>, %arg15: memref<1x64xf32, #tpu.memory_space<vmem>>, %arg16: memref<64x6xf32, #tpu.memory_space<vmem>>, %arg17: memref<1x6xf32, #tpu.memory_space<vmem>>, %arg18: memref<2x6xf32, #tpu.memory_space<vmem>>) attributes {dimension_semantics = [#tpu.dimension_semantics<arbitrary>], iteration_bounds = array<i64: 1>, scalar_prefetch = 0 : i64, scratch_operands = 0 : i64, tpu.core_type = #tpu.core_type<tc>, window_params = [{pipeline_mode = #tpu.pipeline_mode<synchronous>, transform_indices = @transform_0, window_bounds = array<i64: 128, 256>}, {pipeline_mode = #tpu.pipeline_mode<synchronous>, transform_indices = @transform_1, window_bounds = array<i64: 256, 32>}, {pipeline_mode = #tpu.pipeline_mode<synchronous>, transform_indices = @transform_2, window_bounds = array<i64: 1, 32>}, {pipeline_mode = #tpu.pipeline_mode<synchronous>, transform_indices = @transform_3, window_bounds = array<i64: 16, 18, 128>}, {pipeline_mode = #tpu.pipeline_mode<synchronous>, transform_indices = @transform_4, window_bounds = array<i64: 16, 32, 64>}, {pipeline_mode = #tpu.pipeline_mode<synchronous>, transform_indices = @transform_5, window_bounds = array<i64: 1, 64>}, {pipeline_mode = #tpu.pipeline_mode<synchronous>, transform_indices = @transform_6, window_bounds = array<i64: 9, 2, 18>}, {pipeline_mode = #tpu.pipeline_mode<synchronous>, transform_indices = @transform_7, window_bounds = array<i64: 9, 64, 64>}, {pipeline_mode = #tpu.pipeline_mode<synchronous>, transform_indices = @transform_8, window_bounds = array<i64: 1, 64>}, {pipeline_mode = #tpu.pipeline_mode<synchronous>, transform_indices = @transform_9, window_bounds = array<i64: 64, 512>}, {pipeline_mode = #tpu.pipeline_mode<synchronous>, transform_indices = @transform_10, window_bounds = array<i64: 1, 512>}, {pipeline_mode = #tpu.pipeline_mode<synchronous>, transform_indices = @transform_11, window_bounds = array<i64: 512, 64>}, {pipeline_mode = #tpu.pipeline_mode<synchronous>, transform_indices = @transform_12, window_bounds = array<i64: 1, 64>}, {pipeline_mode = #tpu.pipeline_mode<synchronous>, transform_indices = @transform_13, window_bounds = array<i64: 64, 64>}, {pipeline_mode = #tpu.pipeline_mode<synchronous>, transform_indices = @transform_14, window_bounds = array<i64: 1, 64>}, {pipeline_mode = #tpu.pipeline_mode<synchronous>, transform_indices = @transform_15, window_bounds = array<i64: 64, 6>}, {pipeline_mode = #tpu.pipeline_mode<synchronous>, transform_indices = @transform_16, window_bounds = array<i64: 1, 6>}, {pipeline_mode = #tpu.pipeline_mode<synchronous>, transform_indices = @transform_17, window_bounds = array<i64: 2, 6>}]} {
    %c0 = arith.constant 0 : index
    %c0_0 = arith.constant 0 : index
    %0 = vector.load %arg1[%c0, %c0_0] : memref<128x256xf32, #tpu.memory_space<vmem>>, vector<128x256xf32>
    %c0_1 = arith.constant 0 : index
    %c0_2 = arith.constant 0 : index
    %1 = vector.load %arg2[%c0_1, %c0_2] : memref<256x32xf32, #tpu.memory_space<vmem>>, vector<256x32xf32>
    %c0_3 = arith.constant 0 : index
    %c0_4 = arith.constant 0 : index
    %2 = vector.load %arg3[%c0_3, %c0_4] : memref<1x32xf32, #tpu.memory_space<vmem>>, vector<1x32xf32>
    %cst = arith.constant dense<0.000000e+00> : vector<128x32xf32>
    %3 = tpu.matmul %0, %1, %cst {dimension_numbers = #tpu.dot_dimension_numbers<[1], [0], [0], [1], [0, 0, 1, 1], [], []>} : vector<128x256xf32>, vector<256x32xf32>, vector<128x32xf32> -> vector<128x32xf32>
    %4 = vector.broadcast %2 : vector<1x32xf32> to vector<128x32xf32>
    %5 = arith.addf %3, %4 : vector<128x32xf32>
    %cst_5 = arith.constant 0.000000e+00 : f32
    %6 = vector.broadcast %cst_5 : f32 to vector<128x32xf32>
    %7 = arith.maximumf %5, %6 : vector<128x32xf32>
    %cst_6 = arith.constant 0.000000e+00 : f32
    %8 = vector.broadcast %cst_6 : f32 to vector<18x64xf32>
    %c0_7 = arith.constant 0 : index
    %c0_8 = arith.constant 0 : index
    %c0_9 = arith.constant 0 : index
    %9 = vector.load %arg4[%c0_7, %c0_8, %c0_9] : memref<16x18x128xf32, #tpu.memory_space<vmem>>, vector<1x18x128xf32>
    %10 = vector.shape_cast %9 : vector<1x18x128xf32> to vector<18x128xf32>
    %cst_10 = arith.constant dense<0.000000e+00> : vector<18x32xf32>
    %11 = tpu.matmul %10, %7, %cst_10 {dimension_numbers = #tpu.dot_dimension_numbers<[1], [0], [0], [1], [0, 0, 1, 1], [], []>} : vector<18x128xf32>, vector<128x32xf32>, vector<18x32xf32> -> vector<18x32xf32>
    %c0_11 = arith.constant 0 : index
    %c0_12 = arith.constant 0 : index
    %c0_13 = arith.constant 0 : index
    %12 = vector.load %arg5[%c0_11, %c0_12, %c0_13] : memref<16x32x64xf32, #tpu.memory_space<vmem>>, vector<1x32x64xf32>
    %13 = vector.shape_cast %12 : vector<1x32x64xf32> to vector<32x64xf32>
    %cst_14 = arith.constant dense<0.000000e+00> : vector<18x64xf32>
    %14 = tpu.matmul %11, %13, %cst_14 {dimension_numbers = #tpu.dot_dimension_numbers<[1], [0], [0], [1], [0, 0, 1, 1], [], []>} : vector<18x32xf32>, vector<32x64xf32>, vector<18x64xf32> -> vector<18x64xf32>
    %15 = arith.addf %8, %14 : vector<18x64xf32>
    %c1 = arith.constant 1 : index
    %c0_15 = arith.constant 0 : index
    %c0_16 = arith.constant 0 : index
    %16 = vector.load %arg4[%c1, %c0_15, %c0_16] : memref<16x18x128xf32, #tpu.memory_space<vmem>>, vector<1x18x128xf32>
    %17 = vector.shape_cast %16 : vector<1x18x128xf32> to vector<18x128xf32>
    %cst_17 = arith.constant dense<0.000000e+00> : vector<18x32xf32>
    %18 = tpu.matmul %17, %7, %cst_17 {dimension_numbers = #tpu.dot_dimension_numbers<[1], [0], [0], [1], [0, 0, 1, 1], [], []>} : vector<18x128xf32>, vector<128x32xf32>, vector<18x32xf32> -> vector<18x32xf32>
    %c1_18 = arith.constant 1 : index
    %c0_19 = arith.constant 0 : index
    %c0_20 = arith.constant 0 : index
    %19 = vector.load %arg5[%c1_18, %c0_19, %c0_20] : memref<16x32x64xf32, #tpu.memory_space<vmem>>, vector<1x32x64xf32>
    %20 = vector.shape_cast %19 : vector<1x32x64xf32> to vector<32x64xf32>
    %cst_21 = arith.constant dense<0.000000e+00> : vector<18x64xf32>
    %21 = tpu.matmul %18, %20, %cst_21 {dimension_numbers = #tpu.dot_dimension_numbers<[1], [0], [0], [1], [0, 0, 1, 1], [], []>} : vector<18x32xf32>, vector<32x64xf32>, vector<18x64xf32> -> vector<18x64xf32>
    %22 = arith.addf %15, %21 : vector<18x64xf32>
    %c2 = arith.constant 2 : index
    %c0_22 = arith.constant 0 : index
    %c0_23 = arith.constant 0 : index
    %23 = vector.load %arg4[%c2, %c0_22, %c0_23] : memref<16x18x128xf32, #tpu.memory_space<vmem>>, vector<1x18x128xf32>
    %24 = vector.shape_cast %23 : vector<1x18x128xf32> to vector<18x128xf32>
    %cst_24 = arith.constant dense<0.000000e+00> : vector<18x32xf32>
    %25 = tpu.matmul %24, %7, %cst_24 {dimension_numbers = #tpu.dot_dimension_numbers<[1], [0], [0], [1], [0, 0, 1, 1], [], []>} : vector<18x128xf32>, vector<128x32xf32>, vector<18x32xf32> -> vector<18x32xf32>
    %c2_25 = arith.constant 2 : index
    %c0_26 = arith.constant 0 : index
    %c0_27 = arith.constant 0 : index
    %26 = vector.load %arg5[%c2_25, %c0_26, %c0_27] : memref<16x32x64xf32, #tpu.memory_space<vmem>>, vector<1x32x64xf32>
    %27 = vector.shape_cast %26 : vector<1x32x64xf32> to vector<32x64xf32>
    %cst_28 = arith.constant dense<0.000000e+00> : vector<18x64xf32>
    %28 = tpu.matmul %25, %27, %cst_28 {dimension_numbers = #tpu.dot_dimension_numbers<[1], [0], [0], [1], [0, 0, 1, 1], [], []>} : vector<18x32xf32>, vector<32x64xf32>, vector<18x64xf32> -> vector<18x64xf32>
    %29 = arith.addf %22, %28 : vector<18x64xf32>
    %c3 = arith.constant 3 : index
    %c0_29 = arith.constant 0 : index
    %c0_30 = arith.constant 0 : index
    %30 = vector.load %arg4[%c3, %c0_29, %c0_30] : memref<16x18x128xf32, #tpu.memory_space<vmem>>, vector<1x18x128xf32>
    %31 = vector.shape_cast %30 : vector<1x18x128xf32> to vector<18x128xf32>
    %cst_31 = arith.constant dense<0.000000e+00> : vector<18x32xf32>
    %32 = tpu.matmul %31, %7, %cst_31 {dimension_numbers = #tpu.dot_dimension_numbers<[1], [0], [0], [1], [0, 0, 1, 1], [], []>} : vector<18x128xf32>, vector<128x32xf32>, vector<18x32xf32> -> vector<18x32xf32>
    %c3_32 = arith.constant 3 : index
    %c0_33 = arith.constant 0 : index
    %c0_34 = arith.constant 0 : index
    %33 = vector.load %arg5[%c3_32, %c0_33, %c0_34] : memref<16x32x64xf32, #tpu.memory_space<vmem>>, vector<1x32x64xf32>
    %34 = vector.shape_cast %33 : vector<1x32x64xf32> to vector<32x64xf32>
    %cst_35 = arith.constant dense<0.000000e+00> : vector<18x64xf32>
    %35 = tpu.matmul %32, %34, %cst_35 {dimension_numbers = #tpu.dot_dimension_numbers<[1], [0], [0], [1], [0, 0, 1, 1], [], []>} : vector<18x32xf32>, vector<32x64xf32>, vector<18x64xf32> -> vector<18x64xf32>
    %36 = arith.addf %29, %35 : vector<18x64xf32>
    %c4 = arith.constant 4 : index
    %c0_36 = arith.constant 0 : index
    %c0_37 = arith.constant 0 : index
    %37 = vector.load %arg4[%c4, %c0_36, %c0_37] : memref<16x18x128xf32, #tpu.memory_space<vmem>>, vector<1x18x128xf32>
    %38 = vector.shape_cast %37 : vector<1x18x128xf32> to vector<18x128xf32>
    %cst_38 = arith.constant dense<0.000000e+00> : vector<18x32xf32>
    %39 = tpu.matmul %38, %7, %cst_38 {dimension_numbers = #tpu.dot_dimension_numbers<[1], [0], [0], [1], [0, 0, 1, 1], [], []>} : vector<18x128xf32>, vector<128x32xf32>, vector<18x32xf32> -> vector<18x32xf32>
    %c4_39 = arith.constant 4 : index
    %c0_40 = arith.constant 0 : index
    %c0_41 = arith.constant 0 : index
    %40 = vector.load %arg5[%c4_39, %c0_40, %c0_41] : memref<16x32x64xf32, #tpu.memory_space<vmem>>, vector<1x32x64xf32>
    %41 = vector.shape_cast %40 : vector<1x32x64xf32> to vector<32x64xf32>
    %cst_42 = arith.constant dense<0.000000e+00> : vector<18x64xf32>
    %42 = tpu.matmul %39, %41, %cst_42 {dimension_numbers = #tpu.dot_dimension_numbers<[1], [0], [0], [1], [0, 0, 1, 1], [], []>} : vector<18x32xf32>, vector<32x64xf32>, vector<18x64xf32> -> vector<18x64xf32>
    %43 = arith.addf %36, %42 : vector<18x64xf32>
    %c5 = arith.constant 5 : index
    %c0_43 = arith.constant 0 : index
    %c0_44 = arith.constant 0 : index
    %44 = vector.load %arg4[%c5, %c0_43, %c0_44] : memref<16x18x128xf32, #tpu.memory_space<vmem>>, vector<1x18x128xf32>
    %45 = vector.shape_cast %44 : vector<1x18x128xf32> to vector<18x128xf32>
    %cst_45 = arith.constant dense<0.000000e+00> : vector<18x32xf32>
    %46 = tpu.matmul %45, %7, %cst_45 {dimension_numbers = #tpu.dot_dimension_numbers<[1], [0], [0], [1], [0, 0, 1, 1], [], []>} : vector<18x128xf32>, vector<128x32xf32>, vector<18x32xf32> -> vector<18x32xf32>
    %c5_46 = arith.constant 5 : index
    %c0_47 = arith.constant 0 : index
    %c0_48 = arith.constant 0 : index
    %47 = vector.load %arg5[%c5_46, %c0_47, %c0_48] : memref<16x32x64xf32, #tpu.memory_space<vmem>>, vector<1x32x64xf32>
    %48 = vector.shape_cast %47 : vector<1x32x64xf32> to vector<32x64xf32>
    %cst_49 = arith.constant dense<0.000000e+00> : vector<18x64xf32>
    %49 = tpu.matmul %46, %48, %cst_49 {dimension_numbers = #tpu.dot_dimension_numbers<[1], [0], [0], [1], [0, 0, 1, 1], [], []>} : vector<18x32xf32>, vector<32x64xf32>, vector<18x64xf32> -> vector<18x64xf32>
    %50 = arith.addf %43, %49 : vector<18x64xf32>
    %c6 = arith.constant 6 : index
    %c0_50 = arith.constant 0 : index
    %c0_51 = arith.constant 0 : index
    %51 = vector.load %arg4[%c6, %c0_50, %c0_51] : memref<16x18x128xf32, #tpu.memory_space<vmem>>, vector<1x18x128xf32>
    %52 = vector.shape_cast %51 : vector<1x18x128xf32> to vector<18x128xf32>
    %cst_52 = arith.constant dense<0.000000e+00> : vector<18x32xf32>
    %53 = tpu.matmul %52, %7, %cst_52 {dimension_numbers = #tpu.dot_dimension_numbers<[1], [0], [0], [1], [0, 0, 1, 1], [], []>} : vector<18x128xf32>, vector<128x32xf32>, vector<18x32xf32> -> vector<18x32xf32>
    %c6_53 = arith.constant 6 : index
    %c0_54 = arith.constant 0 : index
    %c0_55 = arith.constant 0 : index
    %54 = vector.load %arg5[%c6_53, %c0_54, %c0_55] : memref<16x32x64xf32, #tpu.memory_space<vmem>>, vector<1x32x64xf32>
    %55 = vector.shape_cast %54 : vector<1x32x64xf32> to vector<32x64xf32>
    %cst_56 = arith.constant dense<0.000000e+00> : vector<18x64xf32>
    %56 = tpu.matmul %53, %55, %cst_56 {dimension_numbers = #tpu.dot_dimension_numbers<[1], [0], [0], [1], [0, 0, 1, 1], [], []>} : vector<18x32xf32>, vector<32x64xf32>, vector<18x64xf32> -> vector<18x64xf32>
    %57 = arith.addf %50, %56 : vector<18x64xf32>
    %c7 = arith.constant 7 : index
    %c0_57 = arith.constant 0 : index
    %c0_58 = arith.constant 0 : index
    %58 = vector.load %arg4[%c7, %c0_57, %c0_58] : memref<16x18x128xf32, #tpu.memory_space<vmem>>, vector<1x18x128xf32>
    %59 = vector.shape_cast %58 : vector<1x18x128xf32> to vector<18x128xf32>
    %cst_59 = arith.constant dense<0.000000e+00> : vector<18x32xf32>
    %60 = tpu.matmul %59, %7, %cst_59 {dimension_numbers = #tpu.dot_dimension_numbers<[1], [0], [0], [1], [0, 0, 1, 1], [], []>} : vector<18x128xf32>, vector<128x32xf32>, vector<18x32xf32> -> vector<18x32xf32>
    %c7_60 = arith.constant 7 : index
    %c0_61 = arith.constant 0 : index
    %c0_62 = arith.constant 0 : index
    %61 = vector.load %arg5[%c7_60, %c0_61, %c0_62] : memref<16x32x64xf32, #tpu.memory_space<vmem>>, vector<1x32x64xf32>
    %62 = vector.shape_cast %61 : vector<1x32x64xf32> to vector<32x64xf32>
    %cst_63 = arith.constant dense<0.000000e+00> : vector<18x64xf32>
    %63 = tpu.matmul %60, %62, %cst_63 {dimension_numbers = #tpu.dot_dimension_numbers<[1], [0], [0], [1], [0, 0, 1, 1], [], []>} : vector<18x32xf32>, vector<32x64xf32>, vector<18x64xf32> -> vector<18x64xf32>
    %64 = arith.addf %57, %63 : vector<18x64xf32>
    %c8 = arith.constant 8 : index
    %c0_64 = arith.constant 0 : index
    %c0_65 = arith.constant 0 : index
    %65 = vector.load %arg4[%c8, %c0_64, %c0_65] : memref<16x18x128xf32, #tpu.memory_space<vmem>>, vector<1x18x128xf32>
    %66 = vector.shape_cast %65 : vector<1x18x128xf32> to vector<18x128xf32>
    %cst_66 = arith.constant dense<0.000000e+00> : vector<18x32xf32>
    %67 = tpu.matmul %66, %7, %cst_66 {dimension_numbers = #tpu.dot_dimension_numbers<[1], [0], [0], [1], [0, 0, 1, 1], [], []>} : vector<18x128xf32>, vector<128x32xf32>, vector<18x32xf32> -> vector<18x32xf32>
    %c8_67 = arith.constant 8 : index
    %c0_68 = arith.constant 0 : index
    %c0_69 = arith.constant 0 : index
    %68 = vector.load %arg5[%c8_67, %c0_68, %c0_69] : memref<16x32x64xf32, #tpu.memory_space<vmem>>, vector<1x32x64xf32>
    %69 = vector.shape_cast %68 : vector<1x32x64xf32> to vector<32x64xf32>
    %cst_70 = arith.constant dense<0.000000e+00> : vector<18x64xf32>
    %70 = tpu.matmul %67, %69, %cst_70 {dimension_numbers = #tpu.dot_dimension_numbers<[1], [0], [0], [1], [0, 0, 1, 1], [], []>} : vector<18x32xf32>, vector<32x64xf32>, vector<18x64xf32> -> vector<18x64xf32>
    %71 = arith.addf %64, %70 : vector<18x64xf32>
    %c9 = arith.constant 9 : index
    %c0_71 = arith.constant 0 : index
    %c0_72 = arith.constant 0 : index
    %72 = vector.load %arg4[%c9, %c0_71, %c0_72] : memref<16x18x128xf32, #tpu.memory_space<vmem>>, vector<1x18x128xf32>
    %73 = vector.shape_cast %72 : vector<1x18x128xf32> to vector<18x128xf32>
    %cst_73 = arith.constant dense<0.000000e+00> : vector<18x32xf32>
    %74 = tpu.matmul %73, %7, %cst_73 {dimension_numbers = #tpu.dot_dimension_numbers<[1], [0], [0], [1], [0, 0, 1, 1], [], []>} : vector<18x128xf32>, vector<128x32xf32>, vector<18x32xf32> -> vector<18x32xf32>
    %c9_74 = arith.constant 9 : index
    %c0_75 = arith.constant 0 : index
    %c0_76 = arith.constant 0 : index
    %75 = vector.load %arg5[%c9_74, %c0_75, %c0_76] : memref<16x32x64xf32, #tpu.memory_space<vmem>>, vector<1x32x64xf32>
    %76 = vector.shape_cast %75 : vector<1x32x64xf32> to vector<32x64xf32>
    %cst_77 = arith.constant dense<0.000000e+00> : vector<18x64xf32>
    %77 = tpu.matmul %74, %76, %cst_77 {dimension_numbers = #tpu.dot_dimension_numbers<[1], [0], [0], [1], [0, 0, 1, 1], [], []>} : vector<18x32xf32>, vector<32x64xf32>, vector<18x64xf32> -> vector<18x64xf32>
    %78 = arith.addf %71, %77 : vector<18x64xf32>
    %c10 = arith.constant 10 : index
    %c0_78 = arith.constant 0 : index
    %c0_79 = arith.constant 0 : index
    %79 = vector.load %arg4[%c10, %c0_78, %c0_79] : memref<16x18x128xf32, #tpu.memory_space<vmem>>, vector<1x18x128xf32>
    %80 = vector.shape_cast %79 : vector<1x18x128xf32> to vector<18x128xf32>
    %cst_80 = arith.constant dense<0.000000e+00> : vector<18x32xf32>
    %81 = tpu.matmul %80, %7, %cst_80 {dimension_numbers = #tpu.dot_dimension_numbers<[1], [0], [0], [1], [0, 0, 1, 1], [], []>} : vector<18x128xf32>, vector<128x32xf32>, vector<18x32xf32> -> vector<18x32xf32>
    %c10_81 = arith.constant 10 : index
    %c0_82 = arith.constant 0 : index
    %c0_83 = arith.constant 0 : index
    %82 = vector.load %arg5[%c10_81, %c0_82, %c0_83] : memref<16x32x64xf32, #tpu.memory_space<vmem>>, vector<1x32x64xf32>
    %83 = vector.shape_cast %82 : vector<1x32x64xf32> to vector<32x64xf32>
    %cst_84 = arith.constant dense<0.000000e+00> : vector<18x64xf32>
    %84 = tpu.matmul %81, %83, %cst_84 {dimension_numbers = #tpu.dot_dimension_numbers<[1], [0], [0], [1], [0, 0, 1, 1], [], []>} : vector<18x32xf32>, vector<32x64xf32>, vector<18x64xf32> -> vector<18x64xf32>
    %85 = arith.addf %78, %84 : vector<18x64xf32>
    %c11 = arith.constant 11 : index
    %c0_85 = arith.constant 0 : index
    %c0_86 = arith.constant 0 : index
    %86 = vector.load %arg4[%c11, %c0_85, %c0_86] : memref<16x18x128xf32, #tpu.memory_space<vmem>>, vector<1x18x128xf32>
    %87 = vector.shape_cast %86 : vector<1x18x128xf32> to vector<18x128xf32>
    %cst_87 = arith.constant dense<0.000000e+00> : vector<18x32xf32>
    %88 = tpu.matmul %87, %7, %cst_87 {dimension_numbers = #tpu.dot_dimension_numbers<[1], [0], [0], [1], [0, 0, 1, 1], [], []>} : vector<18x128xf32>, vector<128x32xf32>, vector<18x32xf32> -> vector<18x32xf32>
    %c11_88 = arith.constant 11 : index
    %c0_89 = arith.constant 0 : index
    %c0_90 = arith.constant 0 : index
    %89 = vector.load %arg5[%c11_88, %c0_89, %c0_90] : memref<16x32x64xf32, #tpu.memory_space<vmem>>, vector<1x32x64xf32>
    %90 = vector.shape_cast %89 : vector<1x32x64xf32> to vector<32x64xf32>
    %cst_91 = arith.constant dense<0.000000e+00> : vector<18x64xf32>
    %91 = tpu.matmul %88, %90, %cst_91 {dimension_numbers = #tpu.dot_dimension_numbers<[1], [0], [0], [1], [0, 0, 1, 1], [], []>} : vector<18x32xf32>, vector<32x64xf32>, vector<18x64xf32> -> vector<18x64xf32>
    %92 = arith.addf %85, %91 : vector<18x64xf32>
    %c12 = arith.constant 12 : index
    %c0_92 = arith.constant 0 : index
    %c0_93 = arith.constant 0 : index
    %93 = vector.load %arg4[%c12, %c0_92, %c0_93] : memref<16x18x128xf32, #tpu.memory_space<vmem>>, vector<1x18x128xf32>
    %94 = vector.shape_cast %93 : vector<1x18x128xf32> to vector<18x128xf32>
    %cst_94 = arith.constant dense<0.000000e+00> : vector<18x32xf32>
    %95 = tpu.matmul %94, %7, %cst_94 {dimension_numbers = #tpu.dot_dimension_numbers<[1], [0], [0], [1], [0, 0, 1, 1], [], []>} : vector<18x128xf32>, vector<128x32xf32>, vector<18x32xf32> -> vector<18x32xf32>
    %c12_95 = arith.constant 12 : index
    %c0_96 = arith.constant 0 : index
    %c0_97 = arith.constant 0 : index
    %96 = vector.load %arg5[%c12_95, %c0_96, %c0_97] : memref<16x32x64xf32, #tpu.memory_space<vmem>>, vector<1x32x64xf32>
    %97 = vector.shape_cast %96 : vector<1x32x64xf32> to vector<32x64xf32>
    %cst_98 = arith.constant dense<0.000000e+00> : vector<18x64xf32>
    %98 = tpu.matmul %95, %97, %cst_98 {dimension_numbers = #tpu.dot_dimension_numbers<[1], [0], [0], [1], [0, 0, 1, 1], [], []>} : vector<18x32xf32>, vector<32x64xf32>, vector<18x64xf32> -> vector<18x64xf32>
    %99 = arith.addf %92, %98 : vector<18x64xf32>
    %c13 = arith.constant 13 : index
    %c0_99 = arith.constant 0 : index
    %c0_100 = arith.constant 0 : index
    %100 = vector.load %arg4[%c13, %c0_99, %c0_100] : memref<16x18x128xf32, #tpu.memory_space<vmem>>, vector<1x18x128xf32>
    %101 = vector.shape_cast %100 : vector<1x18x128xf32> to vector<18x128xf32>
    %cst_101 = arith.constant dense<0.000000e+00> : vector<18x32xf32>
    %102 = tpu.matmul %101, %7, %cst_101 {dimension_numbers = #tpu.dot_dimension_numbers<[1], [0], [0], [1], [0, 0, 1, 1], [], []>} : vector<18x128xf32>, vector<128x32xf32>, vector<18x32xf32> -> vector<18x32xf32>
    %c13_102 = arith.constant 13 : index
    %c0_103 = arith.constant 0 : index
    %c0_104 = arith.constant 0 : index
    %103 = vector.load %arg5[%c13_102, %c0_103, %c0_104] : memref<16x32x64xf32, #tpu.memory_space<vmem>>, vector<1x32x64xf32>
    %104 = vector.shape_cast %103 : vector<1x32x64xf32> to vector<32x64xf32>
    %cst_105 = arith.constant dense<0.000000e+00> : vector<18x64xf32>
    %105 = tpu.matmul %102, %104, %cst_105 {dimension_numbers = #tpu.dot_dimension_numbers<[1], [0], [0], [1], [0, 0, 1, 1], [], []>} : vector<18x32xf32>, vector<32x64xf32>, vector<18x64xf32> -> vector<18x64xf32>
    %106 = arith.addf %99, %105 : vector<18x64xf32>
    %c14 = arith.constant 14 : index
    %c0_106 = arith.constant 0 : index
    %c0_107 = arith.constant 0 : index
    %107 = vector.load %arg4[%c14, %c0_106, %c0_107] : memref<16x18x128xf32, #tpu.memory_space<vmem>>, vector<1x18x128xf32>
    %108 = vector.shape_cast %107 : vector<1x18x128xf32> to vector<18x128xf32>
    %cst_108 = arith.constant dense<0.000000e+00> : vector<18x32xf32>
    %109 = tpu.matmul %108, %7, %cst_108 {dimension_numbers = #tpu.dot_dimension_numbers<[1], [0], [0], [1], [0, 0, 1, 1], [], []>} : vector<18x128xf32>, vector<128x32xf32>, vector<18x32xf32> -> vector<18x32xf32>
    %c14_109 = arith.constant 14 : index
    %c0_110 = arith.constant 0 : index
    %c0_111 = arith.constant 0 : index
    %110 = vector.load %arg5[%c14_109, %c0_110, %c0_111] : memref<16x32x64xf32, #tpu.memory_space<vmem>>, vector<1x32x64xf32>
    %111 = vector.shape_cast %110 : vector<1x32x64xf32> to vector<32x64xf32>
    %cst_112 = arith.constant dense<0.000000e+00> : vector<18x64xf32>
    %112 = tpu.matmul %109, %111, %cst_112 {dimension_numbers = #tpu.dot_dimension_numbers<[1], [0], [0], [1], [0, 0, 1, 1], [], []>} : vector<18x32xf32>, vector<32x64xf32>, vector<18x64xf32> -> vector<18x64xf32>
    %113 = arith.addf %106, %112 : vector<18x64xf32>
    %c15 = arith.constant 15 : index
    %c0_113 = arith.constant 0 : index
    %c0_114 = arith.constant 0 : index
    %114 = vector.load %arg4[%c15, %c0_113, %c0_114] : memref<16x18x128xf32, #tpu.memory_space<vmem>>, vector<1x18x128xf32>
    %115 = vector.shape_cast %114 : vector<1x18x128xf32> to vector<18x128xf32>
    %cst_115 = arith.constant dense<0.000000e+00> : vector<18x32xf32>
    %116 = tpu.matmul %115, %7, %cst_115 {dimension_numbers = #tpu.dot_dimension_numbers<[1], [0], [0], [1], [0, 0, 1, 1], [], []>} : vector<18x128xf32>, vector<128x32xf32>, vector<18x32xf32> -> vector<18x32xf32>
    %c15_116 = arith.constant 15 : index
    %c0_117 = arith.constant 0 : index
    %c0_118 = arith.constant 0 : index
    %117 = vector.load %arg5[%c15_116, %c0_117, %c0_118] : memref<16x32x64xf32, #tpu.memory_space<vmem>>, vector<1x32x64xf32>
    %118 = vector.shape_cast %117 : vector<1x32x64xf32> to vector<32x64xf32>
    %cst_119 = arith.constant dense<0.000000e+00> : vector<18x64xf32>
    %119 = tpu.matmul %116, %118, %cst_119 {dimension_numbers = #tpu.dot_dimension_numbers<[1], [0], [0], [1], [0, 0, 1, 1], [], []>} : vector<18x32xf32>, vector<32x64xf32>, vector<18x64xf32> -> vector<18x64xf32>
    %120 = arith.addf %113, %119 : vector<18x64xf32>
    %c0_120 = arith.constant 0 : index
    %c0_121 = arith.constant 0 : index
    %121 = vector.load %arg6[%c0_120, %c0_121] : memref<1x64xf32, #tpu.memory_space<vmem>>, vector<1x64xf32>
    %122 = vector.broadcast %121 : vector<1x64xf32> to vector<18x64xf32>
    %123 = arith.addf %120, %122 : vector<18x64xf32>
    %cst_122 = arith.constant 0.000000e+00 : f32
    %124 = vector.broadcast %cst_122 : f32 to vector<18x64xf32>
    %125 = arith.maximumf %123, %124 : vector<18x64xf32>
    %cst_123 = arith.constant 0.000000e+00 : f32
    %126 = vector.broadcast %cst_123 : f32 to vector<2x64xf32>
    %c0_124 = arith.constant 0 : index
    %c0_125 = arith.constant 0 : index
    %c0_126 = arith.constant 0 : index
    %127 = vector.load %arg7[%c0_124, %c0_125, %c0_126] : memref<9x2x18xf32, #tpu.memory_space<vmem>>, vector<1x2x18xf32>
    %128 = vector.shape_cast %127 : vector<1x2x18xf32> to vector<2x18xf32>
    %cst_127 = arith.constant dense<0.000000e+00> : vector<2x64xf32>
    %129 = tpu.matmul %128, %125, %cst_127 {dimension_numbers = #tpu.dot_dimension_numbers<[1], [0], [0], [1], [0, 0, 1, 1], [], []>} : vector<2x18xf32>, vector<18x64xf32>, vector<2x64xf32> -> vector<2x64xf32>
    %c0_128 = arith.constant 0 : index
    %c0_129 = arith.constant 0 : index
    %c0_130 = arith.constant 0 : index
    %130 = vector.load %arg8[%c0_128, %c0_129, %c0_130] : memref<9x64x64xf32, #tpu.memory_space<vmem>>, vector<1x64x64xf32>
    %131 = vector.shape_cast %130 : vector<1x64x64xf32> to vector<64x64xf32>
    %cst_131 = arith.constant dense<0.000000e+00> : vector<2x64xf32>
    %132 = tpu.matmul %129, %131, %cst_131 {dimension_numbers = #tpu.dot_dimension_numbers<[1], [0], [0], [1], [0, 0, 1, 1], [], []>} : vector<2x64xf32>, vector<64x64xf32>, vector<2x64xf32> -> vector<2x64xf32>
    %133 = arith.addf %126, %132 : vector<2x64xf32>
    %c1_132 = arith.constant 1 : index
    %c0_133 = arith.constant 0 : index
    %c0_134 = arith.constant 0 : index
    %134 = vector.load %arg7[%c1_132, %c0_133, %c0_134] : memref<9x2x18xf32, #tpu.memory_space<vmem>>, vector<1x2x18xf32>
    %135 = vector.shape_cast %134 : vector<1x2x18xf32> to vector<2x18xf32>
    %cst_135 = arith.constant dense<0.000000e+00> : vector<2x64xf32>
    %136 = tpu.matmul %135, %125, %cst_135 {dimension_numbers = #tpu.dot_dimension_numbers<[1], [0], [0], [1], [0, 0, 1, 1], [], []>} : vector<2x18xf32>, vector<18x64xf32>, vector<2x64xf32> -> vector<2x64xf32>
    %c1_136 = arith.constant 1 : index
    %c0_137 = arith.constant 0 : index
    %c0_138 = arith.constant 0 : index
    %137 = vector.load %arg8[%c1_136, %c0_137, %c0_138] : memref<9x64x64xf32, #tpu.memory_space<vmem>>, vector<1x64x64xf32>
    %138 = vector.shape_cast %137 : vector<1x64x64xf32> to vector<64x64xf32>
    %cst_139 = arith.constant dense<0.000000e+00> : vector<2x64xf32>
    %139 = tpu.matmul %136, %138, %cst_139 {dimension_numbers = #tpu.dot_dimension_numbers<[1], [0], [0], [1], [0, 0, 1, 1], [], []>} : vector<2x64xf32>, vector<64x64xf32>, vector<2x64xf32> -> vector<2x64xf32>
    %140 = arith.addf %133, %139 : vector<2x64xf32>
    %c2_140 = arith.constant 2 : index
    %c0_141 = arith.constant 0 : index
    %c0_142 = arith.constant 0 : index
    %141 = vector.load %arg7[%c2_140, %c0_141, %c0_142] : memref<9x2x18xf32, #tpu.memory_space<vmem>>, vector<1x2x18xf32>
    %142 = vector.shape_cast %141 : vector<1x2x18xf32> to vector<2x18xf32>
    %cst_143 = arith.constant dense<0.000000e+00> : vector<2x64xf32>
    %143 = tpu.matmul %142, %125, %cst_143 {dimension_numbers = #tpu.dot_dimension_numbers<[1], [0], [0], [1], [0, 0, 1, 1], [], []>} : vector<2x18xf32>, vector<18x64xf32>, vector<2x64xf32> -> vector<2x64xf32>
    %c2_144 = arith.constant 2 : index
    %c0_145 = arith.constant 0 : index
    %c0_146 = arith.constant 0 : index
    %144 = vector.load %arg8[%c2_144, %c0_145, %c0_146] : memref<9x64x64xf32, #tpu.memory_space<vmem>>, vector<1x64x64xf32>
    %145 = vector.shape_cast %144 : vector<1x64x64xf32> to vector<64x64xf32>
    %cst_147 = arith.constant dense<0.000000e+00> : vector<2x64xf32>
    %146 = tpu.matmul %143, %145, %cst_147 {dimension_numbers = #tpu.dot_dimension_numbers<[1], [0], [0], [1], [0, 0, 1, 1], [], []>} : vector<2x64xf32>, vector<64x64xf32>, vector<2x64xf32> -> vector<2x64xf32>
    %147 = arith.addf %140, %146 : vector<2x64xf32>
    %c3_148 = arith.constant 3 : index
    %c0_149 = arith.constant 0 : index
    %c0_150 = arith.constant 0 : index
    %148 = vector.load %arg7[%c3_148, %c0_149, %c0_150] : memref<9x2x18xf32, #tpu.memory_space<vmem>>, vector<1x2x18xf32>
    %149 = vector.shape_cast %148 : vector<1x2x18xf32> to vector<2x18xf32>
    %cst_151 = arith.constant dense<0.000000e+00> : vector<2x64xf32>
    %150 = tpu.matmul %149, %125, %cst_151 {dimension_numbers = #tpu.dot_dimension_numbers<[1], [0], [0], [1], [0, 0, 1, 1], [], []>} : vector<2x18xf32>, vector<18x64xf32>, vector<2x64xf32> -> vector<2x64xf32>
    %c3_152 = arith.constant 3 : index
    %c0_153 = arith.constant 0 : index
    %c0_154 = arith.constant 0 : index
    %151 = vector.load %arg8[%c3_152, %c0_153, %c0_154] : memref<9x64x64xf32, #tpu.memory_space<vmem>>, vector<1x64x64xf32>
    %152 = vector.shape_cast %151 : vector<1x64x64xf32> to vector<64x64xf32>
    %cst_155 = arith.constant dense<0.000000e+00> : vector<2x64xf32>
    %153 = tpu.matmul %150, %152, %cst_155 {dimension_numbers = #tpu.dot_dimension_numbers<[1], [0], [0], [1], [0, 0, 1, 1], [], []>} : vector<2x64xf32>, vector<64x64xf32>, vector<2x64xf32> -> vector<2x64xf32>
    %154 = arith.addf %147, %153 : vector<2x64xf32>
    %c4_156 = arith.constant 4 : index
    %c0_157 = arith.constant 0 : index
    %c0_158 = arith.constant 0 : index
    %155 = vector.load %arg7[%c4_156, %c0_157, %c0_158] : memref<9x2x18xf32, #tpu.memory_space<vmem>>, vector<1x2x18xf32>
    %156 = vector.shape_cast %155 : vector<1x2x18xf32> to vector<2x18xf32>
    %cst_159 = arith.constant dense<0.000000e+00> : vector<2x64xf32>
    %157 = tpu.matmul %156, %125, %cst_159 {dimension_numbers = #tpu.dot_dimension_numbers<[1], [0], [0], [1], [0, 0, 1, 1], [], []>} : vector<2x18xf32>, vector<18x64xf32>, vector<2x64xf32> -> vector<2x64xf32>
    %c4_160 = arith.constant 4 : index
    %c0_161 = arith.constant 0 : index
    %c0_162 = arith.constant 0 : index
    %158 = vector.load %arg8[%c4_160, %c0_161, %c0_162] : memref<9x64x64xf32, #tpu.memory_space<vmem>>, vector<1x64x64xf32>
    %159 = vector.shape_cast %158 : vector<1x64x64xf32> to vector<64x64xf32>
    %cst_163 = arith.constant dense<0.000000e+00> : vector<2x64xf32>
    %160 = tpu.matmul %157, %159, %cst_163 {dimension_numbers = #tpu.dot_dimension_numbers<[1], [0], [0], [1], [0, 0, 1, 1], [], []>} : vector<2x64xf32>, vector<64x64xf32>, vector<2x64xf32> -> vector<2x64xf32>
    %161 = arith.addf %154, %160 : vector<2x64xf32>
    %c5_164 = arith.constant 5 : index
    %c0_165 = arith.constant 0 : index
    %c0_166 = arith.constant 0 : index
    %162 = vector.load %arg7[%c5_164, %c0_165, %c0_166] : memref<9x2x18xf32, #tpu.memory_space<vmem>>, vector<1x2x18xf32>
    %163 = vector.shape_cast %162 : vector<1x2x18xf32> to vector<2x18xf32>
    %cst_167 = arith.constant dense<0.000000e+00> : vector<2x64xf32>
    %164 = tpu.matmul %163, %125, %cst_167 {dimension_numbers = #tpu.dot_dimension_numbers<[1], [0], [0], [1], [0, 0, 1, 1], [], []>} : vector<2x18xf32>, vector<18x64xf32>, vector<2x64xf32> -> vector<2x64xf32>
    %c5_168 = arith.constant 5 : index
    %c0_169 = arith.constant 0 : index
    %c0_170 = arith.constant 0 : index
    %165 = vector.load %arg8[%c5_168, %c0_169, %c0_170] : memref<9x64x64xf32, #tpu.memory_space<vmem>>, vector<1x64x64xf32>
    %166 = vector.shape_cast %165 : vector<1x64x64xf32> to vector<64x64xf32>
    %cst_171 = arith.constant dense<0.000000e+00> : vector<2x64xf32>
    %167 = tpu.matmul %164, %166, %cst_171 {dimension_numbers = #tpu.dot_dimension_numbers<[1], [0], [0], [1], [0, 0, 1, 1], [], []>} : vector<2x64xf32>, vector<64x64xf32>, vector<2x64xf32> -> vector<2x64xf32>
    %168 = arith.addf %161, %167 : vector<2x64xf32>
    %c6_172 = arith.constant 6 : index
    %c0_173 = arith.constant 0 : index
    %c0_174 = arith.constant 0 : index
    %169 = vector.load %arg7[%c6_172, %c0_173, %c0_174] : memref<9x2x18xf32, #tpu.memory_space<vmem>>, vector<1x2x18xf32>
    %170 = vector.shape_cast %169 : vector<1x2x18xf32> to vector<2x18xf32>
    %cst_175 = arith.constant dense<0.000000e+00> : vector<2x64xf32>
    %171 = tpu.matmul %170, %125, %cst_175 {dimension_numbers = #tpu.dot_dimension_numbers<[1], [0], [0], [1], [0, 0, 1, 1], [], []>} : vector<2x18xf32>, vector<18x64xf32>, vector<2x64xf32> -> vector<2x64xf32>
    %c6_176 = arith.constant 6 : index
    %c0_177 = arith.constant 0 : index
    %c0_178 = arith.constant 0 : index
    %172 = vector.load %arg8[%c6_176, %c0_177, %c0_178] : memref<9x64x64xf32, #tpu.memory_space<vmem>>, vector<1x64x64xf32>
    %173 = vector.shape_cast %172 : vector<1x64x64xf32> to vector<64x64xf32>
    %cst_179 = arith.constant dense<0.000000e+00> : vector<2x64xf32>
    %174 = tpu.matmul %171, %173, %cst_179 {dimension_numbers = #tpu.dot_dimension_numbers<[1], [0], [0], [1], [0, 0, 1, 1], [], []>} : vector<2x64xf32>, vector<64x64xf32>, vector<2x64xf32> -> vector<2x64xf32>
    %175 = arith.addf %168, %174 : vector<2x64xf32>
    %c7_180 = arith.constant 7 : index
    %c0_181 = arith.constant 0 : index
    %c0_182 = arith.constant 0 : index
    %176 = vector.load %arg7[%c7_180, %c0_181, %c0_182] : memref<9x2x18xf32, #tpu.memory_space<vmem>>, vector<1x2x18xf32>
    %177 = vector.shape_cast %176 : vector<1x2x18xf32> to vector<2x18xf32>
    %cst_183 = arith.constant dense<0.000000e+00> : vector<2x64xf32>
    %178 = tpu.matmul %177, %125, %cst_183 {dimension_numbers = #tpu.dot_dimension_numbers<[1], [0], [0], [1], [0, 0, 1, 1], [], []>} : vector<2x18xf32>, vector<18x64xf32>, vector<2x64xf32> -> vector<2x64xf32>
    %c7_184 = arith.constant 7 : index
    %c0_185 = arith.constant 0 : index
    %c0_186 = arith.constant 0 : index
    %179 = vector.load %arg8[%c7_184, %c0_185, %c0_186] : memref<9x64x64xf32, #tpu.memory_space<vmem>>, vector<1x64x64xf32>
    %180 = vector.shape_cast %179 : vector<1x64x64xf32> to vector<64x64xf32>
    %cst_187 = arith.constant dense<0.000000e+00> : vector<2x64xf32>
    %181 = tpu.matmul %178, %180, %cst_187 {dimension_numbers = #tpu.dot_dimension_numbers<[1], [0], [0], [1], [0, 0, 1, 1], [], []>} : vector<2x64xf32>, vector<64x64xf32>, vector<2x64xf32> -> vector<2x64xf32>
    %182 = arith.addf %175, %181 : vector<2x64xf32>
    %c8_188 = arith.constant 8 : index
    %c0_189 = arith.constant 0 : index
    %c0_190 = arith.constant 0 : index
    %183 = vector.load %arg7[%c8_188, %c0_189, %c0_190] : memref<9x2x18xf32, #tpu.memory_space<vmem>>, vector<1x2x18xf32>
    %184 = vector.shape_cast %183 : vector<1x2x18xf32> to vector<2x18xf32>
    %cst_191 = arith.constant dense<0.000000e+00> : vector<2x64xf32>
    %185 = tpu.matmul %184, %125, %cst_191 {dimension_numbers = #tpu.dot_dimension_numbers<[1], [0], [0], [1], [0, 0, 1, 1], [], []>} : vector<2x18xf32>, vector<18x64xf32>, vector<2x64xf32> -> vector<2x64xf32>
    %c8_192 = arith.constant 8 : index
    %c0_193 = arith.constant 0 : index
    %c0_194 = arith.constant 0 : index
    %186 = vector.load %arg8[%c8_192, %c0_193, %c0_194] : memref<9x64x64xf32, #tpu.memory_space<vmem>>, vector<1x64x64xf32>
    %187 = vector.shape_cast %186 : vector<1x64x64xf32> to vector<64x64xf32>
    %cst_195 = arith.constant dense<0.000000e+00> : vector<2x64xf32>
    %188 = tpu.matmul %185, %187, %cst_195 {dimension_numbers = #tpu.dot_dimension_numbers<[1], [0], [0], [1], [0, 0, 1, 1], [], []>} : vector<2x64xf32>, vector<64x64xf32>, vector<2x64xf32> -> vector<2x64xf32>
    %189 = arith.addf %182, %188 : vector<2x64xf32>
    %c0_196 = arith.constant 0 : index
    %c0_197 = arith.constant 0 : index
    %190 = vector.load %arg9[%c0_196, %c0_197] : memref<1x64xf32, #tpu.memory_space<vmem>>, vector<1x64xf32>
    %191 = vector.broadcast %190 : vector<1x64xf32> to vector<2x64xf32>
    %192 = arith.addf %189, %191 : vector<2x64xf32>
    %cst_198 = arith.constant 0.000000e+00 : f32
    %193 = vector.broadcast %cst_198 : f32 to vector<2x64xf32>
    %194 = arith.maximumf %192, %193 : vector<2x64xf32>
    %c0_199 = arith.constant 0 : index
    %c0_200 = arith.constant 0 : index
    %195 = vector.load %arg10[%c0_199, %c0_200] : memref<64x512xf32, #tpu.memory_space<vmem>>, vector<64x512xf32>
    %c0_201 = arith.constant 0 : index
    %c0_202 = arith.constant 0 : index
    %196 = vector.load %arg11[%c0_201, %c0_202] : memref<1x512xf32, #tpu.memory_space<vmem>>, vector<1x512xf32>
    %cst_203 = arith.constant dense<0.000000e+00> : vector<2x512xf32>
    %197 = tpu.matmul %194, %195, %cst_203 {dimension_numbers = #tpu.dot_dimension_numbers<[1], [0], [0], [1], [0, 0, 1, 1], [], []>} : vector<2x64xf32>, vector<64x512xf32>, vector<2x512xf32> -> vector<2x512xf32>
    %198 = vector.broadcast %196 : vector<1x512xf32> to vector<2x512xf32>
    %199 = arith.addf %197, %198 : vector<2x512xf32>
    %cst_204 = arith.constant 0.000000e+00 : f32
    %200 = vector.broadcast %cst_204 : f32 to vector<2x512xf32>
    %201 = arith.maximumf %199, %200 : vector<2x512xf32>
    %c0_205 = arith.constant 0 : index
    %c0_206 = arith.constant 0 : index
    %202 = vector.load %arg12[%c0_205, %c0_206] : memref<512x64xf32, #tpu.memory_space<vmem>>, vector<512x64xf32>
    %c0_207 = arith.constant 0 : index
    %c0_208 = arith.constant 0 : index
    %203 = vector.load %arg13[%c0_207, %c0_208] : memref<1x64xf32, #tpu.memory_space<vmem>>, vector<1x64xf32>
    %cst_209 = arith.constant dense<0.000000e+00> : vector<2x64xf32>
    %204 = tpu.matmul %201, %202, %cst_209 {dimension_numbers = #tpu.dot_dimension_numbers<[1], [0], [0], [1], [0, 0, 1, 1], [], []>} : vector<2x512xf32>, vector<512x64xf32>, vector<2x64xf32> -> vector<2x64xf32>
    %205 = vector.broadcast %203 : vector<1x64xf32> to vector<2x64xf32>
    %206 = arith.addf %204, %205 : vector<2x64xf32>
    %cst_210 = arith.constant 0.000000e+00 : f32
    %207 = vector.broadcast %cst_210 : f32 to vector<2x64xf32>
    %208 = arith.maximumf %206, %207 : vector<2x64xf32>
    %c0_211 = arith.constant 0 : index
    %c0_212 = arith.constant 0 : index
    %209 = vector.load %arg14[%c0_211, %c0_212] : memref<64x64xf32, #tpu.memory_space<vmem>>, vector<64x64xf32>
    %c0_213 = arith.constant 0 : index
    %c0_214 = arith.constant 0 : index
    %210 = vector.load %arg15[%c0_213, %c0_214] : memref<1x64xf32, #tpu.memory_space<vmem>>, vector<1x64xf32>
    %cst_215 = arith.constant dense<0.000000e+00> : vector<2x64xf32>
    %211 = tpu.matmul %208, %209, %cst_215 {dimension_numbers = #tpu.dot_dimension_numbers<[1], [0], [0], [1], [0, 0, 1, 1], [], []>} : vector<2x64xf32>, vector<64x64xf32>, vector<2x64xf32> -> vector<2x64xf32>
    %212 = vector.broadcast %210 : vector<1x64xf32> to vector<2x64xf32>
    %213 = arith.addf %211, %212 : vector<2x64xf32>
    %cst_216 = arith.constant 0.000000e+00 : f32
    %214 = vector.broadcast %cst_216 : f32 to vector<2x64xf32>
    %215 = arith.maximumf %213, %214 : vector<2x64xf32>
    %c0_217 = arith.constant 0 : index
    %c0_218 = arith.constant 0 : index
    %216 = vector.load %arg16[%c0_217, %c0_218] : memref<64x6xf32, #tpu.memory_space<vmem>>, vector<64x6xf32>
    %c0_219 = arith.constant 0 : index
    %c0_220 = arith.constant 0 : index
    %217 = vector.load %arg17[%c0_219, %c0_220] : memref<1x6xf32, #tpu.memory_space<vmem>>, vector<1x6xf32>
    %cst_221 = arith.constant dense<0.000000e+00> : vector<2x6xf32>
    %218 = tpu.matmul %215, %216, %cst_221 {dimension_numbers = #tpu.dot_dimension_numbers<[1], [0], [0], [1], [0, 0, 1, 1], [], []>} : vector<2x64xf32>, vector<64x6xf32>, vector<2x6xf32> -> vector<2x6xf32>
    %219 = vector.broadcast %217 : vector<1x6xf32> to vector<2x6xf32>
    %220 = arith.addf %218, %219 : vector<2x6xf32>
    %c0_222 = arith.constant 0 : index
    %c0_223 = arith.constant 0 : index
    %221 = vector.load %arg18[%c0_222, %c0_223] : memref<2x6xf32, #tpu.memory_space<vmem>>, vector<2x6xf32>
    tpu.vector_store %arg18[%c0_222, %c0_223], %220 {strides = array<i32>} : memref<2x6xf32, #tpu.memory_space<vmem>>, vector<2x6xf32>,
    return
  }
  func.func @transform_0(%arg0: i32) -> (i32, i32) {
    %c0_i32 = arith.constant 0 : i32
    %c0_i32_0 = arith.constant 0 : i32
    %c0_i32_1 = arith.constant 0 : i32
    return %c0_i32, %c0_i32_0 : i32, i32
  }
  func.func @transform_1(%arg0: i32) -> (i32, i32) {
    %c0_i32 = arith.constant 0 : i32
    %c0_i32_0 = arith.constant 0 : i32
    %c0_i32_1 = arith.constant 0 : i32
    return %c0_i32, %c0_i32_0 : i32, i32
  }
  func.func @transform_2(%arg0: i32) -> (i32, i32) {
    %c0_i32 = arith.constant 0 : i32
    %c0_i32_0 = arith.constant 0 : i32
    %c0_i32_1 = arith.constant 0 : i32
    return %c0_i32, %c0_i32_0 : i32, i32
  }
  func.func @transform_3(%arg0: i32) -> (i32, i32, i32) {
    %c0_i32 = arith.constant 0 : i32
    %c0_i32_0 = arith.constant 0 : i32
    %c0_i32_1 = arith.constant 0 : i32
    %c0_i32_2 = arith.constant 0 : i32
    return %c0_i32, %c0_i32_0, %c0_i32_1 : i32, i32, i32
  }
  func.func @transform_4(%arg0: i32) -> (i32, i32, i32) {
    %c0_i32 = arith.constant 0 : i32
    %c0_i32_0 = arith.constant 0 : i32
    %c0_i32_1 = arith.constant 0 : i32
    %c0_i32_2 = arith.constant 0 : i32
    return %c0_i32, %c0_i32_0, %c0_i32_1 : i32, i32, i32
  }
  func.func @transform_5(%arg0: i32) -> (i32, i32) {
    %c0_i32 = arith.constant 0 : i32
    %c0_i32_0 = arith.constant 0 : i32
    %c0_i32_1 = arith.constant 0 : i32
    return %c0_i32, %c0_i32_0 : i32, i32
  }
  func.func @transform_6(%arg0: i32) -> (i32, i32, i32) {
    %c0_i32 = arith.constant 0 : i32
    %c0_i32_0 = arith.constant 0 : i32
    %c0_i32_1 = arith.constant 0 : i32
    %c0_i32_2 = arith.constant 0 : i32
    return %c0_i32, %c0_i32_0, %c0_i32_1 : i32, i32, i32
  }
  func.func @transform_7(%arg0: i32) -> (i32, i32, i32) {
    %c0_i32 = arith.constant 0 : i32
    %c0_i32_0 = arith.constant 0 : i32
    %c0_i32_1 = arith.constant 0 : i32
    %c0_i32_2 = arith.constant 0 : i32
    return %c0_i32, %c0_i32_0, %c0_i32_1 : i32, i32, i32
  }
  func.func @transform_8(%arg0: i32) -> (i32, i32) {
    %c0_i32 = arith.constant 0 : i32
    %c0_i32_0 = arith.constant 0 : i32
    %c0_i32_1 = arith.constant 0 : i32
    return %c0_i32, %c0_i32_0 : i32, i32
  }
  func.func @transform_9(%arg0: i32) -> (i32, i32) {
    %c0_i32 = arith.constant 0 : i32
    %c0_i32_0 = arith.constant 0 : i32
    %c0_i32_1 = arith.constant 0 : i32
    return %c0_i32, %c0_i32_0 : i32, i32
  }
  func.func @transform_10(%arg0: i32) -> (i32, i32) {
    %c0_i32 = arith.constant 0 : i32
    %c0_i32_0 = arith.constant 0 : i32
    %c0_i32_1 = arith.constant 0 : i32
    return %c0_i32, %c0_i32_0 : i32, i32
  }
  func.func @transform_11(%arg0: i32) -> (i32, i32) {
    %c0_i32 = arith.constant 0 : i32
    %c0_i32_0 = arith.constant 0 : i32
    %c0_i32_1 = arith.constant 0 : i32
    return %c0_i32, %c0_i32_0 : i32, i32
  }
  func.func @transform_12(%arg0: i32) -> (i32, i32) {
    %c0_i32 = arith.constant 0 : i32
    %c0_i32_0 = arith.constant 0 : i32
    %c0_i32_1 = arith.constant 0 : i32
    return %c0_i32, %c0_i32_0 : i32, i32
  }
  func.func @transform_13(%arg0: i32) -> (i32, i32) {
    %c0_i32 = arith.constant 0 : i32
    %c0_i32_0 = arith.constant 0 : i32
    %c0_i32_1 = arith.constant 0 : i32
    return %c0_i32, %c0_i32_0 : i32, i32
  }
  func.func @transform_14(%arg0: i32) -> (i32, i32) {
    %c0_i32 = arith.constant 0 : i32
    %c0_i32_0 = arith.constant 0 : i32
    %c0_i32_1 = arith.constant 0 : i32
    return %c0_i32, %c0_i32_0 : i32, i32
  }
  func.func @transform_15(%arg0: i32) -> (i32, i32) {
    %c0_i32 = arith.constant 0 : i32
    %c0_i32_0 = arith.constant 0 : i32
    %c0_i32_1 = arith.constant 0 : i32
    return %c0_i32, %c0_i32_0 : i32, i32
  }
  func.func @transform_16(%arg0: i32) -> (i32, i32) {
    %c0_i32 = arith.constant 0 : i32
    %c0_i32_0 = arith.constant 0 : i32
    %c0_i32_1 = arith.constant 0 : i32
    return %c0_i32, %c0_i32_0 : i32, i32
  }
  func.func @transform_17(%arg0: i32) -> (i32, i32) {
    %c0_i32 = arith.constant 0 : i32
    %c0_i32_0 = arith.constant 0 : i32
    %c0_i32_1 = arith.constant 0 : i32
    return %c0_i32, %c0_i32_0 : i32, i32
  }
}

</mosaic_0001>

<llo_original>
// kernel: cnn_forward.1
$region0: #{cnn_forward.1}
  #allocation0 [shape = 'u32[]', space=smem, size = 0x4, offset = 0x4, fixed_abs, tag = 'smem constant byte address 0x4 - core index']
  #allocation1 [shape = 'u32[144,128]{1,0:T(1,128)}', space=vmem, size = 0x12000, scoped, tag = 'internal scratch']
  %s0 = inlined_call_operand.vmem [shape: f32[128,256], index: 0, kind: input, shape index: {}]
  %s1 = inlined_call_operand.vmem [shape: f32[256,32], index: 1, kind: input, shape index: {}]
  %s2 = inlined_call_operand.vmem [shape: f32[1,32], index: 2, kind: input, shape index: {}]
  %s3 = inlined_call_operand.vmem [shape: f32[16,18,128], index: 3, kind: input, shape index: {}]
  %s4 = inlined_call_operand.vmem [shape: f32[16,32,64], index: 4, kind: input, shape index: {}]
  %s5 = inlined_call_operand.vmem [shape: f32[1,64], index: 5, kind: input, shape index: {}]
  %s6 = inlined_call_operand.vmem [shape: f32[9,2,18], index: 6, kind: input, shape index: {}]
  %s7 = inlined_call_operand.vmem [shape: f32[9,64,64], index: 7, kind: input, shape index: {}]
  %s8 = inlined_call_operand.vmem [shape: f32[1,64], index: 8, kind: input, shape index: {}]
  %s9 = inlined_call_operand.vmem [shape: f32[64,512], index: 9, kind: input, shape index: {}]
  %s10 = inlined_call_operand.vmem [shape: f32[1,512], index: 10, kind: input, shape index: {}]
  %s11 = inlined_call_operand.vmem [shape: f32[512,64], index: 11, kind: input, shape index: {}]
  %s12 = inlined_call_operand.vmem [shape: f32[1,64], index: 12, kind: input, shape index: {}]
  %s13 = inlined_call_operand.vmem [shape: f32[64,64], index: 13, kind: input, shape index: {}]
  %s14 = inlined_call_operand.vmem [shape: f32[1,64], index: 14, kind: input, shape index: {}]
  %s15 = inlined_call_operand.vmem [shape: f32[64,6], index: 15, kind: input, shape index: {}]
  %s16 = inlined_call_operand.vmem [shape: f32[1,6], index: 16, kind: input, shape index: {}]
  %s17 = inlined_call_operand.hbm [shape: f32[2,6], index: 17, kind: output, shape index: {}]
  %s18 = sld [smem:[#allocation0]]
  $region78: #{cnn_forward.1} parent=0
    _
  %s20 = ssub.s32 1, %s18
  %s21 = scalar_select 0, %s20, %s18
  $region1: #{cnn_forward.1} parent=0
    #allocation2 [shape = 'u8[1024]{0}', space=vmem, size = 0x400, scoped, tag = 'output window, operand 0, single buffered']
    #allocation3 [shape = 's32[1]{0}', space=sflag, size = 0x4, scoped, tag = 'scoped memory for cnn_forward.1']
    %22 = vsyncpa [#allocation3], 0
    // Predicated region
    $region2: #{cnn_forward.1} parent=1 // pred_check
      _
    $region3: #{cnn_forward.1} parent=1 // pred_check_branch
      %24 = sbr.rel (0) target = $region5
    $region4: #{cnn_forward.1} parent=1 // pred_region
      _
    $region5: #{cnn_forward.1} parent=1 // pred_fallthru
      _
    // Predicated region
    $region6: #{cnn_forward.1} parent=1 // pred_check
      _
    $region7: #{cnn_forward.1} parent=1 // pred_check_branch
      %26 = sbr.rel (0) target = $region9
    $region8: #{cnn_forward.1} parent=1 // pred_region
      _
    $region9: #{cnn_forward.1} parent=1 // pred_fallthru
      _
    // Predicated region
    $region10: #{cnn_forward.1} parent=1 // pred_check
      _
    $region11: #{cnn_forward.1} parent=1 // pred_check_branch
      %28 = sbr.rel (0) target = $region13
    $region12: #{cnn_forward.1} parent=1 // pred_region
      _
    $region13: #{cnn_forward.1} parent=1 // pred_fallthru
      _
    // Predicated region
    $region14: #{cnn_forward.1} parent=1 // pred_check
      _
    $region15: #{cnn_forward.1} parent=1 // pred_check_branch
      %30 = sbr.rel (0) target = $region17
    $region16: #{cnn_forward.1} parent=1 // pred_region
      _
    $region17: #{cnn_forward.1} parent=1 // pred_fallthru
      _
    // Predicated region
    $region18: #{cnn_forward.1} parent=1 // pred_check
      _
    $region19: #{cnn_forward.1} parent=1 // pred_check_branch
      %32 = sbr.rel (0) target = $region21
    $region20: #{cnn_forward.1} parent=1 // pred_region
      _
    $region21: #{cnn_forward.1} parent=1 // pred_fallthru
      _
    // Predicated region
    $region22: #{cnn_forward.1} parent=1 // pred_check
      _
    $region23: #{cnn_forward.1} parent=1 // pred_check_branch
      %34 = sbr.rel (0) target = $region25
    $region24: #{cnn_forward.1} parent=1 // pred_region
      _
    $region25: #{cnn_forward.1} parent=1 // pred_fallthru
      _
    // Predicated region
    $region26: #{cnn_forward.1} parent=1 // pred_check
      _
    $region27: #{cnn_forward.1} parent=1 // pred_check_branch
      %36 = sbr.rel (0) target = $region29
    $region28: #{cnn_forward.1} parent=1 // pred_region
      _
    $region29: #{cnn_forward.1} parent=1 // pred_fallthru
      _
    // Predicated region
    $region30: #{cnn_forward.1} parent=1 // pred_check
      _
    $region31: #{cnn_forward.1} parent=1 // pred_check_branch
      %38 = sbr.rel (0) target = $region33
    $region32: #{cnn_forward.1} parent=1 // pred_region
      _
    $region33: #{cnn_forward.1} parent=1 // pred_fallthru
      _
    // Predicated region
    $region34: #{cnn_forward.1} parent=1 // pred_check
      _
    $region35: #{cnn_forward.1} parent=1 // pred_check_branch
      %40 = sbr.rel (0) target = $region37
    $region36: #{cnn_forward.1} parent=1 // pred_region
      _
    $region37: #{cnn_forward.1} parent=1 // pred_fallthru
      _
    // Predicated region
    $region38: #{cnn_forward.1} parent=1 // pred_check
      _
    $region39: #{cnn_forward.1} parent=1 // pred_check_branch
      %42 = sbr.rel (0) target = $region41
    $region40: #{cnn_forward.1} parent=1 // pred_region
      _
    $region41: #{cnn_forward.1} parent=1 // pred_fallthru
      _
    // Predicated region
    $region42: #{cnn_forward.1} parent=1 // pred_check
      _
    $region43: #{cnn_forward.1} parent=1 // pred_check_branch
      %44 = sbr.rel (0) target = $region45
    $region44: #{cnn_forward.1} parent=1 // pred_region
      _
    $region45: #{cnn_forward.1} parent=1 // pred_fallthru
      _
    // Predicated region
    $region46: #{cnn_forward.1} parent=1 // pred_check
      _
    $region47: #{cnn_forward.1} parent=1 // pred_check_branch
      %46 = sbr.rel (0) target = $region49
    $region48: #{cnn_forward.1} parent=1 // pred_region
      _
    $region49: #{cnn_forward.1} parent=1 // pred_fallthru
      _
    // Predicated region
    $region50: #{cnn_forward.1} parent=1 // pred_check
      _
    $region51: #{cnn_forward.1} parent=1 // pred_check_branch
      %48 = sbr.rel (0) target = $region53
    $region52: #{cnn_forward.1} parent=1 // pred_region
      _
    $region53: #{cnn_forward.1} parent=1 // pred_fallthru
      _
    // Predicated region
    $region54: #{cnn_forward.1} parent=1 // pred_check
      _
    $region55: #{cnn_forward.1} parent=1 // pred_check_branch
      %50 = sbr.rel (0) target = $region57
    $region56: #{cnn_forward.1} parent=1 // pred_region
      _
    $region57: #{cnn_forward.1} parent=1 // pred_fallthru
      _
    // Predicated region
    $region58: #{cnn_forward.1} parent=1 // pred_check
      _
    $region59: #{cnn_forward.1} parent=1 // pred_check_branch
      %52 = sbr.rel (0) target = $region61
    $region60: #{cnn_forward.1} parent=1 // pred_region
      _
    $region61: #{cnn_forward.1} parent=1 // pred_fallthru
      _
    // Predicated region
    $region62: #{cnn_forward.1} parent=1 // pred_check
      _
    $region63: #{cnn_forward.1} parent=1 // pred_check_branch
      %54 = sbr.rel (0) target = $region65
    $region64: #{cnn_forward.1} parent=1 // pred_region
      _
    $region65: #{cnn_forward.1} parent=1 // pred_fallthru
      _
    // Predicated region
    $region66: #{cnn_forward.1} parent=1 // pred_check
      _
    $region67: #{cnn_forward.1} parent=1 // pred_check_branch
      %56 = sbr.rel (0) target = $region69
    $region68: #{cnn_forward.1} parent=1 // pred_region
      _
    $region69: #{cnn_forward.1} parent=1 // pred_fallthru
      _
    %v57 = vld [vmem:[%s0] sm:$0xff]
    %v58 = vld [vmem:[%s0 + $0x8] sm:$0xff]
    %v59 = vld [vmem:[%s0 + $0x10] sm:$0xff]
    %v60 = vld [vmem:[%s0 + $0x18] sm:$0xff]
    %v61 = vld [vmem:[%s0 + $0x20] sm:$0xff]
    %v62 = vld [vmem:[%s0 + $0x28] sm:$0xff]
    %v63 = vld [vmem:[%s0 + $0x30] sm:$0xff]
    %v64 = vld [vmem:[%s0 + $0x38] sm:$0xff]
    %v65 = vld [vmem:[%s0 + $0x40] sm:$0xff]
    %v66 = vld [vmem:[%s0 + $0x48] sm:$0xff]
    %v67 = vld [vmem:[%s0 + $0x50] sm:$0xff]
    %v68 = vld [vmem:[%s0 + $0x58] sm:$0xff]
    %v69 = vld [vmem:[%s0 + $0x60] sm:$0xff]
    %v70 = vld [vmem:[%s0 + $0x68] sm:$0xff]
    %v71 = vld [vmem:[%s0 + $0x70] sm:$0xff]
    %v72 = vld [vmem:[%s0 + $0x78] sm:$0xff]
    %v73 = vld [vmem:[%s0 + $0x80] sm:$0xff]
    %v74 = vld [vmem:[%s0 + $0x88] sm:$0xff]
    %v75 = vld [vmem:[%s0 + $0x90] sm:$0xff]
    %v76 = vld [vmem:[%s0 + $0x98] sm:$0xff]
    %v77 = vld [vmem:[%s0 + $0xa0] sm:$0xff]
    %v78 = vld [vmem:[%s0 + $0xa8] sm:$0xff]
    %v79 = vld [vmem:[%s0 + $0xb0] sm:$0xff]
    %v80 = vld [vmem:[%s0 + $0xb8] sm:$0xff]
    %v81 = vld [vmem:[%s0 + $0xc0] sm:$0xff]
    %v82 = vld [vmem:[%s0 + $0xc8] sm:$0xff]
    %v83 = vld [vmem:[%s0 + $0xd0] sm:$0xff]
    %v84 = vld [vmem:[%s0 + $0xd8] sm:$0xff]
    %v85 = vld [vmem:[%s0 + $0xe0] sm:$0xff]
    %v86 = vld [vmem:[%s0 + $0xe8] sm:$0xff]
    %v87 = vld [vmem:[%s0 + $0xf0] sm:$0xff]
    %v88 = vld [vmem:[%s0 + $0xf8] sm:$0xff]
    %v89 = vld [vmem:[%s1] sm:$0xff]
    %v90 = vld [vmem:[%s1 + $0x8] sm:$0xff]
    %v91 = vld [vmem:[%s1 + $0x10] sm:$0xff]
    %v92 = vld [vmem:[%s1 + $0x18] sm:$0xff]
    %v93 = vld [vmem:[%s1 + $0x20] sm:$0xff]
    %v94 = vld [vmem:[%s1 + $0x28] sm:$0xff]
    %v95 = vld [vmem:[%s1 + $0x30] sm:$0xff]
    %v96 = vld [vmem:[%s1 + $0x38] sm:$0xff]
    %v97 = vld [vmem:[%s1 + $0x40] sm:$0xff]
    %v98 = vld [vmem:[%s1 + $0x48] sm:$0xff]
    %v99 = vld [vmem:[%s1 + $0x50] sm:$0xff]
    %v100 = vld [vmem:[%s1 + $0x58] sm:$0xff]
    %v101 = vld [vmem:[%s1 + $0x60] sm:$0xff]
    %v102 = vld [vmem:[%s1 + $0x68] sm:$0xff]
    %v103 = vld [vmem:[%s1 + $0x70] sm:$0xff]
    %v104 = vld [vmem:[%s1 + $0x78] sm:$0xff]
    %v105 = vld [vmem:[%s1 + $0x80] sm:$0xff]
    %v106 = vld [vmem:[%s1 + $0x88] sm:$0xff]
    %v107 = vld [vmem:[%s1 + $0x90] sm:$0xff]
    %v108 = vld [vmem:[%s1 + $0x98] sm:$0xff]
    %v109 = vld [vmem:[%s1 + $0xa0] sm:$0xff]
    %v110 = vld [vmem:[%s1 + $0xa8] sm:$0xff]
    %v111 = vld [vmem:[%s1 + $0xb0] sm:$0xff]
    %v112 = vld [vmem:[%s1 + $0xb8] sm:$0xff]
    %v113 = vld [vmem:[%s1 + $0xc0] sm:$0xff]
    %v114 = vld [vmem:[%s1 + $0xc8] sm:$0xff]
    %v115 = vld [vmem:[%s1 + $0xd0] sm:$0xff]
    %v116 = vld [vmem:[%s1 + $0xd8] sm:$0xff]
    %v117 = vld [vmem:[%s1 + $0xe0] sm:$0xff]
    %v118 = vld [vmem:[%s1 + $0xe8] sm:$0xff]
    %v119 = vld [vmem:[%s1 + $0xf0] sm:$0xff]
    %v120 = vld [vmem:[%s1 + $0xf8] sm:$0xff]
    %v121 = vld [vmem:[%s2] sm:$0x1]
    %v123 = vlaneseq
    %v124 = vshrl.u32 %v123, 7
    %v125 = vsub.s32 0, %v124
    %v126 = vrot.slane %v121, %v125
    %128 = vmatprep.subr.mxu0 0.0
    %129 = vmatpush1.msra.mxu0 %v89
    %130 = vmatprep.subr.mxu0 0.0
    %131 = vmatpush1.msra.mxu0 %v90
    %132 = vmatprep.subr.mxu0 0.0
    %133 = vmatpush1.msra.mxu0 %v91
    %134 = vmatprep.subr.mxu0 0.0
    %135 = vmatpush1.msra.mxu0 %v92
    %136 = vmatprep.subr.mxu0 0.0
    %137 = vmatpush1.msra.mxu0 %v93
    %138 = vmatprep.subr.mxu0 0.0
    %139 = vmatpush1.msra.mxu0 %v94
    %140 = vmatprep.subr.mxu0 0.0
    %141 = vmatpush1.msra.mxu0 %v95
    %142 = vmatprep.subr.mxu0 0.0
    %143 = vmatpush1.msra.mxu0 %v96
    %144 = vmatprep.subr.mxu0 0.0
    %145 = vmatpush1.msra.mxu0 %v97
    %146 = vmatprep.subr.mxu0 0.0
    %147 = vmatpush1.msra.mxu0 %v98
    %148 = vmatprep.subr.mxu0 0.0
    %149 = vmatpush1.msra.mxu0 %v99
    %150 = vmatprep.subr.mxu0 0.0
    %151 = vmatpush1.msra.mxu0 %v100
    %152 = vmatprep.subr.mxu0 0.0
    %153 = vmatpush1.msra.mxu0 %v101
    %154 = vmatprep.subr.mxu0 0.0
    %155 = vmatpush1.msra.mxu0 %v102
    %156 = vmatprep.subr.mxu0 0.0
    %157 = vmatpush1.msra.mxu0 %v103
    %158 = vmatprep.subr.mxu0 0.0
    %159 = vmatpush1.msra.mxu0 %v104
    %160 = vmatprep.subr.mxu0 0.0
    %161 = vmatpush1.msra.mxu0 %v105
    %162 = vmatprep.subr.mxu0 0.0
    %163 = vmatpush1.msra.mxu0 %v106
    %164 = vmatprep.subr.mxu0 0.0
    %165 = vmatpush1.msra.mxu0 %v107
    %166 = vmatprep.subr.mxu0 0.0
    %167 = vmatpush1.msra.mxu0 %v108
    %168 = vmatprep.subr.mxu0 0.0
    %169 = vmatpush1.msra.mxu0 %v109
    %170 = vmatprep.subr.mxu0 0.0
    %171 = vmatpush1.msra.mxu0 %v110
    %172 = vmatprep.subr.mxu0 0.0
    %173 = vmatpush1.msra.mxu0 %v111
    %174 = vmatprep.subr.mxu0 0.0
    %175 = vmatpush1.msra.mxu0 %v112
    %176 = vmatprep.subr.mxu0 0.0
    %177 = vmatpush1.msra.mxu0 %v113
    %178 = vmatprep.subr.mxu0 0.0
    %179 = vmatpush1.msra.mxu0 %v114
    %180 = vmatprep.subr.mxu0 0.0
    %181 = vmatpush1.msra.mxu0 %v115
    %182 = vmatprep.subr.mxu0 0.0
    %183 = vmatpush1.msra.mxu0 %v116
    %184 = vmatprep.subr.mxu0 0.0
    %185 = vmatpush1.msra.mxu0 %v117
    %186 = vmatprep.subr.mxu0 0.0
    %187 = vmatpush1.msra.mxu0 %v118
    %188 = vmatprep.subr.mxu0 0.0
    %189 = vmatpush1.msra.mxu0 %v119
    %190 = vmatprep.subr.mxu0 0.0
    %191 = vmatpush1.msra.mxu0 %v120
    %192 = vmatprep.mubr.f32.mxu0 %v58
    %193 = vmatmul.mubr.f32.gmra.mrb[0].mxu0 %v57
    %v194 = vpop.f32.mrb[0].mxu0
    %v195 = vadd.f32 %v126, %v194
    %v196 = vpop.f32.mrb[0].mxu0
    %197 = vmatprep.mubr.f32.mxu0 %v60
    %198 = vmatmul.mubr.f32.gmra.mrb[0].mxu0 %v59
    %v199 = vpop.f32.mrb[0].mxu0
    %v200 = vadd.f32 %v126, %v199
    %v201 = vpop.f32.mrb[0].mxu0
    %202 = vmatprep.mubr.f32.mxu0 %v62
    %203 = vmatmul.mubr.f32.gmra.mrb[0].mxu0 %v61
    %v204 = vpop.f32.mrb[0].mxu0
    %v205 = vadd.f32 %v126, %v204
    %v206 = vpop.f32.mrb[0].mxu0
    %207 = vmatprep.mubr.f32.mxu0 %v64
    %208 = vmatmul.mubr.f32.gmra.mrb[0].mxu0 %v63
    %v209 = vpop.f32.mrb[0].mxu0
    %v210 = vadd.f32 %v126, %v209
    %v211 = vpop.f32.mrb[0].mxu0
    %212 = vmatprep.mubr.f32.mxu0 %v66
    %213 = vmatmul.mubr.f32.gmra.mrb[0].mxu0 %v65
    %v214 = vpop.f32.mrb[0].mxu0
    %v215 = vadd.f32 %v126, %v214
    %v216 = vpop.f32.mrb[0].mxu0
    %217 = vmatprep.mubr.f32.mxu0 %v68
    %218 = vmatmul.mubr.f32.gmra.mrb[0].mxu0 %v67
    %v219 = vpop.f32.mrb[0].mxu0
    %v220 = vadd.f32 %v126, %v219
    %v221 = vpop.f32.mrb[0].mxu0
    %222 = vmatprep.mubr.f32.mxu0 %v70
    %223 = vmatmul.mubr.f32.gmra.mrb[0].mxu0 %v69
    %v224 = vpop.f32.mrb[0].mxu0
    %v225 = vadd.f32 %v126, %v224
    %v226 = vpop.f32.mrb[0].mxu0
    %227 = vmatprep.mubr.f32.mxu0 %v72
    %228 = vmatmul.mubr.f32.gmra.mrb[0].mxu0 %v71
    %v229 = vpop.f32.mrb[0].mxu0
    %v230 = vadd.f32 %v126, %v229
    %v231 = vpop.f32.mrb[0].mxu0
    %232 = vmatprep.mubr.f32.mxu0 %v74
    %233 = vmatmul.mubr.f32.gmra.mrb[0].mxu0 %v73
    %v234 = vpop.f32.mrb[0].mxu0
    %v235 = vadd.f32 %v126, %v234
    %v236 = vpop.f32.mrb[0].mxu0
    %237 = vmatprep.mubr.f32.mxu0 %v76
    %238 = vmatmul.mubr.f32.gmra.mrb[0].mxu0 %v75
    %v239 = vpop.f32.mrb[0].mxu0
    %v240 = vadd.f32 %v126, %v239
    %v241 = vpop.f32.mrb[0].mxu0
    %242 = vmatprep.mubr.f32.mxu0 %v78
    %243 = vmatmul.mubr.f32.gmra.mrb[0].mxu0 %v77
    %v244 = vpop.f32.mrb[0].mxu0
    %v245 = vadd.f32 %v126, %v244
    %v246 = vpop.f32.mrb[0].mxu0
    %247 = vmatprep.mubr.f32.mxu0 %v80
    %248 = vmatmul.mubr.f32.gmra.mrb[0].mxu0 %v79
    %v249 = vpop.f32.mrb[0].mxu0
    %v250 = vadd.f32 %v126, %v249
    %v251 = vpop.f32.mrb[0].mxu0
    %252 = vmatprep.mubr.f32.mxu0 %v82
    %253 = vmatmul.mubr.f32.gmra.mrb[0].mxu0 %v81
    %v254 = vpop.f32.mrb[0].mxu0
    %v255 = vadd.f32 %v126, %v254
    %v256 = vpop.f32.mrb[0].mxu0
    %257 = vmatprep.mubr.f32.mxu0 %v84
    %258 = vmatmul.mubr.f32.gmra.mrb[0].mxu0 %v83
    %v259 = vpop.f32.mrb[0].mxu0
    %v260 = vadd.f32 %v126, %v259
    %v261 = vpop.f32.mrb[0].mxu0
    %262 = vmatprep.mubr.f32.mxu0 %v86
    %263 = vmatmul.mubr.f32.gmra.mrb[0].mxu0 %v85
    %v264 = vpop.f32.mrb[0].mxu0
    %v265 = vadd.f32 %v126, %v264
    %v266 = vpop.f32.mrb[0].mxu0
    %267 = vmatprep.mubr.f32.mxu0 %v88
    %268 = vmatmul.mubr.f32.gmra.mrb[0].mxu0 %v87
    %v269 = vpop.f32.mrb[0].mxu0
    %v270 = vadd.f32 %v126, %v269
    %v271 = vpop.f32.mrb[0].mxu0
    %272 = vdwg.mxu0
    %v273 = vmax.f32 %v195, 0.0
    %v274 = vmax.f32 %v200, 0.0
    %v275 = vmax.f32 %v205, 0.0
    %v276 = vmax.f32 %v210, 0.0
    %v277 = vmax.f32 %v215, 0.0
    %v278 = vmax.f32 %v220, 0.0
    %v279 = vmax.f32 %v225, 0.0
    %v280 = vmax.f32 %v230, 0.0
    %v281 = vmax.f32 %v235, 0.0
    %v282 = vmax.f32 %v240, 0.0
    %v283 = vmax.f32 %v245, 0.0
    %v284 = vmax.f32 %v250, 0.0
    %v285 = vmax.f32 %v255, 0.0
    %v286 = vmax.f32 %v260, 0.0
    %v287 = vmax.f32 %v265, 0.0
    %v288 = vmax.f32 %v270, 0.0
    %v289 = vld [vmem:[%s3] sm:$0xff]
    %v290 = vld [vmem:[%s3 + $0x8] sm:$0xff]
    %v291 = vld [vmem:[%s3 + $0x10] sm:$0x3]
    %292 = vmatprep.subr.mxu0 0.0
    %293 = vmatpush1.msra.mxu0 %v273
    %294 = vmatprep.subr.mxu0 0.0
    %295 = vmatpush1.msra.mxu0 %v274
    %296 = vmatprep.subr.mxu0 0.0
    %297 = vmatpush1.msra.mxu0 %v275
    %298 = vmatprep.subr.mxu0 0.0
    %299 = vmatpush1.msra.mxu0 %v276
    %300 = vmatprep.subr.mxu0 0.0
    %301 = vmatpush1.msra.mxu0 %v277
    %302 = vmatprep.subr.mxu0 0.0
    %303 = vmatpush1.msra.mxu0 %v278
    %304 = vmatprep.subr.mxu0 0.0
    %305 = vmatpush1.msra.mxu0 %v279
    %306 = vmatprep.subr.mxu0 0.0
    %307 = vmatpush1.msra.mxu0 %v280
    %308 = vmatprep.subr.mxu0 0.0
    %309 = vmatpush1.msra.mxu0 %v281
    %310 = vmatprep.subr.mxu0 0.0
    %311 = vmatpush1.msra.mxu0 %v282
    %312 = vmatprep.subr.mxu0 0.0
    %313 = vmatpush1.msra.mxu0 %v283
    %314 = vmatprep.subr.mxu0 0.0
    %315 = vmatpush1.msra.mxu0 %v284
    %316 = vmatprep.subr.mxu0 0.0
    %317 = vmatpush1.msra.mxu0 %v285
    %318 = vmatprep.subr.mxu0 0.0
    %319 = vmatpush1.msra.mxu0 %v286
    %320 = vmatprep.subr.mxu0 0.0
    %321 = vmatpush1.msra.mxu0 %v287
    %322 = vmatprep.subr.mxu0 0.0
    %323 = vmatpush1.msra.mxu0 %v288
    %324 = vmatprep.subr.mxu0 0.0
    %325 = vmatpush1.msra.mxu0 0.0
    %326 = vmatprep.subr.mxu0 0.0
    %327 = vmatpush1.msra.mxu0 0.0
    %328 = vmatprep.subr.mxu0 0.0
    %329 = vmatpush1.msra.mxu0 0.0
    %330 = vmatprep.subr.mxu0 0.0
    %331 = vmatpush1.msra.mxu0 0.0
    %332 = vmatprep.subr.mxu0 0.0
    %333 = vmatpush1.msra.mxu0 0.0
    %334 = vmatprep.subr.mxu0 0.0
    %335 = vmatpush1.msra.mxu0 0.0
    %336 = vmatprep.subr.mxu0 0.0
    %337 = vmatpush1.msra.mxu0 0.0
    %338 = vmatprep.subr.mxu0 0.0
    %339 = vmatpush1.msra.mxu0 0.0
    %340 = vmatprep.subr.mxu0 0.0
    %341 = vmatpush1.msra.mxu0 0.0
    %342 = vmatprep.subr.mxu0 0.0
    %343 = vmatpush1.msra.mxu0 0.0
    %344 = vmatprep.subr.mxu0 0.0
    %345 = vmatpush1.msra.mxu0 0.0
    %346 = vmatprep.subr.mxu0 0.0
    %347 = vmatpush1.msra.mxu0 0.0
    %348 = vmatprep.subr.mxu0 0.0
    %349 = vmatpush1.msra.mxu0 0.0
    %350 = vmatprep.subr.mxu0 0.0
    %351 = vmatpush1.msra.mxu0 0.0
    %352 = vmatprep.subr.mxu0 0.0
    %353 = vmatpush1.msra.mxu0 0.0
    %354 = vmatprep.subr.mxu0 0.0
    %355 = vmatpush1.msra.mxu0 0.0
    %356 = vmatprep.mubr.f32.mxu0 0.0
    %357 = vmatmul.mubr.f32.gmra.mrb[0].mxu0 %v289
    %v358 = vpop.f32.mrb[0].mxu0
    %v359 = vadd.f32 0.0, %v358
    %v360 = vpop.f32.mrb[0].mxu0
    %361 = vmatprep.mubr.f32.mxu0 0.0
    %362 = vmatmul.mubr.f32.gmra.mrb[0].mxu0 %v290
    %v363 = vpop.f32.mrb[0].mxu0
    %v364 = vadd.f32 0.0, %v363
    %v365 = vpop.f32.mrb[0].mxu0
    %366 = vmatprep.mubr.f32.mxu0 0.0
    %367 = vmatmul.mubr.f32.gmra.mrb[0].mxu0 %v291
    %v368 = vpop.f32.mrb[0].mxu0
    %v369 = vadd.f32 0.0, %v368
    %v370 = vpop.f32.mrb[0].mxu0
    %371 = vdwg.mxu0
    %v372 = vld [vmem:[%s4] sm:$0xff]
    %v373 = vld [vmem:[%s4 + $0x8] sm:$0xff]
    %v374 = vld [vmem:[%s4 + $0x10] sm:$0xff]
    %v375 = vld [vmem:[%s4 + $0x18] sm:$0xff]
    %s376 = scalar_lea.vmem %s3, 24
    %v377 = vld [vmem:[%s376] sm:$0xff]
    %v378 = vld [vmem:[%s376 + $0x8] sm:$0xff]
    %v379 = vld [vmem:[%s376 + $0x10] sm:$0x3]
    %380 = vmatprep.subr.mxu0 0.0
    %381 = vmatpush1.msra.mxu0 %v273
    %382 = vmatprep.subr.mxu0 0.0
    %383 = vmatpush1.msra.mxu0 %v274
    %384 = vmatprep.subr.mxu0 0.0
    %385 = vmatpush1.msra.mxu0 %v275
    %386 = vmatprep.subr.mxu0 0.0
    %387 = vmatpush1.msra.mxu0 %v276
    %388 = vmatprep.subr.mxu0 0.0
    %389 = vmatpush1.msra.mxu0 %v277
    %390 = vmatprep.subr.mxu0 0.0
    %391 = vmatpush1.msra.mxu0 %v278
    %392 = vmatprep.subr.mxu0 0.0
    %393 = vmatpush1.msra.mxu0 %v279
    %394 = vmatprep.subr.mxu0 0.0
    %395 = vmatpush1.msra.mxu0 %v280
    %396 = vmatprep.subr.mxu0 0.0
    %397 = vmatpush1.msra.mxu0 %v281
    %398 = vmatprep.subr.mxu0 0.0
    %399 = vmatpush1.msra.mxu0 %v282
    %400 = vmatprep.subr.mxu0 0.0
    %401 = vmatpush1.msra.mxu0 %v283
    %402 = vmatprep.subr.mxu0 0.0
    %403 = vmatpush1.msra.mxu0 %v284
    %404 = vmatprep.subr.mxu0 0.0
    %405 = vmatpush1.msra.mxu0 %v285
    %406 = vmatprep.subr.mxu0 0.0
    %407 = vmatpush1.msra.mxu0 %v286
    %408 = vmatprep.subr.mxu0 0.0
    %409 = vmatpush1.msra.mxu0 %v287
    %410 = vmatprep.subr.mxu0 0.0
    %411 = vmatpush1.msra.mxu0 %v288
    %412 = vmatprep.subr.mxu0 0.0
    %413 = vmatpush1.msra.mxu0 0.0
    %414 = vmatprep.subr.mxu0 0.0
    %415 = vmatpush1.msra.mxu0 0.0
    %416 = vmatprep.subr.mxu0 0.0
    %417 = vmatpush1.msra.mxu0 0.0
    %418 = vmatprep.subr.mxu0 0.0
    %419 = vmatpush1.msra.mxu0 0.0
    %420 = vmatprep.subr.mxu0 0.0
    %421 = vmatpush1.msra.mxu0 0.0
    %422 = vmatprep.subr.mxu0 0.0
    %423 = vmatpush1.msra.mxu0 0.0
    %424 = vmatprep.subr.mxu0 0.0
    %425 = vmatpush1.msra.mxu0 0.0
    %426 = vmatprep.subr.mxu0 0.0
    %427 = vmatpush1.msra.mxu0 0.0
    %428 = vmatprep.subr.mxu0 0.0
    %429 = vmatpush1.msra.mxu0 0.0
    %430 = vmatprep.subr.mxu0 0.0
    %431 = vmatpush1.msra.mxu0 0.0
    %432 = vmatprep.subr.mxu0 0.0
    %433 = vmatpush1.msra.mxu0 0.0
    %434 = vmatprep.subr.mxu0 0.0
    %435 = vmatpush1.msra.mxu0 0.0
    %436 = vmatprep.subr.mxu0 0.0
    %437 = vmatpush1.msra.mxu0 0.0
    %438 = vmatprep.subr.mxu0 0.0
    %439 = vmatpush1.msra.mxu0 0.0
    %440 = vmatprep.subr.mxu0 0.0
    %441 = vmatpush1.msra.mxu0 0.0
    %442 = vmatprep.subr.mxu0 0.0
    %443 = vmatpush1.msra.mxu0 0.0
    %444 = vmatprep.mubr.f32.mxu0 0.0
    %445 = vmatmul.mubr.f32.gmra.mrb[0].mxu0 %v377
    %v446 = vpop.f32.mrb[0].mxu0
    %v447 = vadd.f32 0.0, %v446
    %v448 = vpop.f32.mrb[0].mxu0
    %449 = vmatprep.mubr.f32.mxu0 0.0
    %450 = vmatmul.mubr.f32.gmra.mrb[0].mxu0 %v378
    %v451 = vpop.f32.mrb[0].mxu0
    %v452 = vadd.f32 0.0, %v451
    %v453 = vpop.f32.mrb[0].mxu0
    %454 = vmatprep.mubr.f32.mxu0 0.0
    %455 = vmatmul.mubr.f32.gmra.mrb[0].mxu0 %v379
    %v456 = vpop.f32.mrb[0].mxu0
    %v457 = vadd.f32 0.0, %v456
    %v458 = vpop.f32.mrb[0].mxu0
    %459 = vdwg.mxu0
    %s460 = scalar_lea.vmem %s4, 32
    %v461 = vld [vmem:[%s460] sm:$0xff]
    %v462 = vld [vmem:[%s460 + $0x8] sm:$0xff]
    %v463 = vld [vmem:[%s460 + $0x10] sm:$0xff]
    %v464 = vld [vmem:[%s460 + $0x18] sm:$0xff]
    %vm465 = vcmask 261120
    %v467 = vsel %vm465, %v447, 0
    %v470 = vsel %vm465, %v452, 0
    %v473 = vsel %vm465, %v457, 0
    %475 = vmatprep.subr.mxu0 0.0
    %476 = vmatpush1.msra.mxu0 %v461
    %477 = vmatprep.subr.mxu0 0.0
    %478 = vmatpush1.msra.mxu0 %v462
    %479 = vmatprep.subr.mxu0 0.0
    %480 = vmatpush1.msra.mxu0 %v463
    %481 = vmatprep.subr.mxu0 0.0
    %482 = vmatpush1.msra.mxu0 %v464
    %483 = vmatprep.subr.mxu0 0.0
    %484 = vmatpush1.msra.mxu0 0.0
    %485 = vmatprep.subr.mxu0 0.0
    %486 = vmatpush1.msra.mxu0 0.0
    %487 = vmatprep.subr.mxu0 0.0
    %488 = vmatpush1.msra.mxu0 0.0
    %489 = vmatprep.subr.mxu0 0.0
    %490 = vmatpush1.msra.mxu0 0.0
    %491 = vmatprep.subr.mxu0 0.0
    %492 = vmatpush1.msra.mxu0 0.0
    %493 = vmatprep.subr.mxu0 0.0
    %494 = vmatpush1.msra.mxu0 0.0
    %495 = vmatprep.subr.mxu0 0.0
    %496 = vmatpush1.msra.mxu0 0.0
    %497 = vmatprep.subr.mxu0 0.0
    %498 = vmatpush1.msra.mxu0 0.0
    %499 = vmatprep.subr.mxu0 0.0
    %500 = vmatpush1.msra.mxu0 0.0
    %501 = vmatprep.subr.mxu0 0.0
    %502 = vmatpush1.msra.mxu0 0.0
    %503 = vmatprep.subr.mxu0 0.0
    %504 = vmatpush1.msra.mxu0 0.0
    %505 = vmatprep.subr.mxu0 0.0
    %506 = vmatpush1.msra.mxu0 0.0
    %507 = vmatprep.subr.mxu0 0.0
    %508 = vmatpush1.msra.mxu0 0.0
    %509 = vmatprep.subr.mxu0 0.0
    %510 = vmatpush1.msra.mxu0 0.0
    %511 = vmatprep.subr.mxu0 0.0
    %512 = vmatpush1.msra.mxu0 0.0
    %513 = vmatprep.subr.mxu0 0.0
    %514 = vmatpush1.msra.mxu0 0.0
    %515 = vmatprep.subr.mxu0 0.0
    %516 = vmatpush1.msra.mxu0 0.0
    %517 = vmatprep.subr.mxu0 0.0
    %518 = vmatpush1.msra.mxu0 0.0
    %519 = vmatprep.subr.mxu0 0.0
    %520 = vmatpush1.msra.mxu0 0.0
    %521 = vmatprep.subr.mxu0 0.0
    %522 = vmatpush1.msra.mxu0 0.0
    %523 = vmatprep.subr.mxu0 0.0
    %524 = vmatpush1.msra.mxu0 0.0
    %525 = vmatprep.subr.mxu0 0.0
    %526 = vmatpush1.msra.mxu0 0.0
    %527 = vmatprep.subr.mxu0 0.0
    %528 = vmatpush1.msra.mxu0 0.0
    %529 = vmatprep.subr.mxu0 0.0
    %530 = vmatpush1.msra.mxu0 0.0
    %531 = vmatprep.subr.mxu0 0.0
    %532 = vmatpush1.msra.mxu0 0.0
    %533 = vmatprep.subr.mxu0 0.0
    %534 = vmatpush1.msra.mxu0 0.0
    %535 = vmatprep.subr.mxu0 0.0
    %536 = vmatpush1.msra.mxu0 0.0
    %537 = vmatprep.subr.mxu0 0.0
    %538 = vmatpush1.msra.mxu0 0.0
    %539 = vmatprep.mubr.f32.mxu0 0.0
    %540 = vmatmul.mubr.f32.gmra.mrb[0].mxu0 %v467
    %v541 = vpop.f32.mrb[0].mxu0
    %v542 = vadd.f32 0.0, %v541
    %v543 = vpop.f32.mrb[0].mxu0
    %544 = vmatprep.mubr.f32.mxu0 0.0
    %545 = vmatmul.mubr.f32.gmra.mrb[0].mxu0 %v470
    %v546 = vpop.f32.mrb[0].mxu0
    %v547 = vadd.f32 0.0, %v546
    %v548 = vpop.f32.mrb[0].mxu0
    %549 = vmatprep.mubr.f32.mxu0 0.0
    %550 = vmatmul.mubr.f32.gmra.mrb[0].mxu0 %v473
    %v551 = vpop.f32.mrb[0].mxu0
    %v552 = vadd.f32 0.0, %v551
    %v553 = vpop.f32.mrb[0].mxu0
    %554 = vdwg.mxu0
    %v556 = vsel %vm465, %v359, 0
    %v559 = vsel %vm465, %v364, 0
    %v562 = vsel %vm465, %v369, 0
    %564 = vmatprep.subr.mxu0 0.0
    %565 = vmatpush1.msra.mxu0 %v372
    %566 = vmatprep.subr.mxu0 0.0
    %567 = vmatpush1.msra.mxu0 %v373
    %568 = vmatprep.subr.mxu0 0.0
    %569 = vmatpush1.msra.mxu0 %v374
    %570 = vmatprep.subr.mxu0 0.0
    %571 = vmatpush1.msra.mxu0 %v375
    %572 = vmatprep.subr.mxu0 0.0
    %573 = vmatpush1.msra.mxu0 0.0
    %574 = vmatprep.subr.mxu0 0.0
    %575 = vmatpush1.msra.mxu0 0.0
    %576 = vmatprep.subr.mxu0 0.0
    %577 = vmatpush1.msra.mxu0 0.0
    %578 = vmatprep.subr.mxu0 0.0
    %579 = vmatpush1.msra.mxu0 0.0
    %580 = vmatprep.subr.mxu0 0.0
    %581 = vmatpush1.msra.mxu0 0.0
    %582 = vmatprep.subr.mxu0 0.0
    %583 = vmatpush1.msra.mxu0 0.0
    %584 = vmatprep.subr.mxu0 0.0
    %585 = vmatpush1.msra.mxu0 0.0
    %586 = vmatprep.subr.mxu0 0.0
    %587 = vmatpush1.msra.mxu0 0.0
    %588 = vmatprep.subr.mxu0 0.0
    %589 = vmatpush1.msra.mxu0 0.0
    %590 = vmatprep.subr.mxu0 0.0
    %591 = vmatpush1.msra.mxu0 0.0
    %592 = vmatprep.subr.mxu0 0.0
    %593 = vmatpush1.msra.mxu0 0.0
    %594 = vmatprep.subr.mxu0 0.0
    %595 = vmatpush1.msra.mxu0 0.0
    %596 = vmatprep.subr.mxu0 0.0
    %597 = vmatpush1.msra.mxu0 0.0
    %598 = vmatprep.subr.mxu0 0.0
    %599 = vmatpush1.msra.mxu0 0.0
    %600 = vmatprep.subr.mxu0 0.0
    %601 = vmatpush1.msra.mxu0 0.0
    %602 = vmatprep.subr.mxu0 0.0
    %603 = vmatpush1.msra.mxu0 0.0
    %604 = vmatprep.subr.mxu0 0.0
    %605 = vmatpush1.msra.mxu0 0.0
    %606 = vmatprep.subr.mxu0 0.0
    %607 = vmatpush1.msra.mxu0 0.0
    %608 = vmatprep.subr.mxu0 0.0
    %609 = vmatpush1.msra.mxu0 0.0
    %610 = vmatprep.subr.mxu0 0.0
    %611 = vmatpush1.msra.mxu0 0.0
    %612 = vmatprep.subr.mxu0 0.0
    %613 = vmatpush1.msra.mxu0 0.0
    %614 = vmatprep.subr.mxu0 0.0
    %615 = vmatpush1.msra.mxu0 0.0
    %616 = vmatprep.subr.mxu0 0.0
    %617 = vmatpush1.msra.mxu0 0.0
    %618 = vmatprep.subr.mxu0 0.0
    %619 = vmatpush1.msra.mxu0 0.0
    %620 = vmatprep.subr.mxu0 0.0
    %621 = vmatpush1.msra.mxu0 0.0
    %622 = vmatprep.subr.mxu0 0.0
    %623 = vmatpush1.msra.mxu0 0.0
    %624 = vmatprep.subr.mxu0 0.0
    %625 = vmatpush1.msra.mxu0 0.0
    %626 = vmatprep.subr.mxu0 0.0
    %627 = vmatpush1.msra.mxu0 0.0
    %628 = vmatprep.mubr.f32.mxu0 0.0
    %629 = vmatmul.mubr.f32.gmra.mrb[0].mxu0 %v556
    %v630 = vpop.f32.mrb[0].mxu0
    %v631 = vadd.f32 %v542, %v630
    %v632 = vpop.f32.mrb[0].mxu0
    %633 = vmatprep.mubr.f32.mxu0 0.0
    %634 = vmatmul.mubr.f32.gmra.mrb[0].mxu0 %v559
    %v635 = vpop.f32.mrb[0].mxu0
    %v636 = vadd.f32 %v547, %v635
    %v637 = vpop.f32.mrb[0].mxu0
    %638 = vmatprep.mubr.f32.mxu0 0.0
    %639 = vmatmul.mubr.f32.gmra.mrb[0].mxu0 %v562
    %v640 = vpop.f32.mrb[0].mxu0
    %v641 = vadd.f32 %v552, %v640
    %v642 = vpop.f32.mrb[0].mxu0
    %643 = vdwg.mxu0
    %s644 = scalar_lea.vmem %s3, 48
    %v645 = vld [vmem:[%s644] sm:$0xff]
    %v646 = vld [vmem:[%s644 + $0x8] sm:$0xff]
    %v647 = vld [vmem:[%s644 + $0x10] sm:$0x3]
    %648 = vmatprep.subr.mxu0 0.0
    %649 = vmatpush1.msra.mxu0 %v273
    %650 = vmatprep.subr.mxu0 0.0
    %651 = vmatpush1.msra.mxu0 %v274
    %652 = vmatprep.subr.mxu0 0.0
    %653 = vmatpush1.msra.mxu0 %v275
    %654 = vmatprep.subr.mxu0 0.0
    %655 = vmatpush1.msra.mxu0 %v276
    %656 = vmatprep.subr.mxu0 0.0
    %657 = vmatpush1.msra.mxu0 %v277
    %658 = vmatprep.subr.mxu0 0.0
    %659 = vmatpush1.msra.mxu0 %v278
    %660 = vmatprep.subr.mxu0 0.0
    %661 = vmatpush1.msra.mxu0 %v279
    %662 = vmatprep.subr.mxu0 0.0
    %663 = vmatpush1.msra.mxu0 %v280
    %664 = vmatprep.subr.mxu0 0.0
    %665 = vmatpush1.msra.mxu0 %v281
    %666 = vmatprep.subr.mxu0 0.0
    %667 = vmatpush1.msra.mxu0 %v282
    %668 = vmatprep.subr.mxu0 0.0
    %669 = vmatpush1.msra.mxu0 %v283
    %670 = vmatprep.subr.mxu0 0.0
    %671 = vmatpush1.msra.mxu0 %v284
    %672 = vmatprep.subr.mxu0 0.0
    %673 = vmatpush1.msra.mxu0 %v285
    %674 = vmatprep.subr.mxu0 0.0
    %675 = vmatpush1.msra.mxu0 %v286
    %676 = vmatprep.subr.mxu0 0.0
    %677 = vmatpush1.msra.mxu0 %v287
    %678 = vmatprep.subr.mxu0 0.0
    %679 = vmatpush1.msra.mxu0 %v288
    %680 = vmatprep.subr.mxu0 0.0
    %681 = vmatpush1.msra.mxu0 0.0
    %682 = vmatprep.subr.mxu0 0.0
    %683 = vmatpush1.msra.mxu0 0.0
    %684 = vmatprep.subr.mxu0 0.0
    %685 = vmatpush1.msra.mxu0 0.0
    %686 = vmatprep.subr.mxu0 0.0
    %687 = vmatpush1.msra.mxu0 0.0
    %688 = vmatprep.subr.mxu0 0.0
    %689 = vmatpush1.msra.mxu0 0.0
    %690 = vmatprep.subr.mxu0 0.0
    %691 = vmatpush1.msra.mxu0 0.0
    %692 = vmatprep.subr.mxu0 0.0
    %693 = vmatpush1.msra.mxu0 0.0
    %694 = vmatprep.subr.mxu0 0.0
    %695 = vmatpush1.msra.mxu0 0.0
    %696 = vmatprep.subr.mxu0 0.0
    %697 = vmatpush1.msra.mxu0 0.0
    %698 = vmatprep.subr.mxu0 0.0
    %699 = vmatpush1.msra.mxu0 0.0
    %700 = vmatprep.subr.mxu0 0.0
    %701 = vmatpush1.msra.mxu0 0.0
    %702 = vmatprep.subr.mxu0 0.0
    %703 = vmatpush1.msra.mxu0 0.0
    %704 = vmatprep.subr.mxu0 0.0
    %705 = vmatpush1.msra.mxu0 0.0
    %706 = vmatprep.subr.mxu0 0.0
    %707 = vmatpush1.msra.mxu0 0.0
    %708 = vmatprep.subr.mxu0 0.0
    %709 = vmatpush1.msra.mxu0 0.0
    %710 = vmatprep.subr.mxu0 0.0
    %711 = vmatpush1.msra.mxu0 0.0
    %712 = vmatprep.mubr.f32.mxu0 0.0
    %713 = vmatmul.mubr.f32.gmra.mrb[0].mxu0 %v645
    %v714 = vpop.f32.mrb[0].mxu0
    %v715 = vadd.f32 0.0, %v714
    %v716 = vpop.f32.mrb[0].mxu0
    %717 = vmatprep.mubr.f32.mxu0 0.0
    %718 = vmatmul.mubr.f32.gmra.mrb[0].mxu0 %v646
    %v719 = vpop.f32.mrb[0].mxu0
    %v720 = vadd.f32 0.0, %v719
    %v721 = vpop.f32.mrb[0].mxu0
    %722 = vmatprep.mubr.f32.mxu0 0.0
    %723 = vmatmul.mubr.f32.gmra.mrb[0].mxu0 %v647
    %v724 = vpop.f32.mrb[0].mxu0
    %v725 = vadd.f32 0.0, %v724
    %v726 = vpop.f32.mrb[0].mxu0
    %727 = vdwg.mxu0
    %s728 = scalar_lea.vmem %s4, 64
    %v729 = vld [vmem:[%s728] sm:$0xff]
    %v730 = vld [vmem:[%s728 + $0x8] sm:$0xff]
    %v731 = vld [vmem:[%s728 + $0x10] sm:$0xff]
    %v732 = vld [vmem:[%s728 + $0x18] sm:$0xff]
    %v734 = vsel %vm465, %v715, 0
    %v737 = vsel %vm465, %v720, 0
    %v740 = vsel %vm465, %v725, 0
    %742 = vmatprep.subr.mxu0 0.0
    %743 = vmatpush1.msra.mxu0 %v729
    %744 = vmatprep.subr.mxu0 0.0
    %745 = vmatpush1.msra.mxu0 %v730
    %746 = vmatprep.subr.mxu0 0.0
    %747 = vmatpush1.msra.mxu0 %v731
    %748 = vmatprep.subr.mxu0 0.0
    %749 = vmatpush1.msra.mxu0 %v732
    %750 = vmatprep.subr.mxu0 0.0
    %751 = vmatpush1.msra.mxu0 0.0
    %752 = vmatprep.subr.mxu0 0.0
    %753 = vmatpush1.msra.mxu0 0.0
    %754 = vmatprep.subr.mxu0 0.0
    %755 = vmatpush1.msra.mxu0 0.0
    %756 = vmatprep.subr.mxu0 0.0
    %757 = vmatpush1.msra.mxu0 0.0
    %758 = vmatprep.subr.mxu0 0.0
    %759 = vmatpush1.msra.mxu0 0.0
    %760 = vmatprep.subr.mxu0 0.0
    %761 = vmatpush1.msra.mxu0 0.0
    %762 = vmatprep.subr.mxu0 0.0
    %763 = vmatpush1.msra.mxu0 0.0
    %764 = vmatprep.subr.mxu0 0.0
    %765 = vmatpush1.msra.mxu0 0.0
    %766 = vmatprep.subr.mxu0 0.0
    %767 = vmatpush1.msra.mxu0 0.0
    %768 = vmatprep.subr.mxu0 0.0
    %769 = vmatpush1.msra.mxu0 0.0
    %770 = vmatprep.subr.mxu0 0.0
    %771 = vmatpush1.msra.mxu0 0.0
    %772 = vmatprep.subr.mxu0 0.0
    %773 = vmatpush1.msra.mxu0 0.0
    %774 = vmatprep.subr.mxu0 0.0
    %775 = vmatpush1.msra.mxu0 0.0
    %776 = vmatprep.subr.mxu0 0.0
    %777 = vmatpush1.msra.mxu0 0.0
    %778 = vmatprep.subr.mxu0 0.0
    %779 = vmatpush1.msra.mxu0 0.0
    %780 = vmatprep.subr.mxu0 0.0
    %781 = vmatpush1.msra.mxu0 0.0
    %782 = vmatprep.subr.mxu0 0.0
    %783 = vmatpush1.msra.mxu0 0.0
    %784 = vmatprep.subr.mxu0 0.0
    %785 = vmatpush1.msra.mxu0 0.0
    %786 = vmatprep.subr.mxu0 0.0
    %787 = vmatpush1.msra.mxu0 0.0
    %788 = vmatprep.subr.mxu0 0.0
    %789 = vmatpush1.msra.mxu0 0.0
    %790 = vmatprep.subr.mxu0 0.0
    %791 = vmatpush1.msra.mxu0 0.0
    %792 = vmatprep.subr.mxu0 0.0
    %793 = vmatpush1.msra.mxu0 0.0
    %794 = vmatprep.subr.mxu0 0.0
    %795 = vmatpush1.msra.mxu0 0.0
    %796 = vmatprep.subr.mxu0 0.0
    %797 = vmatpush1.msra.mxu0 0.0
    %798 = vmatprep.subr.mxu0 0.0
    %799 = vmatpush1.msra.mxu0 0.0
    %800 = vmatprep.subr.mxu0 0.0
    %801 = vmatpush1.msra.mxu0 0.0
    %802 = vmatprep.subr.mxu0 0.0
    %803 = vmatpush1.msra.mxu0 0.0
    %804 = vmatprep.subr.mxu0 0.0
    %805 = vmatpush1.msra.mxu0 0.0
    %806 = vmatprep.mubr.f32.mxu0 0.0
    %807 = vmatmul.mubr.f32.gmra.mrb[0].mxu0 %v734
    %v808 = vpop.f32.mrb[0].mxu0
    %v809 = vadd.f32 0.0, %v808
    %v810 = vpop.f32.mrb[0].mxu0
    %811 = vmatprep.mubr.f32.mxu0 0.0
    %812 = vmatmul.mubr.f32.gmra.mrb[0].mxu0 %v737
    %v813 = vpop.f32.mrb[0].mxu0
    %v814 = vadd.f32 0.0, %v813
    %v815 = vpop.f32.mrb[0].mxu0
    %816 = vmatprep.mubr.f32.mxu0 0.0
    %817 = vmatmul.mubr.f32.gmra.mrb[0].mxu0 %v740
    %v818 = vpop.f32.mrb[0].mxu0
    %v819 = vadd.f32 0.0, %v818
    %v820 = vpop.f32.mrb[0].mxu0
    %821 = vdwg.mxu0
    %v822 = vadd.f32 %v631, %v809
    %v823 = vadd.f32 %v636, %v814
    %v824 = vadd.f32 %v641, %v819
    %s825 = scalar_lea.vmem %s3, 72
    %v826 = vld [vmem:[%s825] sm:$0xff]
    %v827 = vld [vmem:[%s825 + $0x8] sm:$0xff]
    %v828 = vld [vmem:[%s825 + $0x10] sm:$0x3]
    %829 = vmatprep.subr.mxu0 0.0
    %830 = vmatpush1.msra.mxu0 %v273
    %831 = vmatprep.subr.mxu0 0.0
    %832 = vmatpush1.msra.mxu0 %v274
    %833 = vmatprep.subr.mxu0 0.0
    %834 = vmatpush1.msra.mxu0 %v275
    %835 = vmatprep.subr.mxu0 0.0
    %836 = vmatpush1.msra.mxu0 %v276
    %837 = vmatprep.subr.mxu0 0.0
    %838 = vmatpush1.msra.mxu0 %v277
    %839 = vmatprep.subr.mxu0 0.0
    %840 = vmatpush1.msra.mxu0 %v278
    %841 = vmatprep.subr.mxu0 0.0
    %842 = vmatpush1.msra.mxu0 %v279
    %843 = vmatprep.subr.mxu0 0.0
    %844 = vmatpush1.msra.mxu0 %v280
    %845 = vmatprep.subr.mxu0 0.0
    %846 = vmatpush1.msra.mxu0 %v281
    %847 = vmatprep.subr.mxu0 0.0
    %848 = vmatpush1.msra.mxu0 %v282
    %849 = vmatprep.subr.mxu0 0.0
    %850 = vmatpush1.msra.mxu0 %v283
    %851 = vmatprep.subr.mxu0 0.0
    %852 = vmatpush1.msra.mxu0 %v284
    %853 = vmatprep.subr.mxu0 0.0
    %854 = vmatpush1.msra.mxu0 %v285
    %855 = vmatprep.subr.mxu0 0.0
    %856 = vmatpush1.msra.mxu0 %v286
    %857 = vmatprep.subr.mxu0 0.0
    %858 = vmatpush1.msra.mxu0 %v287
    %859 = vmatprep.subr.mxu0 0.0
    %860 = vmatpush1.msra.mxu0 %v288
    %861 = vmatprep.subr.mxu0 0.0
    %862 = vmatpush1.msra.mxu0 0.0
    %863 = vmatprep.subr.mxu0 0.0
    %864 = vmatpush1.msra.mxu0 0.0
    %865 = vmatprep.subr.mxu0 0.0
    %866 = vmatpush1.msra.mxu0 0.0
    %867 = vmatprep.subr.mxu0 0.0
    %868 = vmatpush1.msra.mxu0 0.0
    %869 = vmatprep.subr.mxu0 0.0
    %870 = vmatpush1.msra.mxu0 0.0
    %871 = vmatprep.subr.mxu0 0.0
    %872 = vmatpush1.msra.mxu0 0.0
    %873 = vmatprep.subr.mxu0 0.0
    %874 = vmatpush1.msra.mxu0 0.0
    %875 = vmatprep.subr.mxu0 0.0
    %876 = vmatpush1.msra.mxu0 0.0
    %877 = vmatprep.subr.mxu0 0.0
    %878 = vmatpush1.msra.mxu0 0.0
    %879 = vmatprep.subr.mxu0 0.0
    %880 = vmatpush1.msra.mxu0 0.0
    %881 = vmatprep.subr.mxu0 0.0
    %882 = vmatpush1.msra.mxu0 0.0
    %883 = vmatprep.subr.mxu0 0.0
    %884 = vmatpush1.msra.mxu0 0.0
    %885 = vmatprep.subr.mxu0 0.0
    %886 = vmatpush1.msra.mxu0 0.0
    %887 = vmatprep.subr.mxu0 0.0
    %888 = vmatpush1.msra.mxu0 0.0
    %889 = vmatprep.subr.mxu0 0.0
    %890 = vmatpush1.msra.mxu0 0.0
    %891 = vmatprep.subr.mxu0 0.0
    %892 = vmatpush1.msra.mxu0 0.0
    %893 = vmatprep.mubr.f32.mxu0 0.0
    %894 = vmatmul.mubr.f32.gmra.mrb[0].mxu0 %v826
    %v895 = vpop.f32.mrb[0].mxu0
    %v896 = vadd.f32 0.0, %v895
    %v897 = vpop.f32.mrb[0].mxu0
    %898 = vmatprep.mubr.f32.mxu0 0.0
    %899 = vmatmul.mubr.f32.gmra.mrb[0].mxu0 %v827
    %v900 = vpop.f32.mrb[0].mxu0
    %v901 = vadd.f32 0.0, %v900
    %v902 = vpop.f32.mrb[0].mxu0
    %903 = vmatprep.mubr.f32.mxu0 0.0
    %904 = vmatmul.mubr.f32.gmra.mrb[0].mxu0 %v828
    %v905 = vpop.f32.mrb[0].mxu0
    %v906 = vadd.f32 0.0, %v905
    %v907 = vpop.f32.mrb[0].mxu0
    %908 = vdwg.mxu0
    %s909 = scalar_lea.vmem %s4, 96
    %v910 = vld [vmem:[%s909] sm:$0xff]
    %v911 = vld [vmem:[%s909 + $0x8] sm:$0xff]
    %v912 = vld [vmem:[%s909 + $0x10] sm:$0xff]
    %v913 = vld [vmem:[%s909 + $0x18] sm:$0xff]
    %v915 = vsel %vm465, %v896, 0
    %v918 = vsel %vm465, %v901, 0
    %v921 = vsel %vm465, %v906, 0
    %923 = vmatprep.subr.mxu0 0.0
    %924 = vmatpush1.msra.mxu0 %v910
    %925 = vmatprep.subr.mxu0 0.0
    %926 = vmatpush1.msra.mxu0 %v911
    %927 = vmatprep.subr.mxu0 0.0
    %928 = vmatpush1.msra.mxu0 %v912
    %929 = vmatprep.subr.mxu0 0.0
    %930 = vmatpush1.msra.mxu0 %v913
    %931 = vmatprep.subr.mxu0 0.0
    %932 = vmatpush1.msra.mxu0 0.0
    %933 = vmatprep.subr.mxu0 0.0
    %934 = vmatpush1.msra.mxu0 0.0
    %935 = vmatprep.subr.mxu0 0.0
    %936 = vmatpush1.msra.mxu0 0.0
    %937 = vmatprep.subr.mxu0 0.0
    %938 = vmatpush1.msra.mxu0 0.0
    %939 = vmatprep.subr.mxu0 0.0
    %940 = vmatpush1.msra.mxu0 0.0
    %941 = vmatprep.subr.mxu0 0.0
    %942 = vmatpush1.msra.mxu0 0.0
    %943 = vmatprep.subr.mxu0 0.0
    %944 = vmatpush1.msra.mxu0 0.0
    %945 = vmatprep.subr.mxu0 0.0
    %946 = vmatpush1.msra.mxu0 0.0
    %947 = vmatprep.subr.mxu0 0.0
    %948 = vmatpush1.msra.mxu0 0.0
    %949 = vmatprep.subr.mxu0 0.0
    %950 = vmatpush1.msra.mxu0 0.0
    %951 = vmatprep.subr.mxu0 0.0
    %952 = vmatpush1.msra.mxu0 0.0
    %953 = vmatprep.subr.mxu0 0.0
    %954 = vmatpush1.msra.mxu0 0.0
    %955 = vmatprep.subr.mxu0 0.0
    %956 = vmatpush1.msra.mxu0 0.0
    %957 = vmatprep.subr.mxu0 0.0
    %958 = vmatpush1.msra.mxu0 0.0
    %959 = vmatprep.subr.mxu0 0.0
    %960 = vmatpush1.msra.mxu0 0.0
    %961 = vmatprep.subr.mxu0 0.0
    %962 = vmatpush1.msra.mxu0 0.0
    %963 = vmatprep.subr.mxu0 0.0
    %964 = vmatpush1.msra.mxu0 0.0
    %965 = vmatprep.subr.mxu0 0.0
    %966 = vmatpush1.msra.mxu0 0.0
    %967 = vmatprep.subr.mxu0 0.0
    %968 = vmatpush1.msra.mxu0 0.0
    %969 = vmatprep.subr.mxu0 0.0
    %970 = vmatpush1.msra.mxu0 0.0
    %971 = vmatprep.subr.mxu0 0.0
    %972 = vmatpush1.msra.mxu0 0.0
    %973 = vmatprep.subr.mxu0 0.0
    %974 = vmatpush1.msra.mxu0 0.0
    %975 = vmatprep.subr.mxu0 0.0
    %976 = vmatpush1.msra.mxu0 0.0
    %977 = vmatprep.subr.mxu0 0.0
    %978 = vmatpush1.msra.mxu0 0.0
    %979 = vmatprep.subr.mxu0 0.0
    %980 = vmatpush1.msra.mxu0 0.0
    %981 = vmatprep.subr.mxu0 0.0
    %982 = vmatpush1.msra.mxu0 0.0
    %983 = vmatprep.subr.mxu0 0.0
    %984 = vmatpush1.msra.mxu0 0.0
    %985 = vmatprep.subr.mxu0 0.0
    %986 = vmatpush1.msra.mxu0 0.0
    %987 = vmatprep.mubr.f32.mxu0 0.0
    %988 = vmatmul.mubr.f32.gmra.mrb[0].mxu0 %v915
    %v989 = vpop.f32.mrb[0].mxu0
    %v990 = vadd.f32 0.0, %v989
    %v991 = vpop.f32.mrb[0].mxu0
    %992 = vmatprep.mubr.f32.mxu0 0.0
    %993 = vmatmul.mubr.f32.gmra.mrb[0].mxu0 %v918
    %v994 = vpop.f32.mrb[0].mxu0
    %v995 = vadd.f32 0.0, %v994
    %v996 = vpop.f32.mrb[0].mxu0
    %997 = vmatprep.mubr.f32.mxu0 0.0
    %998 = vmatmul.mubr.f32.gmra.mrb[0].mxu0 %v921
    %v999 = vpop.f32.mrb[0].mxu0
    %v1000 = vadd.f32 0.0, %v999
    %v1001 = vpop.f32.mrb[0].mxu0
    %1002 = vdwg.mxu0
    %v1003 = vadd.f32 %v822, %v990
    %v1004 = vadd.f32 %v823, %v995
    %v1005 = vadd.f32 %v824, %v1000
    %s1006 = scalar_lea.vmem %s3, 96
    %v1007 = vld [vmem:[%s1006] sm:$0xff]
    %v1008 = vld [vmem:[%s1006 + $0x8] sm:$0xff]
    %v1009 = vld [vmem:[%s1006 + $0x10] sm:$0x3]
    %1010 = vmatprep.subr.mxu0 0.0
    %1011 = vmatpush1.msra.mxu0 %v273
    %1012 = vmatprep.subr.mxu0 0.0
    %1013 = vmatpush1.msra.mxu0 %v274
    %1014 = vmatprep.subr.mxu0 0.0
    %1015 = vmatpush1.msra.mxu0 %v275
    %1016 = vmatprep.subr.mxu0 0.0
    %1017 = vmatpush1.msra.mxu0 %v276
    %1018 = vmatprep.subr.mxu0 0.0
    %1019 = vmatpush1.msra.mxu0 %v277
    %1020 = vmatprep.subr.mxu0 0.0
    %1021 = vmatpush1.msra.mxu0 %v278
    %1022 = vmatprep.subr.mxu0 0.0
    %1023 = vmatpush1.msra.mxu0 %v279
    %1024 = vmatprep.subr.mxu0 0.0
    %1025 = vmatpush1.msra.mxu0 %v280
    %1026 = vmatprep.subr.mxu0 0.0
    %1027 = vmatpush1.msra.mxu0 %v281
    %1028 = vmatprep.subr.mxu0 0.0
    %1029 = vmatpush1.msra.mxu0 %v282
    %1030 = vmatprep.subr.mxu0 0.0
    %1031 = vmatpush1.msra.mxu0 %v283
    %1032 = vmatprep.subr.mxu0 0.0
    %1033 = vmatpush1.msra.mxu0 %v284
    %1034 = vmatprep.subr.mxu0 0.0
    %1035 = vmatpush1.msra.mxu0 %v285
    %1036 = vmatprep.subr.mxu0 0.0
    %1037 = vmatpush1.msra.mxu0 %v286
    %1038 = vmatprep.subr.mxu0 0.0
    %1039 = vmatpush1.msra.mxu0 %v287
    %1040 = vmatprep.subr.mxu0 0.0
    %1041 = vmatpush1.msra.mxu0 %v288
    %1042 = vmatprep.subr.mxu0 0.0
    %1043 = vmatpush1.msra.mxu0 0.0
    %1044 = vmatprep.subr.mxu0 0.0
    %1045 = vmatpush1.msra.mxu0 0.0
    %1046 = vmatprep.subr.mxu0 0.0
    %1047 = vmatpush1.msra.mxu0 0.0
    %1048 = vmatprep.subr.mxu0 0.0
    %1049 = vmatpush1.msra.mxu0 0.0
    %1050 = vmatprep.subr.mxu0 0.0
    %1051 = vmatpush1.msra.mxu0 0.0
    %1052 = vmatprep.subr.mxu0 0.0
    %1053 = vmatpush1.msra.mxu0 0.0
    %1054 = vmatprep.subr.mxu0 0.0
    %1055 = vmatpush1.msra.mxu0 0.0
    %1056 = vmatprep.subr.mxu0 0.0
    %1057 = vmatpush1.msra.mxu0 0.0
    %1058 = vmatprep.subr.mxu0 0.0
    %1059 = vmatpush1.msra.mxu0 0.0
    %1060 = vmatprep.subr.mxu0 0.0
    %1061 = vmatpush1.msra.mxu0 0.0
    %1062 = vmatprep.subr.mxu0 0.0
    %1063 = vmatpush1.msra.mxu0 0.0
    %1064 = vmatprep.subr.mxu0 0.0
    %1065 = vmatpush1.msra.mxu0 0.0
    %1066 = vmatprep.subr.mxu0 0.0
    %1067 = vmatpush1.msra.mxu0 0.0
    %1068 = vmatprep.subr.mxu0 0.0
    %1069 = vmatpush1.msra.mxu0 0.0
    %1070 = vmatprep.subr.mxu0 0.0
    %1071 = vmatpush1.msra.mxu0 0.0
    %1072 = vmatprep.subr.mxu0 0.0
    %1073 = vmatpush1.msra.mxu0 0.0
    %1074 = vmatprep.mubr.f32.mxu0 0.0
    %1075 = vmatmul.mubr.f32.gmra.mrb[0].mxu0 %v1007
    %v1076 = vpop.f32.mrb[0].mxu0
    %v1077 = vadd.f32 0.0, %v1076
    %v1078 = vpop.f32.mrb[0].mxu0
    %1079 = vmatprep.mubr.f32.mxu0 0.0
    %1080 = vmatmul.mubr.f32.gmra.mrb[0].mxu0 %v1008
    %v1081 = vpop.f32.mrb[0].mxu0
    %v1082 = vadd.f32 0.0, %v1081
    %v1083 = vpop.f32.mrb[0].mxu0
    %1084 = vmatprep.mubr.f32.mxu0 0.0
    %1085 = vmatmul.mubr.f32.gmra.mrb[0].mxu0 %v1009
    %v1086 = vpop.f32.mrb[0].mxu0
    %v1087 = vadd.f32 0.0, %v1086
    %v1088 = vpop.f32.mrb[0].mxu0
    %1089 = vdwg.mxu0
    %s1090 = scalar_lea.vmem %s4, 128
    %v1091 = vld [vmem:[%s1090] sm:$0xff]
    %v1092 = vld [vmem:[%s1090 + $0x8] sm:$0xff]
    %v1093 = vld [vmem:[%s1090 + $0x10] sm:$0xff]
    %v1094 = vld [vmem:[%s1090 + $0x18] sm:$0xff]
    %v1096 = vsel %vm465, %v1077, 0
    %v1099 = vsel %vm465, %v1082, 0
    %v1102 = vsel %vm465, %v1087, 0
    %1104 = vmatprep.subr.mxu0 0.0
    %1105 = vmatpush1.msra.mxu0 %v1091
    %1106 = vmatprep.subr.mxu0 0.0
    %1107 = vmatpush1.msra.mxu0 %v1092
    %1108 = vmatprep.subr.mxu0 0.0
    %1109 = vmatpush1.msra.mxu0 %v1093
    %1110 = vmatprep.subr.mxu0 0.0
    %1111 = vmatpush1.msra.mxu0 %v1094
    %1112 = vmatprep.subr.mxu0 0.0
    %1113 = vmatpush1.msra.mxu0 0.0
    %1114 = vmatprep.subr.mxu0 0.0
    %1115 = vmatpush1.msra.mxu0 0.0
    %1116 = vmatprep.subr.mxu0 0.0
    %1117 = vmatpush1.msra.mxu0 0.0
    %1118 = vmatprep.subr.mxu0 0.0
    %1119 = vmatpush1.msra.mxu0 0.0
    %1120 = vmatprep.subr.mxu0 0.0
    %1121 = vmatpush1.msra.mxu0 0.0
    %1122 = vmatprep.subr.mxu0 0.0
    %1123 = vmatpush1.msra.mxu0 0.0
    %1124 = vmatprep.subr.mxu0 0.0
    %1125 = vmatpush1.msra.mxu0 0.0
    %1126 = vmatprep.subr.mxu0 0.0
    %1127 = vmatpush1.msra.mxu0 0.0
    %1128 = vmatprep.subr.mxu0 0.0
    %1129 = vmatpush1.msra.mxu0 0.0
    %1130 = vmatprep.subr.mxu0 0.0
    %1131 = vmatpush1.msra.mxu0 0.0
    %1132 = vmatprep.subr.mxu0 0.0
    %1133 = vmatpush1.msra.mxu0 0.0
    %1134 = vmatprep.subr.mxu0 0.0
    %1135 = vmatpush1.msra.mxu0 0.0
    %1136 = vmatprep.subr.mxu0 0.0
    %1137 = vmatpush1.msra.mxu0 0.0
    %1138 = vmatprep.subr.mxu0 0.0
    %1139 = vmatpush1.msra.mxu0 0.0
    %1140 = vmatprep.subr.mxu0 0.0
    %1141 = vmatpush1.msra.mxu0 0.0
    %1142 = vmatprep.subr.mxu0 0.0
    %1143 = vmatpush1.msra.mxu0 0.0
    %1144 = vmatprep.subr.mxu0 0.0
    %1145 = vmatpush1.msra.mxu0 0.0
    %1146 = vmatprep.subr.mxu0 0.0
    %1147 = vmatpush1.msra.mxu0 0.0
    %1148 = vmatprep.subr.mxu0 0.0
    %1149 = vmatpush1.msra.mxu0 0.0
    %1150 = vmatprep.subr.mxu0 0.0
    %1151 = vmatpush1.msra.mxu0 0.0
    %1152 = vmatprep.subr.mxu0 0.0
    %1153 = vmatpush1.msra.mxu0 0.0
    %1154 = vmatprep.subr.mxu0 0.0
    %1155 = vmatpush1.msra.mxu0 0.0
    %1156 = vmatprep.subr.mxu0 0.0
    %1157 = vmatpush1.msra.mxu0 0.0
    %1158 = vmatprep.subr.mxu0 0.0
    %1159 = vmatpush1.msra.mxu0 0.0
    %1160 = vmatprep.subr.mxu0 0.0
    %1161 = vmatpush1.msra.mxu0 0.0
    %1162 = vmatprep.subr.mxu0 0.0
    %1163 = vmatpush1.msra.mxu0 0.0
    %1164 = vmatprep.subr.mxu0 0.0
    %1165 = vmatpush1.msra.mxu0 0.0
    %1166 = vmatprep.subr.mxu0 0.0
    %1167 = vmatpush1.msra.mxu0 0.0
    %1168 = vmatprep.mubr.f32.mxu0 0.0
    %1169 = vmatmul.mubr.f32.gmra.mrb[0].mxu0 %v1096
    %v1170 = vpop.f32.mrb[0].mxu0
    %v1171 = vadd.f32 0.0, %v1170
    %v1172 = vpop.f32.mrb[0].mxu0
    %1173 = vmatprep.mubr.f32.mxu0 0.0
    %1174 = vmatmul.mubr.f32.gmra.mrb[0].mxu0 %v1099
    %v1175 = vpop.f32.mrb[0].mxu0
    %v1176 = vadd.f32 0.0, %v1175
    %v1177 = vpop.f32.mrb[0].mxu0
    %1178 = vmatprep.mubr.f32.mxu0 0.0
    %1179 = vmatmul.mubr.f32.gmra.mrb[0].mxu0 %v1102
    %v1180 = vpop.f32.mrb[0].mxu0
    %v1181 = vadd.f32 0.0, %v1180
    %v1182 = vpop.f32.mrb[0].mxu0
    %1183 = vdwg.mxu0
    %v1184 = vadd.f32 %v1003, %v1171
    %v1185 = vadd.f32 %v1004, %v1176
    %v1186 = vadd.f32 %v1005, %v1181
    %s1187 = scalar_lea.vmem %s3, 120
    %v1188 = vld [vmem:[%s1187] sm:$0xff]
    %v1189 = vld [vmem:[%s1187 + $0x8] sm:$0xff]
    %v1190 = vld [vmem:[%s1187 + $0x10] sm:$0x3]
    %1191 = vmatprep.subr.mxu0 0.0
    %1192 = vmatpush1.msra.mxu0 %v273
    %1193 = vmatprep.subr.mxu0 0.0
    %1194 = vmatpush1.msra.mxu0 %v274
    %1195 = vmatprep.subr.mxu0 0.0
    %1196 = vmatpush1.msra.mxu0 %v275
    %1197 = vmatprep.subr.mxu0 0.0
    %1198 = vmatpush1.msra.mxu0 %v276
    %1199 = vmatprep.subr.mxu0 0.0
    %1200 = vmatpush1.msra.mxu0 %v277
    %1201 = vmatprep.subr.mxu0 0.0
    %1202 = vmatpush1.msra.mxu0 %v278
    %1203 = vmatprep.subr.mxu0 0.0
    %1204 = vmatpush1.msra.mxu0 %v279
    %1205 = vmatprep.subr.mxu0 0.0
    %1206 = vmatpush1.msra.mxu0 %v280
    %1207 = vmatprep.subr.mxu0 0.0
    %1208 = vmatpush1.msra.mxu0 %v281
    %1209 = vmatprep.subr.mxu0 0.0
    %1210 = vmatpush1.msra.mxu0 %v282
    %1211 = vmatprep.subr.mxu0 0.0
    %1212 = vmatpush1.msra.mxu0 %v283
    %1213 = vmatprep.subr.mxu0 0.0
    %1214 = vmatpush1.msra.mxu0 %v284
    %1215 = vmatprep.subr.mxu0 0.0
    %1216 = vmatpush1.msra.mxu0 %v285
    %1217 = vmatprep.subr.mxu0 0.0
    %1218 = vmatpush1.msra.mxu0 %v286
    %1219 = vmatprep.subr.mxu0 0.0
    %1220 = vmatpush1.msra.mxu0 %v287
    %1221 = vmatprep.subr.mxu0 0.0
    %1222 = vmatpush1.msra.mxu0 %v288
    %1223 = vmatprep.subr.mxu0 0.0
    %1224 = vmatpush1.msra.mxu0 0.0
    %1225 = vmatprep.subr.mxu0 0.0
    %1226 = vmatpush1.msra.mxu0 0.0
    %1227 = vmatprep.subr.mxu0 0.0
    %1228 = vmatpush1.msra.mxu0 0.0
    %1229 = vmatprep.subr.mxu0 0.0
    %1230 = vmatpush1.msra.mxu0 0.0
    %1231 = vmatprep.subr.mxu0 0.0
    %1232 = vmatpush1.msra.mxu0 0.0
    %1233 = vmatprep.subr.mxu0 0.0
    %1234 = vmatpush1.msra.mxu0 0.0
    %1235 = vmatprep.subr.mxu0 0.0
    %1236 = vmatpush1.msra.mxu0 0.0
    %1237 = vmatprep.subr.mxu0 0.0
    %1238 = vmatpush1.msra.mxu0 0.0
    %1239 = vmatprep.subr.mxu0 0.0
    %1240 = vmatpush1.msra.mxu0 0.0
    %1241 = vmatprep.subr.mxu0 0.0
    %1242 = vmatpush1.msra.mxu0 0.0
    %1243 = vmatprep.subr.mxu0 0.0
    %1244 = vmatpush1.msra.mxu0 0.0
    %1245 = vmatprep.subr.mxu0 0.0
    %1246 = vmatpush1.msra.mxu0 0.0
    %1247 = vmatprep.subr.mxu0 0.0
    %1248 = vmatpush1.msra.mxu0 0.0
    %1249 = vmatprep.subr.mxu0 0.0
    %1250 = vmatpush1.msra.mxu0 0.0
    %1251 = vmatprep.subr.mxu0 0.0
    %1252 = vmatpush1.msra.mxu0 0.0
    %1253 = vmatprep.subr.mxu0 0.0
    %1254 = vmatpush1.msra.mxu0 0.0
    %1255 = vmatprep.mubr.f32.mxu0 0.0
    %1256 = vmatmul.mubr.f32.gmra.mrb[0].mxu0 %v1188
    %v1257 = vpop.f32.mrb[0].mxu0
    %v1258 = vadd.f32 0.0, %v1257
    %v1259 = vpop.f32.mrb[0].mxu0
    %1260 = vmatprep.mubr.f32.mxu0 0.0
    %1261 = vmatmul.mubr.f32.gmra.mrb[0].mxu0 %v1189
    %v1262 = vpop.f32.mrb[0].mxu0
    %v1263 = vadd.f32 0.0, %v1262
    %v1264 = vpop.f32.mrb[0].mxu0
    %1265 = vmatprep.mubr.f32.mxu0 0.0
    %1266 = vmatmul.mubr.f32.gmra.mrb[0].mxu0 %v1190
    %v1267 = vpop.f32.mrb[0].mxu0
    %v1268 = vadd.f32 0.0, %v1267
    %v1269 = vpop.f32.mrb[0].mxu0
    %1270 = vdwg.mxu0
    %s1271 = scalar_lea.vmem %s4, 160
    %v1272 = vld [vmem:[%s1271] sm:$0xff]
    %v1273 = vld [vmem:[%s1271 + $0x8] sm:$0xff]
    %v1274 = vld [vmem:[%s1271 + $0x10] sm:$0xff]
    %v1275 = vld [vmem:[%s1271 + $0x18] sm:$0xff]
    %v1277 = vsel %vm465, %v1258, 0
    %v1280 = vsel %vm465, %v1263, 0
    %v1283 = vsel %vm465, %v1268, 0
    %1285 = vmatprep.subr.mxu0 0.0
    %1286 = vmatpush1.msra.mxu0 %v1272
    %1287 = vmatprep.subr.mxu0 0.0
    %1288 = vmatpush1.msra.mxu0 %v1273
    %1289 = vmatprep.subr.mxu0 0.0
    %1290 = vmatpush1.msra.mxu0 %v1274
    %1291 = vmatprep.subr.mxu0 0.0
    %1292 = vmatpush1.msra.mxu0 %v1275
    %1293 = vmatprep.subr.mxu0 0.0
    %1294 = vmatpush1.msra.mxu0 0.0
    %1295 = vmatprep.subr.mxu0 0.0
    %1296 = vmatpush1.msra.mxu0 0.0
    %1297 = vmatprep.subr.mxu0 0.0
    %1298 = vmatpush1.msra.mxu0 0.0
    %1299 = vmatprep.subr.mxu0 0.0
    %1300 = vmatpush1.msra.mxu0 0.0
    %1301 = vmatprep.subr.mxu0 0.0
    %1302 = vmatpush1.msra.mxu0 0.0
    %1303 = vmatprep.subr.mxu0 0.0
    %1304 = vmatpush1.msra.mxu0 0.0
    %1305 = vmatprep.subr.mxu0 0.0
    %1306 = vmatpush1.msra.mxu0 0.0
    %1307 = vmatprep.subr.mxu0 0.0
    %1308 = vmatpush1.msra.mxu0 0.0
    %1309 = vmatprep.subr.mxu0 0.0
    %1310 = vmatpush1.msra.mxu0 0.0
    %1311 = vmatprep.subr.mxu0 0.0
    %1312 = vmatpush1.msra.mxu0 0.0
    %1313 = vmatprep.subr.mxu0 0.0
    %1314 = vmatpush1.msra.mxu0 0.0
    %1315 = vmatprep.subr.mxu0 0.0
    %1316 = vmatpush1.msra.mxu0 0.0
    %1317 = vmatprep.subr.mxu0 0.0
    %1318 = vmatpush1.msra.mxu0 0.0
    %1319 = vmatprep.subr.mxu0 0.0
    %1320 = vmatpush1.msra.mxu0 0.0
    %1321 = vmatprep.subr.mxu0 0.0
    %1322 = vmatpush1.msra.mxu0 0.0
    %1323 = vmatprep.subr.mxu0 0.0
    %1324 = vmatpush1.msra.mxu0 0.0
    %1325 = vmatprep.subr.mxu0 0.0
    %1326 = vmatpush1.msra.mxu0 0.0
    %1327 = vmatprep.subr.mxu0 0.0
    %1328 = vmatpush1.msra.mxu0 0.0
    %1329 = vmatprep.subr.mxu0 0.0
    %1330 = vmatpush1.msra.mxu0 0.0
    %1331 = vmatprep.subr.mxu0 0.0
    %1332 = vmatpush1.msra.mxu0 0.0
    %1333 = vmatprep.subr.mxu0 0.0
    %1334 = vmatpush1.msra.mxu0 0.0
    %1335 = vmatprep.subr.mxu0 0.0
    %1336 = vmatpush1.msra.mxu0 0.0
    %1337 = vmatprep.subr.mxu0 0.0
    %1338 = vmatpush1.msra.mxu0 0.0
    %1339 = vmatprep.subr.mxu0 0.0
    %1340 = vmatpush1.msra.mxu0 0.0
    %1341 = vmatprep.subr.mxu0 0.0
    %1342 = vmatpush1.msra.mxu0 0.0
    %1343 = vmatprep.subr.mxu0 0.0
    %1344 = vmatpush1.msra.mxu0 0.0
    %1345 = vmatprep.subr.mxu0 0.0
    %1346 = vmatpush1.msra.mxu0 0.0
    %1347 = vmatprep.subr.mxu0 0.0
    %1348 = vmatpush1.msra.mxu0 0.0
    %1349 = vmatprep.mubr.f32.mxu0 0.0
    %1350 = vmatmul.mubr.f32.gmra.mrb[0].mxu0 %v1277
    %v1351 = vpop.f32.mrb[0].mxu0
    %v1352 = vadd.f32 0.0, %v1351
    %v1353 = vpop.f32.mrb[0].mxu0
    %1354 = vmatprep.mubr.f32.mxu0 0.0
    %1355 = vmatmul.mubr.f32.gmra.mrb[0].mxu0 %v1280
    %v1356 = vpop.f32.mrb[0].mxu0
    %v1357 = vadd.f32 0.0, %v1356
    %v1358 = vpop.f32.mrb[0].mxu0
    %1359 = vmatprep.mubr.f32.mxu0 0.0
    %1360 = vmatmul.mubr.f32.gmra.mrb[0].mxu0 %v1283
    %v1361 = vpop.f32.mrb[0].mxu0
    %v1362 = vadd.f32 0.0, %v1361
    %v1363 = vpop.f32.mrb[0].mxu0
    %1364 = vdwg.mxu0
    %v1365 = vadd.f32 %v1184, %v1352
    %v1366 = vadd.f32 %v1185, %v1357
    %v1367 = vadd.f32 %v1186, %v1362
    %s1368 = scalar_lea.vmem %s3, 144
    %v1369 = vld [vmem:[%s1368] sm:$0xff]
    %v1370 = vld [vmem:[%s1368 + $0x8] sm:$0xff]
    %v1371 = vld [vmem:[%s1368 + $0x10] sm:$0x3]
    %1372 = vmatprep.subr.mxu0 0.0
    %1373 = vmatpush1.msra.mxu0 %v273
    %1374 = vmatprep.subr.mxu0 0.0
    %1375 = vmatpush1.msra.mxu0 %v274
    %1376 = vmatprep.subr.mxu0 0.0
    %1377 = vmatpush1.msra.mxu0 %v275
    %1378 = vmatprep.subr.mxu0 0.0
    %1379 = vmatpush1.msra.mxu0 %v276
    %1380 = vmatprep.subr.mxu0 0.0
    %1381 = vmatpush1.msra.mxu0 %v277
    %1382 = vmatprep.subr.mxu0 0.0
    %1383 = vmatpush1.msra.mxu0 %v278
    %1384 = vmatprep.subr.mxu0 0.0
    %1385 = vmatpush1.msra.mxu0 %v279
    %1386 = vmatprep.subr.mxu0 0.0
    %1387 = vmatpush1.msra.mxu0 %v280
    %1388 = vmatprep.subr.mxu0 0.0
    %1389 = vmatpush1.msra.mxu0 %v281
    %1390 = vmatprep.subr.mxu0 0.0
    %1391 = vmatpush1.msra.mxu0 %v282
    %1392 = vmatprep.subr.mxu0 0.0
    %1393 = vmatpush1.msra.mxu0 %v283
    %1394 = vmatprep.subr.mxu0 0.0
    %1395 = vmatpush1.msra.mxu0 %v284
    %1396 = vmatprep.subr.mxu0 0.0
    %1397 = vmatpush1.msra.mxu0 %v285
    %1398 = vmatprep.subr.mxu0 0.0
    %1399 = vmatpush1.msra.mxu0 %v286
    %1400 = vmatprep.subr.mxu0 0.0
    %1401 = vmatpush1.msra.mxu0 %v287
    %1402 = vmatprep.subr.mxu0 0.0
    %1403 = vmatpush1.msra.mxu0 %v288
    %1404 = vmatprep.subr.mxu0 0.0
    %1405 = vmatpush1.msra.mxu0 0.0
    %1406 = vmatprep.subr.mxu0 0.0
    %1407 = vmatpush1.msra.mxu0 0.0
    %1408 = vmatprep.subr.mxu0 0.0
    %1409 = vmatpush1.msra.mxu0 0.0
    %1410 = vmatprep.subr.mxu0 0.0
    %1411 = vmatpush1.msra.mxu0 0.0
    %1412 = vmatprep.subr.mxu0 0.0
    %1413 = vmatpush1.msra.mxu0 0.0
    %1414 = vmatprep.subr.mxu0 0.0
    %1415 = vmatpush1.msra.mxu0 0.0
    %1416 = vmatprep.subr.mxu0 0.0
    %1417 = vmatpush1.msra.mxu0 0.0
    %1418 = vmatprep.subr.mxu0 0.0
    %1419 = vmatpush1.msra.mxu0 0.0
    %1420 = vmatprep.subr.mxu0 0.0
    %1421 = vmatpush1.msra.mxu0 0.0
    %1422 = vmatprep.subr.mxu0 0.0
    %1423 = vmatpush1.msra.mxu0 0.0
    %1424 = vmatprep.subr.mxu0 0.0
    %1425 = vmatpush1.msra.mxu0 0.0
    %1426 = vmatprep.subr.mxu0 0.0
    %1427 = vmatpush1.msra.mxu0 0.0
    %1428 = vmatprep.subr.mxu0 0.0
    %1429 = vmatpush1.msra.mxu0 0.0
    %1430 = vmatprep.subr.mxu0 0.0
    %1431 = vmatpush1.msra.mxu0 0.0
    %1432 = vmatprep.subr.mxu0 0.0
    %1433 = vmatpush1.msra.mxu0 0.0
    %1434 = vmatprep.subr.mxu0 0.0
    %1435 = vmatpush1.msra.mxu0 0.0
    %1436 = vmatprep.mubr.f32.mxu0 0.0
    %1437 = vmatmul.mubr.f32.gmra.mrb[0].mxu0 %v1369
    %v1438 = vpop.f32.mrb[0].mxu0
    %v1439 = vadd.f32 0.0, %v1438
    %v1440 = vpop.f32.mrb[0].mxu0
    %1441 = vmatprep.mubr.f32.mxu0 0.0
    %1442 = vmatmul.mubr.f32.gmra.mrb[0].mxu0 %v1370
    %v1443 = vpop.f32.mrb[0].mxu0
    %v1444 = vadd.f32 0.0, %v1443
    %v1445 = vpop.f32.mrb[0].mxu0
    %1446 = vmatprep.mubr.f32.mxu0 0.0
    %1447 = vmatmul.mubr.f32.gmra.mrb[0].mxu0 %v1371
    %v1448 = vpop.f32.mrb[0].mxu0
    %v1449 = vadd.f32 0.0, %v1448
    %v1450 = vpop.f32.mrb[0].mxu0
    %1451 = vdwg.mxu0
    %s1452 = scalar_lea.vmem %s4, 192
    %v1453 = vld [vmem:[%s1452] sm:$0xff]
    %v1454 = vld [vmem:[%s1452 + $0x8] sm:$0xff]
    %v1455 = vld [vmem:[%s1452 + $0x10] sm:$0xff]
    %v1456 = vld [vmem:[%s1452 + $0x18] sm:$0xff]
    %v1458 = vsel %vm465, %v1439, 0
    %v1461 = vsel %vm465, %v1444, 0
    %v1464 = vsel %vm465, %v1449, 0
    %1466 = vmatprep.subr.mxu0 0.0
    %1467 = vmatpush1.msra.mxu0 %v1453
    %1468 = vmatprep.subr.mxu0 0.0
    %1469 = vmatpush1.msra.mxu0 %v1454
    %1470 = vmatprep.subr.mxu0 0.0
    %1471 = vmatpush1.msra.mxu0 %v1455
    %1472 = vmatprep.subr.mxu0 0.0
    %1473 = vmatpush1.msra.mxu0 %v1456
    %1474 = vmatprep.subr.mxu0 0.0
    %1475 = vmatpush1.msra.mxu0 0.0
    %1476 = vmatprep.subr.mxu0 0.0
    %1477 = vmatpush1.msra.mxu0 0.0
    %1478 = vmatprep.subr.mxu0 0.0
    %1479 = vmatpush1.msra.mxu0 0.0
    %1480 = vmatprep.subr.mxu0 0.0
    %1481 = vmatpush1.msra.mxu0 0.0
    %1482 = vmatprep.subr.mxu0 0.0
    %1483 = vmatpush1.msra.mxu0 0.0
    %1484 = vmatprep.subr.mxu0 0.0
    %1485 = vmatpush1.msra.mxu0 0.0
    %1486 = vmatprep.subr.mxu0 0.0
    %1487 = vmatpush1.msra.mxu0 0.0
    %1488 = vmatprep.subr.mxu0 0.0
    %1489 = vmatpush1.msra.mxu0 0.0
    %1490 = vmatprep.subr.mxu0 0.0
    %1491 = vmatpush1.msra.mxu0 0.0
    %1492 = vmatprep.subr.mxu0 0.0
    %1493 = vmatpush1.msra.mxu0 0.0
    %1494 = vmatprep.subr.mxu0 0.0
    %1495 = vmatpush1.msra.mxu0 0.0
    %1496 = vmatprep.subr.mxu0 0.0
    %1497 = vmatpush1.msra.mxu0 0.0
    %1498 = vmatprep.subr.mxu0 0.0
    %1499 = vmatpush1.msra.mxu0 0.0
    %1500 = vmatprep.subr.mxu0 0.0
    %1501 = vmatpush1.msra.mxu0 0.0
    %1502 = vmatprep.subr.mxu0 0.0
    %1503 = vmatpush1.msra.mxu0 0.0
    %1504 = vmatprep.subr.mxu0 0.0
    %1505 = vmatpush1.msra.mxu0 0.0
    %1506 = vmatprep.subr.mxu0 0.0
    %1507 = vmatpush1.msra.mxu0 0.0
    %1508 = vmatprep.subr.mxu0 0.0
    %1509 = vmatpush1.msra.mxu0 0.0
    %1510 = vmatprep.subr.mxu0 0.0
    %1511 = vmatpush1.msra.mxu0 0.0
    %1512 = vmatprep.subr.mxu0 0.0
    %1513 = vmatpush1.msra.mxu0 0.0
    %1514 = vmatprep.subr.mxu0 0.0
    %1515 = vmatpush1.msra.mxu0 0.0
    %1516 = vmatprep.subr.mxu0 0.0
    %1517 = vmatpush1.msra.mxu0 0.0
    %1518 = vmatprep.subr.mxu0 0.0
    %1519 = vmatpush1.msra.mxu0 0.0
    %1520 = vmatprep.subr.mxu0 0.0
    %1521 = vmatpush1.msra.mxu0 0.0
    %1522 = vmatprep.subr.mxu0 0.0
    %1523 = vmatpush1.msra.mxu0 0.0
    %1524 = vmatprep.subr.mxu0 0.0
    %1525 = vmatpush1.msra.mxu0 0.0
    %1526 = vmatprep.subr.mxu0 0.0
    %1527 = vmatpush1.msra.mxu0 0.0
    %1528 = vmatprep.subr.mxu0 0.0
    %1529 = vmatpush1.msra.mxu0 0.0
    %1530 = vmatprep.mubr.f32.mxu0 0.0
    %1531 = vmatmul.mubr.f32.gmra.mrb[0].mxu0 %v1458
    %v1532 = vpop.f32.mrb[0].mxu0
    %v1533 = vadd.f32 0.0, %v1532
    %v1534 = vpop.f32.mrb[0].mxu0
    %1535 = vmatprep.mubr.f32.mxu0 0.0
    %1536 = vmatmul.mubr.f32.gmra.mrb[0].mxu0 %v1461
    %v1537 = vpop.f32.mrb[0].mxu0
    %v1538 = vadd.f32 0.0, %v1537
    %v1539 = vpop.f32.mrb[0].mxu0
    %1540 = vmatprep.mubr.f32.mxu0 0.0
    %1541 = vmatmul.mubr.f32.gmra.mrb[0].mxu0 %v1464
    %v1542 = vpop.f32.mrb[0].mxu0
    %v1543 = vadd.f32 0.0, %v1542
    %v1544 = vpop.f32.mrb[0].mxu0
    %1545 = vdwg.mxu0
    %v1546 = vadd.f32 %v1365, %v1533
    %v1547 = vadd.f32 %v1366, %v1538
    %v1548 = vadd.f32 %v1367, %v1543
    %s1549 = scalar_lea.vmem %s3, 168
    %v1550 = vld [vmem:[%s1549] sm:$0xff]
    %v1551 = vld [vmem:[%s1549 + $0x8] sm:$0xff]
    %v1552 = vld [vmem:[%s1549 + $0x10] sm:$0x3]
    %1553 = vmatprep.subr.mxu0 0.0
    %1554 = vmatpush1.msra.mxu0 %v273
    %1555 = vmatprep.subr.mxu0 0.0
    %1556 = vmatpush1.msra.mxu0 %v274
    %1557 = vmatprep.subr.mxu0 0.0
    %1558 = vmatpush1.msra.mxu0 %v275
    %1559 = vmatprep.subr.mxu0 0.0
    %1560 = vmatpush1.msra.mxu0 %v276
    %1561 = vmatprep.subr.mxu0 0.0
    %1562 = vmatpush1.msra.mxu0 %v277
    %1563 = vmatprep.subr.mxu0 0.0
    %1564 = vmatpush1.msra.mxu0 %v278
    %1565 = vmatprep.subr.mxu0 0.0
    %1566 = vmatpush1.msra.mxu0 %v279
    %1567 = vmatprep.subr.mxu0 0.0
    %1568 = vmatpush1.msra.mxu0 %v280
    %1569 = vmatprep.subr.mxu0 0.0
    %1570 = vmatpush1.msra.mxu0 %v281
    %1571 = vmatprep.subr.mxu0 0.0
    %1572 = vmatpush1.msra.mxu0 %v282
    %1573 = vmatprep.subr.mxu0 0.0
    %1574 = vmatpush1.msra.mxu0 %v283
    %1575 = vmatprep.subr.mxu0 0.0
    %1576 = vmatpush1.msra.mxu0 %v284
    %1577 = vmatprep.subr.mxu0 0.0
    %1578 = vmatpush1.msra.mxu0 %v285
    %1579 = vmatprep.subr.mxu0 0.0
    %1580 = vmatpush1.msra.mxu0 %v286
    %1581 = vmatprep.subr.mxu0 0.0
    %1582 = vmatpush1.msra.mxu0 %v287
    %1583 = vmatprep.subr.mxu0 0.0
    %1584 = vmatpush1.msra.mxu0 %v288
    %1585 = vmatprep.subr.mxu0 0.0
    %1586 = vmatpush1.msra.mxu0 0.0
    %1587 = vmatprep.subr.mxu0 0.0
    %1588 = vmatpush1.msra.mxu0 0.0
    %1589 = vmatprep.subr.mxu0 0.0
    %1590 = vmatpush1.msra.mxu0 0.0
    %1591 = vmatprep.subr.mxu0 0.0
    %1592 = vmatpush1.msra.mxu0 0.0
    %1593 = vmatprep.subr.mxu0 0.0
    %1594 = vmatpush1.msra.mxu0 0.0
    %1595 = vmatprep.subr.mxu0 0.0
    %1596 = vmatpush1.msra.mxu0 0.0
    %1597 = vmatprep.subr.mxu0 0.0
    %1598 = vmatpush1.msra.mxu0 0.0
    %1599 = vmatprep.subr.mxu0 0.0
    %1600 = vmatpush1.msra.mxu0 0.0
    %1601 = vmatprep.subr.mxu0 0.0
    %1602 = vmatpush1.msra.mxu0 0.0
    %1603 = vmatprep.subr.mxu0 0.0
    %1604 = vmatpush1.msra.mxu0 0.0
    %1605 = vmatprep.subr.mxu0 0.0
    %1606 = vmatpush1.msra.mxu0 0.0
    %1607 = vmatprep.subr.mxu0 0.0
    %1608 = vmatpush1.msra.mxu0 0.0
    %1609 = vmatprep.subr.mxu0 0.0
    %1610 = vmatpush1.msra.mxu0 0.0
    %1611 = vmatprep.subr.mxu0 0.0
    %1612 = vmatpush1.msra.mxu0 0.0
    %1613 = vmatprep.subr.mxu0 0.0
    %1614 = vmatpush1.msra.mxu0 0.0
    %1615 = vmatprep.subr.mxu0 0.0
    %1616 = vmatpush1.msra.mxu0 0.0
    %1617 = vmatprep.mubr.f32.mxu0 0.0
    %1618 = vmatmul.mubr.f32.gmra.mrb[0].mxu0 %v1550
    %v1619 = vpop.f32.mrb[0].mxu0
    %v1620 = vadd.f32 0.0, %v1619
    %v1621 = vpop.f32.mrb[0].mxu0
    %1622 = vmatprep.mubr.f32.mxu0 0.0
    %1623 = vmatmul.mubr.f32.gmra.mrb[0].mxu0 %v1551
    %v1624 = vpop.f32.mrb[0].mxu0
    %v1625 = vadd.f32 0.0, %v1624
    %v1626 = vpop.f32.mrb[0].mxu0
    %1627 = vmatprep.mubr.f32.mxu0 0.0
    %1628 = vmatmul.mubr.f32.gmra.mrb[0].mxu0 %v1552
    %v1629 = vpop.f32.mrb[0].mxu0
    %v1630 = vadd.f32 0.0, %v1629
    %v1631 = vpop.f32.mrb[0].mxu0
    %1632 = vdwg.mxu0
    %s1633 = scalar_lea.vmem %s4, 224
    %v1634 = vld [vmem:[%s1633] sm:$0xff]
    %v1635 = vld [vmem:[%s1633 + $0x8] sm:$0xff]
    %v1636 = vld [vmem:[%s1633 + $0x10] sm:$0xff]
    %v1637 = vld [vmem:[%s1633 + $0x18] sm:$0xff]
    %v1639 = vsel %vm465, %v1620, 0
    %v1642 = vsel %vm465, %v1625, 0
    %v1645 = vsel %vm465, %v1630, 0
    %1647 = vmatprep.subr.mxu0 0.0
    %1648 = vmatpush1.msra.mxu0 %v1634
    %1649 = vmatprep.subr.mxu0 0.0
    %1650 = vmatpush1.msra.mxu0 %v1635
    %1651 = vmatprep.subr.mxu0 0.0
    %1652 = vmatpush1.msra.mxu0 %v1636
    %1653 = vmatprep.subr.mxu0 0.0
    %1654 = vmatpush1.msra.mxu0 %v1637
    %1655 = vmatprep.subr.mxu0 0.0
    %1656 = vmatpush1.msra.mxu0 0.0
    %1657 = vmatprep.subr.mxu0 0.0
    %1658 = vmatpush1.msra.mxu0 0.0
    %1659 = vmatprep.subr.mxu0 0.0
    %1660 = vmatpush1.msra.mxu0 0.0
    %1661 = vmatprep.subr.mxu0 0.0
    %1662 = vmatpush1.msra.mxu0 0.0
    %1663 = vmatprep.subr.mxu0 0.0
    %1664 = vmatpush1.msra.mxu0 0.0
    %1665 = vmatprep.subr.mxu0 0.0
    %1666 = vmatpush1.msra.mxu0 0.0
    %1667 = vmatprep.subr.mxu0 0.0
    %1668 = vmatpush1.msra.mxu0 0.0
    %1669 = vmatprep.subr.mxu0 0.0
    %1670 = vmatpush1.msra.mxu0 0.0
    %1671 = vmatprep.subr.mxu0 0.0
    %1672 = vmatpush1.msra.mxu0 0.0
    %1673 = vmatprep.subr.mxu0 0.0
    %1674 = vmatpush1.msra.mxu0 0.0
    %1675 = vmatprep.subr.mxu0 0.0
    %1676 = vmatpush1.msra.mxu0 0.0
    %1677 = vmatprep.subr.mxu0 0.0
    %1678 = vmatpush1.msra.mxu0 0.0
    %1679 = vmatprep.subr.mxu0 0.0
    %1680 = vmatpush1.msra.mxu0 0.0
    %1681 = vmatprep.subr.mxu0 0.0
    %1682 = vmatpush1.msra.mxu0 0.0
    %1683 = vmatprep.subr.mxu0 0.0
    %1684 = vmatpush1.msra.mxu0 0.0
    %1685 = vmatprep.subr.mxu0 0.0
    %1686 = vmatpush1.msra.mxu0 0.0
    %1687 = vmatprep.subr.mxu0 0.0
    %1688 = vmatpush1.msra.mxu0 0.0
    %1689 = vmatprep.subr.mxu0 0.0
    %1690 = vmatpush1.msra.mxu0 0.0
    %1691 = vmatprep.subr.mxu0 0.0
    %1692 = vmatpush1.msra.mxu0 0.0
    %1693 = vmatprep.subr.mxu0 0.0
    %1694 = vmatpush1.msra.mxu0 0.0
    %1695 = vmatprep.subr.mxu0 0.0
    %1696 = vmatpush1.msra.mxu0 0.0
    %1697 = vmatprep.subr.mxu0 0.0
    %1698 = vmatpush1.msra.mxu0 0.0
    %1699 = vmatprep.subr.mxu0 0.0
    %1700 = vmatpush1.msra.mxu0 0.0
    %1701 = vmatprep.subr.mxu0 0.0
    %1702 = vmatpush1.msra.mxu0 0.0
    %1703 = vmatprep.subr.mxu0 0.0
    %1704 = vmatpush1.msra.mxu0 0.0
    %1705 = vmatprep.subr.mxu0 0.0
    %1706 = vmatpush1.msra.mxu0 0.0
    %1707 = vmatprep.subr.mxu0 0.0
    %1708 = vmatpush1.msra.mxu0 0.0
    %1709 = vmatprep.subr.mxu0 0.0
    %1710 = vmatpush1.msra.mxu0 0.0
    %1711 = vmatprep.mubr.f32.mxu0 0.0
    %1712 = vmatmul.mubr.f32.gmra.mrb[0].mxu0 %v1639
    %v1713 = vpop.f32.mrb[0].mxu0
    %v1714 = vadd.f32 0.0, %v1713
    %v1715 = vpop.f32.mrb[0].mxu0
    %1716 = vmatprep.mubr.f32.mxu0 0.0
    %1717 = vmatmul.mubr.f32.gmra.mrb[0].mxu0 %v1642
    %v1718 = vpop.f32.mrb[0].mxu0
    %v1719 = vadd.f32 0.0, %v1718
    %v1720 = vpop.f32.mrb[0].mxu0
    %1721 = vmatprep.mubr.f32.mxu0 0.0
    %1722 = vmatmul.mubr.f32.gmra.mrb[0].mxu0 %v1645
    %v1723 = vpop.f32.mrb[0].mxu0
    %v1724 = vadd.f32 0.0, %v1723
    %v1725 = vpop.f32.mrb[0].mxu0
    %1726 = vdwg.mxu0
    %v1727 = vadd.f32 %v1546, %v1714
    %v1728 = vadd.f32 %v1547, %v1719
    %v1729 = vadd.f32 %v1548, %v1724
    %s1730 = scalar_lea.vmem %s3, 192
    %v1731 = vld [vmem:[%s1730] sm:$0xff]
    %v1732 = vld [vmem:[%s1730 + $0x8] sm:$0xff]
    %v1733 = vld [vmem:[%s1730 + $0x10] sm:$0x3]
    %1734 = vmatprep.subr.mxu0 0.0
    %1735 = vmatpush1.msra.mxu0 %v273
    %1736 = vmatprep.subr.mxu0 0.0
    %1737 = vmatpush1.msra.mxu0 %v274
    %1738 = vmatprep.subr.mxu0 0.0
    %1739 = vmatpush1.msra.mxu0 %v275
    %1740 = vmatprep.subr.mxu0 0.0
    %1741 = vmatpush1.msra.mxu0 %v276
    %1742 = vmatprep.subr.mxu0 0.0
    %1743 = vmatpush1.msra.mxu0 %v277
    %1744 = vmatprep.subr.mxu0 0.0
    %1745 = vmatpush1.msra.mxu0 %v278
    %1746 = vmatprep.subr.mxu0 0.0
    %1747 = vmatpush1.msra.mxu0 %v279
    %1748 = vmatprep.subr.mxu0 0.0
    %1749 = vmatpush1.msra.mxu0 %v280
    %1750 = vmatprep.subr.mxu0 0.0
    %1751 = vmatpush1.msra.mxu0 %v281
    %1752 = vmatprep.subr.mxu0 0.0
    %1753 = vmatpush1.msra.mxu0 %v282
    %1754 = vmatprep.subr.mxu0 0.0
    %1755 = vmatpush1.msra.mxu0 %v283
    %1756 = vmatprep.subr.mxu0 0.0
    %1757 = vmatpush1.msra.mxu0 %v284
    %1758 = vmatprep.subr.mxu0 0.0
    %1759 = vmatpush1.msra.mxu0 %v285
    %1760 = vmatprep.subr.mxu0 0.0
    %1761 = vmatpush1.msra.mxu0 %v286
    %1762 = vmatprep.subr.mxu0 0.0
    %1763 = vmatpush1.msra.mxu0 %v287
    %1764 = vmatprep.subr.mxu0 0.0
    %1765 = vmatpush1.msra.mxu0 %v288
    %1766 = vmatprep.subr.mxu0 0.0
    %1767 = vmatpush1.msra.mxu0 0.0
    %1768 = vmatprep.subr.mxu0 0.0
    %1769 = vmatpush1.msra.mxu0 0.0
    %1770 = vmatprep.subr.mxu0 0.0
    %1771 = vmatpush1.msra.mxu0 0.0
    %1772 = vmatprep.subr.mxu0 0.0
    %1773 = vmatpush1.msra.mxu0 0.0
    %1774 = vmatprep.subr.mxu0 0.0
    %1775 = vmatpush1.msra.mxu0 0.0
    %1776 = vmatprep.subr.mxu0 0.0
    %1777 = vmatpush1.msra.mxu0 0.0
    %1778 = vmatprep.subr.mxu0 0.0
    %1779 = vmatpush1.msra.mxu0 0.0
    %1780 = vmatprep.subr.mxu0 0.0
    %1781 = vmatpush1.msra.mxu0 0.0
    %1782 = vmatprep.subr.mxu0 0.0
    %1783 = vmatpush1.msra.mxu0 0.0
    %1784 = vmatprep.subr.mxu0 0.0
    %1785 = vmatpush1.msra.mxu0 0.0
    %1786 = vmatprep.subr.mxu0 0.0
    %1787 = vmatpush1.msra.mxu0 0.0
    %1788 = vmatprep.subr.mxu0 0.0
    %1789 = vmatpush1.msra.mxu0 0.0
    %1790 = vmatprep.subr.mxu0 0.0
    %1791 = vmatpush1.msra.mxu0 0.0
    %1792 = vmatprep.subr.mxu0 0.0
    %1793 = vmatpush1.msra.mxu0 0.0
    %1794 = vmatprep.subr.mxu0 0.0
    %1795 = vmatpush1.msra.mxu0 0.0
    %1796 = vmatprep.subr.mxu0 0.0
    %1797 = vmatpush1.msra.mxu0 0.0
    %1798 = vmatprep.mubr.f32.mxu0 0.0
    %1799 = vmatmul.mubr.f32.gmra.mrb[0].mxu0 %v1731
    %v1800 = vpop.f32.mrb[0].mxu0
    %v1801 = vadd.f32 0.0, %v1800
    %v1802 = vpop.f32.mrb[0].mxu0
    %1803 = vmatprep.mubr.f32.mxu0 0.0
    %1804 = vmatmul.mubr.f32.gmra.mrb[0].mxu0 %v1732
    %v1805 = vpop.f32.mrb[0].mxu0
    %v1806 = vadd.f32 0.0, %v1805
    %v1807 = vpop.f32.mrb[0].mxu0
    %1808 = vmatprep.mubr.f32.mxu0 0.0
    %1809 = vmatmul.mubr.f32.gmra.mrb[0].mxu0 %v1733
    %v1810 = vpop.f32.mrb[0].mxu0
    %v1811 = vadd.f32 0.0, %v1810
    %v1812 = vpop.f32.mrb[0].mxu0
    %1813 = vdwg.mxu0
    %s1814 = scalar_lea.vmem %s4, 256
    %v1815 = vld [vmem:[%s1814] sm:$0xff]
    %v1816 = vld [vmem:[%s1814 + $0x8] sm:$0xff]
    %v1817 = vld [vmem:[%s1814 + $0x10] sm:$0xff]
    %v1818 = vld [vmem:[%s1814 + $0x18] sm:$0xff]
    %v1820 = vsel %vm465, %v1801, 0
    %v1823 = vsel %vm465, %v1806, 0
    %v1826 = vsel %vm465, %v1811, 0
    %1828 = vmatprep.subr.mxu0 0.0
    %1829 = vmatpush1.msra.mxu0 %v1815
    %1830 = vmatprep.subr.mxu0 0.0
    %1831 = vmatpush1.msra.mxu0 %v1816
    %1832 = vmatprep.subr.mxu0 0.0
    %1833 = vmatpush1.msra.mxu0 %v1817
    %1834 = vmatprep.subr.mxu0 0.0
    %1835 = vmatpush1.msra.mxu0 %v1818
    %1836 = vmatprep.subr.mxu0 0.0
    %1837 = vmatpush1.msra.mxu0 0.0
    %1838 = vmatprep.subr.mxu0 0.0
    %1839 = vmatpush1.msra.mxu0 0.0
    %1840 = vmatprep.subr.mxu0 0.0
    %1841 = vmatpush1.msra.mxu0 0.0
    %1842 = vmatprep.subr.mxu0 0.0
    %1843 = vmatpush1.msra.mxu0 0.0
    %1844 = vmatprep.subr.mxu0 0.0
    %1845 = vmatpush1.msra.mxu0 0.0
    %1846 = vmatprep.subr.mxu0 0.0
    %1847 = vmatpush1.msra.mxu0 0.0
    %1848 = vmatprep.subr.mxu0 0.0
    %1849 = vmatpush1.msra.mxu0 0.0
    %1850 = vmatprep.subr.mxu0 0.0
    %1851 = vmatpush1.msra.mxu0 0.0
    %1852 = vmatprep.subr.mxu0 0.0
    %1853 = vmatpush1.msra.mxu0 0.0
    %1854 = vmatprep.subr.mxu0 0.0
    %1855 = vmatpush1.msra.mxu0 0.0
    %1856 = vmatprep.subr.mxu0 0.0
    %1857 = vmatpush1.msra.mxu0 0.0
    %1858 = vmatprep.subr.mxu0 0.0
    %1859 = vmatpush1.msra.mxu0 0.0
    %1860 = vmatprep.subr.mxu0 0.0
    %1861 = vmatpush1.msra.mxu0 0.0
    %1862 = vmatprep.subr.mxu0 0.0
    %1863 = vmatpush1.msra.mxu0 0.0
    %1864 = vmatprep.subr.mxu0 0.0
    %1865 = vmatpush1.msra.mxu0 0.0
    %1866 = vmatprep.subr.mxu0 0.0
    %1867 = vmatpush1.msra.mxu0 0.0
    %1868 = vmatprep.subr.mxu0 0.0
    %1869 = vmatpush1.msra.mxu0 0.0
    %1870 = vmatprep.subr.mxu0 0.0
    %1871 = vmatpush1.msra.mxu0 0.0
    %1872 = vmatprep.subr.mxu0 0.0
    %1873 = vmatpush1.msra.mxu0 0.0
    %1874 = vmatprep.subr.mxu0 0.0
    %1875 = vmatpush1.msra.mxu0 0.0
    %1876 = vmatprep.subr.mxu0 0.0
    %1877 = vmatpush1.msra.mxu0 0.0
    %1878 = vmatprep.subr.mxu0 0.0
    %1879 = vmatpush1.msra.mxu0 0.0
    %1880 = vmatprep.subr.mxu0 0.0
    %1881 = vmatpush1.msra.mxu0 0.0
    %1882 = vmatprep.subr.mxu0 0.0
    %1883 = vmatpush1.msra.mxu0 0.0
    %1884 = vmatprep.subr.mxu0 0.0
    %1885 = vmatpush1.msra.mxu0 0.0
    %1886 = vmatprep.subr.mxu0 0.0
    %1887 = vmatpush1.msra.mxu0 0.0
    %1888 = vmatprep.subr.mxu0 0.0
    %1889 = vmatpush1.msra.mxu0 0.0
    %1890 = vmatprep.subr.mxu0 0.0
    %1891 = vmatpush1.msra.mxu0 0.0
    %1892 = vmatprep.mubr.f32.mxu0 0.0
    %1893 = vmatmul.mubr.f32.gmra.mrb[0].mxu0 %v1820
    %v1894 = vpop.f32.mrb[0].mxu0
    %v1895 = vadd.f32 0.0, %v1894
    %v1896 = vpop.f32.mrb[0].mxu0
    %1897 = vmatprep.mubr.f32.mxu0 0.0
    %1898 = vmatmul.mubr.f32.gmra.mrb[0].mxu0 %v1823
    %v1899 = vpop.f32.mrb[0].mxu0
    %v1900 = vadd.f32 0.0, %v1899
    %v1901 = vpop.f32.mrb[0].mxu0
    %1902 = vmatprep.mubr.f32.mxu0 0.0
    %1903 = vmatmul.mubr.f32.gmra.mrb[0].mxu0 %v1826
    %v1904 = vpop.f32.mrb[0].mxu0
    %v1905 = vadd.f32 0.0, %v1904
    %v1906 = vpop.f32.mrb[0].mxu0
    %1907 = vdwg.mxu0
    %v1908 = vadd.f32 %v1727, %v1895
    %v1909 = vadd.f32 %v1728, %v1900
    %v1910 = vadd.f32 %v1729, %v1905
    %s1911 = scalar_lea.vmem %s3, 216
    %v1912 = vld [vmem:[%s1911] sm:$0xff]
    %v1913 = vld [vmem:[%s1911 + $0x8] sm:$0xff]
    %v1914 = vld [vmem:[%s1911 + $0x10] sm:$0x3]
    %1915 = vmatprep.subr.mxu0 0.0
    %1916 = vmatpush1.msra.mxu0 %v273
    %1917 = vmatprep.subr.mxu0 0.0
    %1918 = vmatpush1.msra.mxu0 %v274
    %1919 = vmatprep.subr.mxu0 0.0
    %1920 = vmatpush1.msra.mxu0 %v275
    %1921 = vmatprep.subr.mxu0 0.0
    %1922 = vmatpush1.msra.mxu0 %v276
    %1923 = vmatprep.subr.mxu0 0.0
    %1924 = vmatpush1.msra.mxu0 %v277
    %1925 = vmatprep.subr.mxu0 0.0
    %1926 = vmatpush1.msra.mxu0 %v278
    %1927 = vmatprep.subr.mxu0 0.0
    %1928 = vmatpush1.msra.mxu0 %v279
    %1929 = vmatprep.subr.mxu0 0.0
    %1930 = vmatpush1.msra.mxu0 %v280
    %1931 = vmatprep.subr.mxu0 0.0
    %1932 = vmatpush1.msra.mxu0 %v281
    %1933 = vmatprep.subr.mxu0 0.0
    %1934 = vmatpush1.msra.mxu0 %v282
    %1935 = vmatprep.subr.mxu0 0.0
    %1936 = vmatpush1.msra.mxu0 %v283
    %1937 = vmatprep.subr.mxu0 0.0
    %1938 = vmatpush1.msra.mxu0 %v284
    %1939 = vmatprep.subr.mxu0 0.0
    %1940 = vmatpush1.msra.mxu0 %v285
    %1941 = vmatprep.subr.mxu0 0.0
    %1942 = vmatpush1.msra.mxu0 %v286
    %1943 = vmatprep.subr.mxu0 0.0
    %1944 = vmatpush1.msra.mxu0 %v287
    %1945 = vmatprep.subr.mxu0 0.0
    %1946 = vmatpush1.msra.mxu0 %v288
    %1947 = vmatprep.subr.mxu0 0.0
    %1948 = vmatpush1.msra.mxu0 0.0
    %1949 = vmatprep.subr.mxu0 0.0
    %1950 = vmatpush1.msra.mxu0 0.0
    %1951 = vmatprep.subr.mxu0 0.0
    %1952 = vmatpush1.msra.mxu0 0.0
    %1953 = vmatprep.subr.mxu0 0.0
    %1954 = vmatpush1.msra.mxu0 0.0
    %1955 = vmatprep.subr.mxu0 0.0
    %1956 = vmatpush1.msra.mxu0 0.0
    %1957 = vmatprep.subr.mxu0 0.0
    %1958 = vmatpush1.msra.mxu0 0.0
    %1959 = vmatprep.subr.mxu0 0.0
    %1960 = vmatpush1.msra.mxu0 0.0
    %1961 = vmatprep.subr.mxu0 0.0
    %1962 = vmatpush1.msra.mxu0 0.0
    %1963 = vmatprep.subr.mxu0 0.0
    %1964 = vmatpush1.msra.mxu0 0.0
    %1965 = vmatprep.subr.mxu0 0.0
    %1966 = vmatpush1.msra.mxu0 0.0
    %1967 = vmatprep.subr.mxu0 0.0
    %1968 = vmatpush1.msra.mxu0 0.0
    %1969 = vmatprep.subr.mxu0 0.0
    %1970 = vmatpush1.msra.mxu0 0.0
    %1971 = vmatprep.subr.mxu0 0.0
    %1972 = vmatpush1.msra.mxu0 0.0
    %1973 = vmatprep.subr.mxu0 0.0
    %1974 = vmatpush1.msra.mxu0 0.0
    %1975 = vmatprep.subr.mxu0 0.0
    %1976 = vmatpush1.msra.mxu0 0.0
    %1977 = vmatprep.subr.mxu0 0.0
    %1978 = vmatpush1.msra.mxu0 0.0
    %1979 = vmatprep.mubr.f32.mxu0 0.0
    %1980 = vmatmul.mubr.f32.gmra.mrb[0].mxu0 %v1912
    %v1981 = vpop.f32.mrb[0].mxu0
    %v1982 = vadd.f32 0.0, %v1981
    %v1983 = vpop.f32.mrb[0].mxu0
    %1984 = vmatprep.mubr.f32.mxu0 0.0
    %1985 = vmatmul.mubr.f32.gmra.mrb[0].mxu0 %v1913
    %v1986 = vpop.f32.mrb[0].mxu0
    %v1987 = vadd.f32 0.0, %v1986
    %v1988 = vpop.f32.mrb[0].mxu0
    %1989 = vmatprep.mubr.f32.mxu0 0.0
    %1990 = vmatmul.mubr.f32.gmra.mrb[0].mxu0 %v1914
    %v1991 = vpop.f32.mrb[0].mxu0
    %v1992 = vadd.f32 0.0, %v1991
    %v1993 = vpop.f32.mrb[0].mxu0
    %1994 = vdwg.mxu0
    %s1995 = scalar_lea.vmem %s4, 288
    %v1996 = vld [vmem:[%s1995] sm:$0xff]
    %v1997 = vld [vmem:[%s1995 + $0x8] sm:$0xff]
    %v1998 = vld [vmem:[%s1995 + $0x10] sm:$0xff]
    %v1999 = vld [vmem:[%s1995 + $0x18] sm:$0xff]
    %v2001 = vsel %vm465, %v1982, 0
    %v2004 = vsel %vm465, %v1987, 0
    %v2007 = vsel %vm465, %v1992, 0
    %2009 = vmatprep.subr.mxu0 0.0
    %2010 = vmatpush1.msra.mxu0 %v1996
    %2011 = vmatprep.subr.mxu0 0.0
    %2012 = vmatpush1.msra.mxu0 %v1997
    %2013 = vmatprep.subr.mxu0 0.0
    %2014 = vmatpush1.msra.mxu0 %v1998
    %2015 = vmatprep.subr.mxu0 0.0
    %2016 = vmatpush1.msra.mxu0 %v1999
    %2017 = vmatprep.subr.mxu0 0.0
    %2018 = vmatpush1.msra.mxu0 0.0
    %2019 = vmatprep.subr.mxu0 0.0
    %2020 = vmatpush1.msra.mxu0 0.0
    %2021 = vmatprep.subr.mxu0 0.0
    %2022 = vmatpush1.msra.mxu0 0.0
    %2023 = vmatprep.subr.mxu0 0.0
    %2024 = vmatpush1.msra.mxu0 0.0
    %2025 = vmatprep.subr.mxu0 0.0
    %2026 = vmatpush1.msra.mxu0 0.0
    %2027 = vmatprep.subr.mxu0 0.0
    %2028 = vmatpush1.msra.mxu0 0.0
    %2029 = vmatprep.subr.mxu0 0.0
    %2030 = vmatpush1.msra.mxu0 0.0
    %2031 = vmatprep.subr.mxu0 0.0
    %2032 = vmatpush1.msra.mxu0 0.0
    %2033 = vmatprep.subr.mxu0 0.0
    %2034 = vmatpush1.msra.mxu0 0.0
    %2035 = vmatprep.subr.mxu0 0.0
    %2036 = vmatpush1.msra.mxu0 0.0
    %2037 = vmatprep.subr.mxu0 0.0
    %2038 = vmatpush1.msra.mxu0 0.0
    %2039 = vmatprep.subr.mxu0 0.0
    %2040 = vmatpush1.msra.mxu0 0.0
    %2041 = vmatprep.subr.mxu0 0.0
    %2042 = vmatpush1.msra.mxu0 0.0
    %2043 = vmatprep.subr.mxu0 0.0
    %2044 = vmatpush1.msra.mxu0 0.0
    %2045 = vmatprep.subr.mxu0 0.0
    %2046 = vmatpush1.msra.mxu0 0.0
    %2047 = vmatprep.subr.mxu0 0.0
    %2048 = vmatpush1.msra.mxu0 0.0
    %2049 = vmatprep.subr.mxu0 0.0
    %2050 = vmatpush1.msra.mxu0 0.0
    %2051 = vmatprep.subr.mxu0 0.0
    %2052 = vmatpush1.msra.mxu0 0.0
    %2053 = vmatprep.subr.mxu0 0.0
    %2054 = vmatpush1.msra.mxu0 0.0
    %2055 = vmatprep.subr.mxu0 0.0
    %2056 = vmatpush1.msra.mxu0 0.0
    %2057 = vmatprep.subr.mxu0 0.0
    %2058 = vmatpush1.msra.mxu0 0.0
    %2059 = vmatprep.subr.mxu0 0.0
    %2060 = vmatpush1.msra.mxu0 0.0
    %2061 = vmatprep.subr.mxu0 0.0
    %2062 = vmatpush1.msra.mxu0 0.0
    %2063 = vmatprep.subr.mxu0 0.0
    %2064 = vmatpush1.msra.mxu0 0.0
    %2065 = vmatprep.subr.mxu0 0.0
    %2066 = vmatpush1.msra.mxu0 0.0
    %2067 = vmatprep.subr.mxu0 0.0
    %2068 = vmatpush1.msra.mxu0 0.0
    %2069 = vmatprep.subr.mxu0 0.0
    %2070 = vmatpush1.msra.mxu0 0.0
    %2071 = vmatprep.subr.mxu0 0.0
    %2072 = vmatpush1.msra.mxu0 0.0
    %2073 = vmatprep.mubr.f32.mxu0 0.0
    %2074 = vmatmul.mubr.f32.gmra.mrb[0].mxu0 %v2001
    %v2075 = vpop.f32.mrb[0].mxu0
    %v2076 = vadd.f32 0.0, %v2075
    %v2077 = vpop.f32.mrb[0].mxu0
    %2078 = vmatprep.mubr.f32.mxu0 0.0
    %2079 = vmatmul.mubr.f32.gmra.mrb[0].mxu0 %v2004
    %v2080 = vpop.f32.mrb[0].mxu0
    %v2081 = vadd.f32 0.0, %v2080
    %v2082 = vpop.f32.mrb[0].mxu0
    %2083 = vmatprep.mubr.f32.mxu0 0.0
    %2084 = vmatmul.mubr.f32.gmra.mrb[0].mxu0 %v2007
    %v2085 = vpop.f32.mrb[0].mxu0
    %v2086 = vadd.f32 0.0, %v2085
    %v2087 = vpop.f32.mrb[0].mxu0
    %2088 = vdwg.mxu0
    %v2089 = vadd.f32 %v1908, %v2076
    %v2090 = vadd.f32 %v1909, %v2081
    %v2091 = vadd.f32 %v1910, %v2086
    %s2092 = scalar_lea.vmem %s3, 240
    %v2093 = vld [vmem:[%s2092] sm:$0xff]
    %v2094 = vld [vmem:[%s2092 + $0x8] sm:$0xff]
    %v2095 = vld [vmem:[%s2092 + $0x10] sm:$0x3]
    %2096 = vmatprep.subr.mxu0 0.0
    %2097 = vmatpush1.msra.mxu0 %v273
    %2098 = vmatprep.subr.mxu0 0.0
    %2099 = vmatpush1.msra.mxu0 %v274
    %2100 = vmatprep.subr.mxu0 0.0
    %2101 = vmatpush1.msra.mxu0 %v275
    %2102 = vmatprep.subr.mxu0 0.0
    %2103 = vmatpush1.msra.mxu0 %v276
    %2104 = vmatprep.subr.mxu0 0.0
    %2105 = vmatpush1.msra.mxu0 %v277
    %2106 = vmatprep.subr.mxu0 0.0
    %2107 = vmatpush1.msra.mxu0 %v278
    %2108 = vmatprep.subr.mxu0 0.0
    %2109 = vmatpush1.msra.mxu0 %v279
    %2110 = vmatprep.subr.mxu0 0.0
    %2111 = vmatpush1.msra.mxu0 %v280
    %2112 = vmatprep.subr.mxu0 0.0
    %2113 = vmatpush1.msra.mxu0 %v281
    %2114 = vmatprep.subr.mxu0 0.0
    %2115 = vmatpush1.msra.mxu0 %v282
    %2116 = vmatprep.subr.mxu0 0.0
    %2117 = vmatpush1.msra.mxu0 %v283
    %2118 = vmatprep.subr.mxu0 0.0
    %2119 = vmatpush1.msra.mxu0 %v284
    %2120 = vmatprep.subr.mxu0 0.0
    %2121 = vmatpush1.msra.mxu0 %v285
    %2122 = vmatprep.subr.mxu0 0.0
    %2123 = vmatpush1.msra.mxu0 %v286
    %2124 = vmatprep.subr.mxu0 0.0
    %2125 = vmatpush1.msra.mxu0 %v287
    %2126 = vmatprep.subr.mxu0 0.0
    %2127 = vmatpush1.msra.mxu0 %v288
    %2128 = vmatprep.subr.mxu0 0.0
    %2129 = vmatpush1.msra.mxu0 0.0
    %2130 = vmatprep.subr.mxu0 0.0
    %2131 = vmatpush1.msra.mxu0 0.0
    %2132 = vmatprep.subr.mxu0 0.0
    %2133 = vmatpush1.msra.mxu0 0.0
    %2134 = vmatprep.subr.mxu0 0.0
    %2135 = vmatpush1.msra.mxu0 0.0
    %2136 = vmatprep.subr.mxu0 0.0
    %2137 = vmatpush1.msra.mxu0 0.0
    %2138 = vmatprep.subr.mxu0 0.0
    %2139 = vmatpush1.msra.mxu0 0.0
    %2140 = vmatprep.subr.mxu0 0.0
    %2141 = vmatpush1.msra.mxu0 0.0
    %2142 = vmatprep.subr.mxu0 0.0
    %2143 = vmatpush1.msra.mxu0 0.0
    %2144 = vmatprep.subr.mxu0 0.0
    %2145 = vmatpush1.msra.mxu0 0.0
    %2146 = vmatprep.subr.mxu0 0.0
    %2147 = vmatpush1.msra.mxu0 0.0
    %2148 = vmatprep.subr.mxu0 0.0
    %2149 = vmatpush1.msra.mxu0 0.0
    %2150 = vmatprep.subr.mxu0 0.0
    %2151 = vmatpush1.msra.mxu0 0.0
    %2152 = vmatprep.subr.mxu0 0.0
    %2153 = vmatpush1.msra.mxu0 0.0
    %2154 = vmatprep.subr.mxu0 0.0
    %2155 = vmatpush1.msra.mxu0 0.0
    %2156 = vmatprep.subr.mxu0 0.0
    %2157 = vmatpush1.msra.mxu0 0.0
    %2158 = vmatprep.subr.mxu0 0.0
    %2159 = vmatpush1.msra.mxu0 0.0
    %2160 = vmatprep.mubr.f32.mxu0 0.0
    %2161 = vmatmul.mubr.f32.gmra.mrb[0].mxu0 %v2093
    %v2162 = vpop.f32.mrb[0].mxu0
    %v2163 = vadd.f32 0.0, %v2162
    %v2164 = vpop.f32.mrb[0].mxu0
    %2165 = vmatprep.mubr.f32.mxu0 0.0
    %2166 = vmatmul.mubr.f32.gmra.mrb[0].mxu0 %v2094
    %v2167 = vpop.f32.mrb[0].mxu0
    %v2168 = vadd.f32 0.0, %v2167
    %v2169 = vpop.f32.mrb[0].mxu0
    %2170 = vmatprep.mubr.f32.mxu0 0.0
    %2171 = vmatmul.mubr.f32.gmra.mrb[0].mxu0 %v2095
    %v2172 = vpop.f32.mrb[0].mxu0
    %v2173 = vadd.f32 0.0, %v2172
    %v2174 = vpop.f32.mrb[0].mxu0
    %2175 = vdwg.mxu0
    %s2176 = scalar_lea.vmem %s4, 320
    %v2177 = vld [vmem:[%s2176] sm:$0xff]
    %v2178 = vld [vmem:[%s2176 + $0x8] sm:$0xff]
    %v2179 = vld [vmem:[%s2176 + $0x10] sm:$0xff]
    %v2180 = vld [vmem:[%s2176 + $0x18] sm:$0xff]
    %v2182 = vsel %vm465, %v2163, 0
    %v2185 = vsel %vm465, %v2168, 0
    %v2188 = vsel %vm465, %v2173, 0
    %2190 = vmatprep.subr.mxu0 0.0
    %2191 = vmatpush1.msra.mxu0 %v2177
    %2192 = vmatprep.subr.mxu0 0.0
    %2193 = vmatpush1.msra.mxu0 %v2178
    %2194 = vmatprep.subr.mxu0 0.0
    %2195 = vmatpush1.msra.mxu0 %v2179
    %2196 = vmatprep.subr.mxu0 0.0
    %2197 = vmatpush1.msra.mxu0 %v2180
    %2198 = vmatprep.subr.mxu0 0.0
    %2199 = vmatpush1.msra.mxu0 0.0
    %2200 = vmatprep.subr.mxu0 0.0
    %2201 = vmatpush1.msra.mxu0 0.0
    %2202 = vmatprep.subr.mxu0 0.0
    %2203 = vmatpush1.msra.mxu0 0.0
    %2204 = vmatprep.subr.mxu0 0.0
    %2205 = vmatpush1.msra.mxu0 0.0
    %2206 = vmatprep.subr.mxu0 0.0
    %2207 = vmatpush1.msra.mxu0 0.0
    %2208 = vmatprep.subr.mxu0 0.0
    %2209 = vmatpush1.msra.mxu0 0.0
    %2210 = vmatprep.subr.mxu0 0.0
    %2211 = vmatpush1.msra.mxu0 0.0
    %2212 = vmatprep.subr.mxu0 0.0
    %2213 = vmatpush1.msra.mxu0 0.0
    %2214 = vmatprep.subr.mxu0 0.0
    %2215 = vmatpush1.msra.mxu0 0.0
    %2216 = vmatprep.subr.mxu0 0.0
    %2217 = vmatpush1.msra.mxu0 0.0
    %2218 = vmatprep.subr.mxu0 0.0
    %2219 = vmatpush1.msra.mxu0 0.0
    %2220 = vmatprep.subr.mxu0 0.0
    %2221 = vmatpush1.msra.mxu0 0.0
    %2222 = vmatprep.subr.mxu0 0.0
    %2223 = vmatpush1.msra.mxu0 0.0
    %2224 = vmatprep.subr.mxu0 0.0
    %2225 = vmatpush1.msra.mxu0 0.0
    %2226 = vmatprep.subr.mxu0 0.0
    %2227 = vmatpush1.msra.mxu0 0.0
    %2228 = vmatprep.subr.mxu0 0.0
    %2229 = vmatpush1.msra.mxu0 0.0
    %2230 = vmatprep.subr.mxu0 0.0
    %2231 = vmatpush1.msra.mxu0 0.0
    %2232 = vmatprep.subr.mxu0 0.0
    %2233 = vmatpush1.msra.mxu0 0.0
    %2234 = vmatprep.subr.mxu0 0.0
    %2235 = vmatpush1.msra.mxu0 0.0
    %2236 = vmatprep.subr.mxu0 0.0
    %2237 = vmatpush1.msra.mxu0 0.0
    %2238 = vmatprep.subr.mxu0 0.0
    %2239 = vmatpush1.msra.mxu0 0.0
    %2240 = vmatprep.subr.mxu0 0.0
    %2241 = vmatpush1.msra.mxu0 0.0
    %2242 = vmatprep.subr.mxu0 0.0
    %2243 = vmatpush1.msra.mxu0 0.0
    %2244 = vmatprep.subr.mxu0 0.0
    %2245 = vmatpush1.msra.mxu0 0.0
    %2246 = vmatprep.subr.mxu0 0.0
    %2247 = vmatpush1.msra.mxu0 0.0
    %2248 = vmatprep.subr.mxu0 0.0
    %2249 = vmatpush1.msra.mxu0 0.0
    %2250 = vmatprep.subr.mxu0 0.0
    %2251 = vmatpush1.msra.mxu0 0.0
    %2252 = vmatprep.subr.mxu0 0.0
    %2253 = vmatpush1.msra.mxu0 0.0
    %2254 = vmatprep.mubr.f32.mxu0 0.0
    %2255 = vmatmul.mubr.f32.gmra.mrb[0].mxu0 %v2182
    %v2256 = vpop.f32.mrb[0].mxu0
    %v2257 = vadd.f32 0.0, %v2256
    %v2258 = vpop.f32.mrb[0].mxu0
    %2259 = vmatprep.mubr.f32.mxu0 0.0
    %2260 = vmatmul.mubr.f32.gmra.mrb[0].mxu0 %v2185
    %v2261 = vpop.f32.mrb[0].mxu0
    %v2262 = vadd.f32 0.0, %v2261
    %v2263 = vpop.f32.mrb[0].mxu0
    %2264 = vmatprep.mubr.f32.mxu0 0.0
    %2265 = vmatmul.mubr.f32.gmra.mrb[0].mxu0 %v2188
    %v2266 = vpop.f32.mrb[0].mxu0
    %v2267 = vadd.f32 0.0, %v2266
    %v2268 = vpop.f32.mrb[0].mxu0
    %2269 = vdwg.mxu0
    %v2270 = vadd.f32 %v2089, %v2257
    %v2271 = vadd.f32 %v2090, %v2262
    %v2272 = vadd.f32 %v2091, %v2267
    %s2273 = scalar_lea.vmem %s3, 264
    %v2274 = vld [vmem:[%s2273] sm:$0xff]
    %v2275 = vld [vmem:[%s2273 + $0x8] sm:$0xff]
    %v2276 = vld [vmem:[%s2273 + $0x10] sm:$0x3]
    %2277 = vmatprep.subr.mxu0 0.0
    %2278 = vmatpush1.msra.mxu0 %v273
    %2279 = vmatprep.subr.mxu0 0.0
    %2280 = vmatpush1.msra.mxu0 %v274
    %2281 = vmatprep.subr.mxu0 0.0
    %2282 = vmatpush1.msra.mxu0 %v275
    %2283 = vmatprep.subr.mxu0 0.0
    %2284 = vmatpush1.msra.mxu0 %v276
    %2285 = vmatprep.subr.mxu0 0.0
    %2286 = vmatpush1.msra.mxu0 %v277
    %2287 = vmatprep.subr.mxu0 0.0
    %2288 = vmatpush1.msra.mxu0 %v278
    %2289 = vmatprep.subr.mxu0 0.0
    %2290 = vmatpush1.msra.mxu0 %v279
    %2291 = vmatprep.subr.mxu0 0.0
    %2292 = vmatpush1.msra.mxu0 %v280
    %2293 = vmatprep.subr.mxu0 0.0
    %2294 = vmatpush1.msra.mxu0 %v281
    %2295 = vmatprep.subr.mxu0 0.0
    %2296 = vmatpush1.msra.mxu0 %v282
    %2297 = vmatprep.subr.mxu0 0.0
    %2298 = vmatpush1.msra.mxu0 %v283
    %2299 = vmatprep.subr.mxu0 0.0
    %2300 = vmatpush1.msra.mxu0 %v284
    %2301 = vmatprep.subr.mxu0 0.0
    %2302 = vmatpush1.msra.mxu0 %v285
    %2303 = vmatprep.subr.mxu0 0.0
    %2304 = vmatpush1.msra.mxu0 %v286
    %2305 = vmatprep.subr.mxu0 0.0
    %2306 = vmatpush1.msra.mxu0 %v287
    %2307 = vmatprep.subr.mxu0 0.0
    %2308 = vmatpush1.msra.mxu0 %v288
    %2309 = vmatprep.subr.mxu0 0.0
    %2310 = vmatpush1.msra.mxu0 0.0
    %2311 = vmatprep.subr.mxu0 0.0
    %2312 = vmatpush1.msra.mxu0 0.0
    %2313 = vmatprep.subr.mxu0 0.0
    %2314 = vmatpush1.msra.mxu0 0.0
    %2315 = vmatprep.subr.mxu0 0.0
    %2316 = vmatpush1.msra.mxu0 0.0
    %2317 = vmatprep.subr.mxu0 0.0
    %2318 = vmatpush1.msra.mxu0 0.0
    %2319 = vmatprep.subr.mxu0 0.0
    %2320 = vmatpush1.msra.mxu0 0.0
    %2321 = vmatprep.subr.mxu0 0.0
    %2322 = vmatpush1.msra.mxu0 0.0
    %2323 = vmatprep.subr.mxu0 0.0
    %2324 = vmatpush1.msra.mxu0 0.0
    %2325 = vmatprep.subr.mxu0 0.0
    %2326 = vmatpush1.msra.mxu0 0.0
    %2327 = vmatprep.subr.mxu0 0.0
    %2328 = vmatpush1.msra.mxu0 0.0
    %2329 = vmatprep.subr.mxu0 0.0
    %2330 = vmatpush1.msra.mxu0 0.0
    %2331 = vmatprep.subr.mxu0 0.0
    %2332 = vmatpush1.msra.mxu0 0.0
    %2333 = vmatprep.subr.mxu0 0.0
    %2334 = vmatpush1.msra.mxu0 0.0
    %2335 = vmatprep.subr.mxu0 0.0
    %2336 = vmatpush1.msra.mxu0 0.0
    %2337 = vmatprep.subr.mxu0 0.0
    %2338 = vmatpush1.msra.mxu0 0.0
    %2339 = vmatprep.subr.mxu0 0.0
    %2340 = vmatpush1.msra.mxu0 0.0
    %2341 = vmatprep.mubr.f32.mxu0 0.0
    %2342 = vmatmul.mubr.f32.gmra.mrb[0].mxu0 %v2274
    %v2343 = vpop.f32.mrb[0].mxu0
    %v2344 = vadd.f32 0.0, %v2343
    %v2345 = vpop.f32.mrb[0].mxu0
    %2346 = vmatprep.mubr.f32.mxu0 0.0
    %2347 = vmatmul.mubr.f32.gmra.mrb[0].mxu0 %v2275
    %v2348 = vpop.f32.mrb[0].mxu0
    %v2349 = vadd.f32 0.0, %v2348
    %v2350 = vpop.f32.mrb[0].mxu0
    %2351 = vmatprep.mubr.f32.mxu0 0.0
    %2352 = vmatmul.mubr.f32.gmra.mrb[0].mxu0 %v2276
    %v2353 = vpop.f32.mrb[0].mxu0
    %v2354 = vadd.f32 0.0, %v2353
    %v2355 = vpop.f32.mrb[0].mxu0
    %2356 = vdwg.mxu0
    %s2357 = scalar_lea.vmem %s4, 352
    %v2358 = vld [vmem:[%s2357] sm:$0xff]
    %v2359 = vld [vmem:[%s2357 + $0x8] sm:$0xff]
    %v2360 = vld [vmem:[%s2357 + $0x10] sm:$0xff]
    %v2361 = vld [vmem:[%s2357 + $0x18] sm:$0xff]
    %v2363 = vsel %vm465, %v2344, 0
    %v2366 = vsel %vm465, %v2349, 0
    %v2369 = vsel %vm465, %v2354, 0
    %2371 = vmatprep.subr.mxu0 0.0
    %2372 = vmatpush1.msra.mxu0 %v2358
    %2373 = vmatprep.subr.mxu0 0.0
    %2374 = vmatpush1.msra.mxu0 %v2359
    %2375 = vmatprep.subr.mxu0 0.0
    %2376 = vmatpush1.msra.mxu0 %v2360
    %2377 = vmatprep.subr.mxu0 0.0
    %2378 = vmatpush1.msra.mxu0 %v2361
    %2379 = vmatprep.subr.mxu0 0.0
    %2380 = vmatpush1.msra.mxu0 0.0
    %2381 = vmatprep.subr.mxu0 0.0
    %2382 = vmatpush1.msra.mxu0 0.0
    %2383 = vmatprep.subr.mxu0 0.0
    %2384 = vmatpush1.msra.mxu0 0.0
    %2385 = vmatprep.subr.mxu0 0.0
    %2386 = vmatpush1.msra.mxu0 0.0
    %2387 = vmatprep.subr.mxu0 0.0
    %2388 = vmatpush1.msra.mxu0 0.0
    %2389 = vmatprep.subr.mxu0 0.0
    %2390 = vmatpush1.msra.mxu0 0.0
    %2391 = vmatprep.subr.mxu0 0.0
    %2392 = vmatpush1.msra.mxu0 0.0
    %2393 = vmatprep.subr.mxu0 0.0
    %2394 = vmatpush1.msra.mxu0 0.0
    %2395 = vmatprep.subr.mxu0 0.0
    %2396 = vmatpush1.msra.mxu0 0.0
    %2397 = vmatprep.subr.mxu0 0.0
    %2398 = vmatpush1.msra.mxu0 0.0
    %2399 = vmatprep.subr.mxu0 0.0
    %2400 = vmatpush1.msra.mxu0 0.0
    %2401 = vmatprep.subr.mxu0 0.0
    %2402 = vmatpush1.msra.mxu0 0.0
    %2403 = vmatprep.subr.mxu0 0.0
    %2404 = vmatpush1.msra.mxu0 0.0
    %2405 = vmatprep.subr.mxu0 0.0
    %2406 = vmatpush1.msra.mxu0 0.0
    %2407 = vmatprep.subr.mxu0 0.0
    %2408 = vmatpush1.msra.mxu0 0.0
    %2409 = vmatprep.subr.mxu0 0.0
    %2410 = vmatpush1.msra.mxu0 0.0
    %2411 = vmatprep.subr.mxu0 0.0
    %2412 = vmatpush1.msra.mxu0 0.0
    %2413 = vmatprep.subr.mxu0 0.0
    %2414 = vmatpush1.msra.mxu0 0.0
    %2415 = vmatprep.subr.mxu0 0.0
    %2416 = vmatpush1.msra.mxu0 0.0
    %2417 = vmatprep.subr.mxu0 0.0
    %2418 = vmatpush1.msra.mxu0 0.0
    %2419 = vmatprep.subr.mxu0 0.0
    %2420 = vmatpush1.msra.mxu0 0.0
    %2421 = vmatprep.subr.mxu0 0.0
    %2422 = vmatpush1.msra.mxu0 0.0
    %2423 = vmatprep.subr.mxu0 0.0
    %2424 = vmatpush1.msra.mxu0 0.0
    %2425 = vmatprep.subr.mxu0 0.0
    %2426 = vmatpush1.msra.mxu0 0.0
    %2427 = vmatprep.subr.mxu0 0.0
    %2428 = vmatpush1.msra.mxu0 0.0
    %2429 = vmatprep.subr.mxu0 0.0
    %2430 = vmatpush1.msra.mxu0 0.0
    %2431 = vmatprep.subr.mxu0 0.0
    %2432 = vmatpush1.msra.mxu0 0.0
    %2433 = vmatprep.subr.mxu0 0.0
    %2434 = vmatpush1.msra.mxu0 0.0
    %2435 = vmatprep.mubr.f32.mxu0 0.0
    %2436 = vmatmul.mubr.f32.gmra.mrb[0].mxu0 %v2363
    %v2437 = vpop.f32.mrb[0].mxu0
    %v2438 = vadd.f32 0.0, %v2437
    %v2439 = vpop.f32.mrb[0].mxu0
    %2440 = vmatprep.mubr.f32.mxu0 0.0
    %2441 = vmatmul.mubr.f32.gmra.mrb[0].mxu0 %v2366
    %v2442 = vpop.f32.mrb[0].mxu0
    %v2443 = vadd.f32 0.0, %v2442
    %v2444 = vpop.f32.mrb[0].mxu0
    %2445 = vmatprep.mubr.f32.mxu0 0.0
    %2446 = vmatmul.mubr.f32.gmra.mrb[0].mxu0 %v2369
    %v2447 = vpop.f32.mrb[0].mxu0
    %v2448 = vadd.f32 0.0, %v2447
    %v2449 = vpop.f32.mrb[0].mxu0
    %2450 = vdwg.mxu0
    %v2451 = vadd.f32 %v2270, %v2438
    %v2452 = vadd.f32 %v2271, %v2443
    %v2453 = vadd.f32 %v2272, %v2448
    %s2454 = scalar_lea.vmem %s3, 288
    %v2455 = vld [vmem:[%s2454] sm:$0xff]
    %v2456 = vld [vmem:[%s2454 + $0x8] sm:$0xff]
    %v2457 = vld [vmem:[%s2454 + $0x10] sm:$0x3]
    %2458 = vmatprep.subr.mxu0 0.0
    %2459 = vmatpush1.msra.mxu0 %v273
    %2460 = vmatprep.subr.mxu0 0.0
    %2461 = vmatpush1.msra.mxu0 %v274
    %2462 = vmatprep.subr.mxu0 0.0
    %2463 = vmatpush1.msra.mxu0 %v275
    %2464 = vmatprep.subr.mxu0 0.0
    %2465 = vmatpush1.msra.mxu0 %v276
    %2466 = vmatprep.subr.mxu0 0.0
    %2467 = vmatpush1.msra.mxu0 %v277
    %2468 = vmatprep.subr.mxu0 0.0
    %2469 = vmatpush1.msra.mxu0 %v278
    %2470 = vmatprep.subr.mxu0 0.0
    %2471 = vmatpush1.msra.mxu0 %v279
    %2472 = vmatprep.subr.mxu0 0.0
    %2473 = vmatpush1.msra.mxu0 %v280
    %2474 = vmatprep.subr.mxu0 0.0
    %2475 = vmatpush1.msra.mxu0 %v281
    %2476 = vmatprep.subr.mxu0 0.0
    %2477 = vmatpush1.msra.mxu0 %v282
    %2478 = vmatprep.subr.mxu0 0.0
    %2479 = vmatpush1.msra.mxu0 %v283
    %2480 = vmatprep.subr.mxu0 0.0
    %2481 = vmatpush1.msra.mxu0 %v284
    %2482 = vmatprep.subr.mxu0 0.0
    %2483 = vmatpush1.msra.mxu0 %v285
    %2484 = vmatprep.subr.mxu0 0.0
    %2485 = vmatpush1.msra.mxu0 %v286
    %2486 = vmatprep.subr.mxu0 0.0
    %2487 = vmatpush1.msra.mxu0 %v287
    %2488 = vmatprep.subr.mxu0 0.0
    %2489 = vmatpush1.msra.mxu0 %v288
    %2490 = vmatprep.subr.mxu0 0.0
    %2491 = vmatpush1.msra.mxu0 0.0
    %2492 = vmatprep.subr.mxu0 0.0
    %2493 = vmatpush1.msra.mxu0 0.0
    %2494 = vmatprep.subr.mxu0 0.0
    %2495 = vmatpush1.msra.mxu0 0.0
    %2496 = vmatprep.subr.mxu0 0.0
    %2497 = vmatpush1.msra.mxu0 0.0
    %2498 = vmatprep.subr.mxu0 0.0
    %2499 = vmatpush1.msra.mxu0 0.0
    %2500 = vmatprep.subr.mxu0 0.0
    %2501 = vmatpush1.msra.mxu0 0.0
    %2502 = vmatprep.subr.mxu0 0.0
    %2503 = vmatpush1.msra.mxu0 0.0
    %2504 = vmatprep.subr.mxu0 0.0
    %2505 = vmatpush1.msra.mxu0 0.0
    %2506 = vmatprep.subr.mxu0 0.0
    %2507 = vmatpush1.msra.mxu0 0.0
    %2508 = vmatprep.subr.mxu0 0.0
    %2509 = vmatpush1.msra.mxu0 0.0
    %2510 = vmatprep.subr.mxu0 0.0
    %2511 = vmatpush1.msra.mxu0 0.0
    %2512 = vmatprep.subr.mxu0 0.0
    %2513 = vmatpush1.msra.mxu0 0.0
    %2514 = vmatprep.subr.mxu0 0.0
    %2515 = vmatpush1.msra.mxu0 0.0
    %2516 = vmatprep.subr.mxu0 0.0
    %2517 = vmatpush1.msra.mxu0 0.0
    %2518 = vmatprep.subr.mxu0 0.0
    %2519 = vmatpush1.msra.mxu0 0.0
    %2520 = vmatprep.subr.mxu0 0.0
    %2521 = vmatpush1.msra.mxu0 0.0
    %2522 = vmatprep.mubr.f32.mxu0 0.0
    %2523 = vmatmul.mubr.f32.gmra.mrb[0].mxu0 %v2455
    %v2524 = vpop.f32.mrb[0].mxu0
    %v2525 = vadd.f32 0.0, %v2524
    %v2526 = vpop.f32.mrb[0].mxu0
    %2527 = vmatprep.mubr.f32.mxu0 0.0
    %2528 = vmatmul.mubr.f32.gmra.mrb[0].mxu0 %v2456
    %v2529 = vpop.f32.mrb[0].mxu0
    %v2530 = vadd.f32 0.0, %v2529
    %v2531 = vpop.f32.mrb[0].mxu0
    %2532 = vmatprep.mubr.f32.mxu0 0.0
    %2533 = vmatmul.mubr.f32.gmra.mrb[0].mxu0 %v2457
    %v2534 = vpop.f32.mrb[0].mxu0
    %v2535 = vadd.f32 0.0, %v2534
    %v2536 = vpop.f32.mrb[0].mxu0
    %2537 = vdwg.mxu0
    %s2538 = scalar_lea.vmem %s4, 384
    %v2539 = vld [vmem:[%s2538] sm:$0xff]
    %v2540 = vld [vmem:[%s2538 + $0x8] sm:$0xff]
    %v2541 = vld [vmem:[%s2538 + $0x10] sm:$0xff]
    %v2542 = vld [vmem:[%s2538 + $0x18] sm:$0xff]
    %v2544 = vsel %vm465, %v2525, 0
    %v2547 = vsel %vm465, %v2530, 0
    %v2550 = vsel %vm465, %v2535, 0
    %2552 = vmatprep.subr.mxu0 0.0
    %2553 = vmatpush1.msra.mxu0 %v2539
    %2554 = vmatprep.subr.mxu0 0.0
    %2555 = vmatpush1.msra.mxu0 %v2540
    %2556 = vmatprep.subr.mxu0 0.0
    %2557 = vmatpush1.msra.mxu0 %v2541
    %2558 = vmatprep.subr.mxu0 0.0
    %2559 = vmatpush1.msra.mxu0 %v2542
    %2560 = vmatprep.subr.mxu0 0.0
    %2561 = vmatpush1.msra.mxu0 0.0
    %2562 = vmatprep.subr.mxu0 0.0
    %2563 = vmatpush1.msra.mxu0 0.0
    %2564 = vmatprep.subr.mxu0 0.0
    %2565 = vmatpush1.msra.mxu0 0.0
    %2566 = vmatprep.subr.mxu0 0.0
    %2567 = vmatpush1.msra.mxu0 0.0
    %2568 = vmatprep.subr.mxu0 0.0
    %2569 = vmatpush1.msra.mxu0 0.0
    %2570 = vmatprep.subr.mxu0 0.0
    %2571 = vmatpush1.msra.mxu0 0.0
    %2572 = vmatprep.subr.mxu0 0.0
    %2573 = vmatpush1.msra.mxu0 0.0
    %2574 = vmatprep.subr.mxu0 0.0
    %2575 = vmatpush1.msra.mxu0 0.0
    %2576 = vmatprep.subr.mxu0 0.0
    %2577 = vmatpush1.msra.mxu0 0.0
    %2578 = vmatprep.subr.mxu0 0.0
    %2579 = vmatpush1.msra.mxu0 0.0
    %2580 = vmatprep.subr.mxu0 0.0
    %2581 = vmatpush1.msra.mxu0 0.0
    %2582 = vmatprep.subr.mxu0 0.0
    %2583 = vmatpush1.msra.mxu0 0.0
    %2584 = vmatprep.subr.mxu0 0.0
    %2585 = vmatpush1.msra.mxu0 0.0
    %2586 = vmatprep.subr.mxu0 0.0
    %2587 = vmatpush1.msra.mxu0 0.0
    %2588 = vmatprep.subr.mxu0 0.0
    %2589 = vmatpush1.msra.mxu0 0.0
    %2590 = vmatprep.subr.mxu0 0.0
    %2591 = vmatpush1.msra.mxu0 0.0
    %2592 = vmatprep.subr.mxu0 0.0
    %2593 = vmatpush1.msra.mxu0 0.0
    %2594 = vmatprep.subr.mxu0 0.0
    %2595 = vmatpush1.msra.mxu0 0.0
    %2596 = vmatprep.subr.mxu0 0.0
    %2597 = vmatpush1.msra.mxu0 0.0
    %2598 = vmatprep.subr.mxu0 0.0
    %2599 = vmatpush1.msra.mxu0 0.0
    %2600 = vmatprep.subr.mxu0 0.0
    %2601 = vmatpush1.msra.mxu0 0.0
    %2602 = vmatprep.subr.mxu0 0.0
    %2603 = vmatpush1.msra.mxu0 0.0
    %2604 = vmatprep.subr.mxu0 0.0
    %2605 = vmatpush1.msra.mxu0 0.0
    %2606 = vmatprep.subr.mxu0 0.0
    %2607 = vmatpush1.msra.mxu0 0.0
    %2608 = vmatprep.subr.mxu0 0.0
    %2609 = vmatpush1.msra.mxu0 0.0
    %2610 = vmatprep.subr.mxu0 0.0
    %2611 = vmatpush1.msra.mxu0 0.0
    %2612 = vmatprep.subr.mxu0 0.0
    %2613 = vmatpush1.msra.mxu0 0.0
    %2614 = vmatprep.subr.mxu0 0.0
    %2615 = vmatpush1.msra.mxu0 0.0
    %2616 = vmatprep.mubr.f32.mxu0 0.0
    %2617 = vmatmul.mubr.f32.gmra.mrb[0].mxu0 %v2544
    %v2618 = vpop.f32.mrb[0].mxu0
    %v2619 = vadd.f32 0.0, %v2618
    %v2620 = vpop.f32.mrb[0].mxu0
    %2621 = vmatprep.mubr.f32.mxu0 0.0
    %2622 = vmatmul.mubr.f32.gmra.mrb[0].mxu0 %v2547
    %v2623 = vpop.f32.mrb[0].mxu0
    %v2624 = vadd.f32 0.0, %v2623
    %v2625 = vpop.f32.mrb[0].mxu0
    %2626 = vmatprep.mubr.f32.mxu0 0.0
    %2627 = vmatmul.mubr.f32.gmra.mrb[0].mxu0 %v2550
    %v2628 = vpop.f32.mrb[0].mxu0
    %v2629 = vadd.f32 0.0, %v2628
    %v2630 = vpop.f32.mrb[0].mxu0
    %2631 = vdwg.mxu0
    %v2632 = vadd.f32 %v2451, %v2619
    %v2633 = vadd.f32 %v2452, %v2624
    %v2634 = vadd.f32 %v2453, %v2629
    %s2635 = scalar_lea.vmem %s3, 312
    %v2636 = vld [vmem:[%s2635] sm:$0xff]
    %v2637 = vld [vmem:[%s2635 + $0x8] sm:$0xff]
    %v2638 = vld [vmem:[%s2635 + $0x10] sm:$0x3]
    %2639 = vmatprep.subr.mxu0 0.0
    %2640 = vmatpush1.msra.mxu0 %v273
    %2641 = vmatprep.subr.mxu0 0.0
    %2642 = vmatpush1.msra.mxu0 %v274
    %2643 = vmatprep.subr.mxu0 0.0
    %2644 = vmatpush1.msra.mxu0 %v275
    %2645 = vmatprep.subr.mxu0 0.0
    %2646 = vmatpush1.msra.mxu0 %v276
    %2647 = vmatprep.subr.mxu0 0.0
    %2648 = vmatpush1.msra.mxu0 %v277
    %2649 = vmatprep.subr.mxu0 0.0
    %2650 = vmatpush1.msra.mxu0 %v278
    %2651 = vmatprep.subr.mxu0 0.0
    %2652 = vmatpush1.msra.mxu0 %v279
    %2653 = vmatprep.subr.mxu0 0.0
    %2654 = vmatpush1.msra.mxu0 %v280
    %2655 = vmatprep.subr.mxu0 0.0
    %2656 = vmatpush1.msra.mxu0 %v281
    %2657 = vmatprep.subr.mxu0 0.0
    %2658 = vmatpush1.msra.mxu0 %v282
    %2659 = vmatprep.subr.mxu0 0.0
    %2660 = vmatpush1.msra.mxu0 %v283
    %2661 = vmatprep.subr.mxu0 0.0
    %2662 = vmatpush1.msra.mxu0 %v284
    %2663 = vmatprep.subr.mxu0 0.0
    %2664 = vmatpush1.msra.mxu0 %v285
    %2665 = vmatprep.subr.mxu0 0.0
    %2666 = vmatpush1.msra.mxu0 %v286
    %2667 = vmatprep.subr.mxu0 0.0
    %2668 = vmatpush1.msra.mxu0 %v287
    %2669 = vmatprep.subr.mxu0 0.0
    %2670 = vmatpush1.msra.mxu0 %v288
    %2671 = vmatprep.subr.mxu0 0.0
    %2672 = vmatpush1.msra.mxu0 0.0
    %2673 = vmatprep.subr.mxu0 0.0
    %2674 = vmatpush1.msra.mxu0 0.0
    %2675 = vmatprep.subr.mxu0 0.0
    %2676 = vmatpush1.msra.mxu0 0.0
    %2677 = vmatprep.subr.mxu0 0.0
    %2678 = vmatpush1.msra.mxu0 0.0
    %2679 = vmatprep.subr.mxu0 0.0
    %2680 = vmatpush1.msra.mxu0 0.0
    %2681 = vmatprep.subr.mxu0 0.0
    %2682 = vmatpush1.msra.mxu0 0.0
    %2683 = vmatprep.subr.mxu0 0.0
    %2684 = vmatpush1.msra.mxu0 0.0
    %2685 = vmatprep.subr.mxu0 0.0
    %2686 = vmatpush1.msra.mxu0 0.0
    %2687 = vmatprep.subr.mxu0 0.0
    %2688 = vmatpush1.msra.mxu0 0.0
    %2689 = vmatprep.subr.mxu0 0.0
    %2690 = vmatpush1.msra.mxu0 0.0
    %2691 = vmatprep.subr.mxu0 0.0
    %2692 = vmatpush1.msra.mxu0 0.0
    %2693 = vmatprep.subr.mxu0 0.0
    %2694 = vmatpush1.msra.mxu0 0.0
    %2695 = vmatprep.subr.mxu0 0.0
    %2696 = vmatpush1.msra.mxu0 0.0
    %2697 = vmatprep.subr.mxu0 0.0
    %2698 = vmatpush1.msra.mxu0 0.0
    %2699 = vmatprep.subr.mxu0 0.0
    %2700 = vmatpush1.msra.mxu0 0.0
    %2701 = vmatprep.subr.mxu0 0.0
    %2702 = vmatpush1.msra.mxu0 0.0
    %2703 = vmatprep.mubr.f32.mxu0 0.0
    %2704 = vmatmul.mubr.f32.gmra.mrb[0].mxu0 %v2636
    %v2705 = vpop.f32.mrb[0].mxu0
    %v2706 = vadd.f32 0.0, %v2705
    %v2707 = vpop.f32.mrb[0].mxu0
    %2708 = vmatprep.mubr.f32.mxu0 0.0
    %2709 = vmatmul.mubr.f32.gmra.mrb[0].mxu0 %v2637
    %v2710 = vpop.f32.mrb[0].mxu0
    %v2711 = vadd.f32 0.0, %v2710
    %v2712 = vpop.f32.mrb[0].mxu0
    %2713 = vmatprep.mubr.f32.mxu0 0.0
    %2714 = vmatmul.mubr.f32.gmra.mrb[0].mxu0 %v2638
    %v2715 = vpop.f32.mrb[0].mxu0
    %v2716 = vadd.f32 0.0, %v2715
    %v2717 = vpop.f32.mrb[0].mxu0
    %2718 = vdwg.mxu0
    %s2719 = scalar_lea.vmem %s4, 416
    %v2720 = vld [vmem:[%s2719] sm:$0xff]
    %v2721 = vld [vmem:[%s2719 + $0x8] sm:$0xff]
    %v2722 = vld [vmem:[%s2719 + $0x10] sm:$0xff]
    %v2723 = vld [vmem:[%s2719 + $0x18] sm:$0xff]
    %v2725 = vsel %vm465, %v2706, 0
    %v2728 = vsel %vm465, %v2711, 0
    %v2731 = vsel %vm465, %v2716, 0
    %2733 = vmatprep.subr.mxu0 0.0
    %2734 = vmatpush1.msra.mxu0 %v2720
    %2735 = vmatprep.subr.mxu0 0.0
    %2736 = vmatpush1.msra.mxu0 %v2721
    %2737 = vmatprep.subr.mxu0 0.0
    %2738 = vmatpush1.msra.mxu0 %v2722
    %2739 = vmatprep.subr.mxu0 0.0
    %2740 = vmatpush1.msra.mxu0 %v2723
    %2741 = vmatprep.subr.mxu0 0.0
    %2742 = vmatpush1.msra.mxu0 0.0
    %2743 = vmatprep.subr.mxu0 0.0
    %2744 = vmatpush1.msra.mxu0 0.0
    %2745 = vmatprep.subr.mxu0 0.0
    %2746 = vmatpush1.msra.mxu0 0.0
    %2747 = vmatprep.subr.mxu0 0.0
    %2748 = vmatpush1.msra.mxu0 0.0
    %2749 = vmatprep.subr.mxu0 0.0
    %2750 = vmatpush1.msra.mxu0 0.0
    %2751 = vmatprep.subr.mxu0 0.0
    %2752 = vmatpush1.msra.mxu0 0.0
    %2753 = vmatprep.subr.mxu0 0.0
    %2754 = vmatpush1.msra.mxu0 0.0
    %2755 = vmatprep.subr.mxu0 0.0
    %2756 = vmatpush1.msra.mxu0 0.0
    %2757 = vmatprep.subr.mxu0 0.0
    %2758 = vmatpush1.msra.mxu0 0.0
    %2759 = vmatprep.subr.mxu0 0.0
    %2760 = vmatpush1.msra.mxu0 0.0
    %2761 = vmatprep.subr.mxu0 0.0
    %2762 = vmatpush1.msra.mxu0 0.0
    %2763 = vmatprep.subr.mxu0 0.0
    %2764 = vmatpush1.msra.mxu0 0.0
    %2765 = vmatprep.subr.mxu0 0.0
    %2766 = vmatpush1.msra.mxu0 0.0
    %2767 = vmatprep.subr.mxu0 0.0
    %2768 = vmatpush1.msra.mxu0 0.0
    %2769 = vmatprep.subr.mxu0 0.0
    %2770 = vmatpush1.msra.mxu0 0.0
    %2771 = vmatprep.subr.mxu0 0.0
    %2772 = vmatpush1.msra.mxu0 0.0
    %2773 = vmatprep.subr.mxu0 0.0
    %2774 = vmatpush1.msra.mxu0 0.0
    %2775 = vmatprep.subr.mxu0 0.0
    %2776 = vmatpush1.msra.mxu0 0.0
    %2777 = vmatprep.subr.mxu0 0.0
    %2778 = vmatpush1.msra.mxu0 0.0
    %2779 = vmatprep.subr.mxu0 0.0
    %2780 = vmatpush1.msra.mxu0 0.0
    %2781 = vmatprep.subr.mxu0 0.0
    %2782 = vmatpush1.msra.mxu0 0.0
    %2783 = vmatprep.subr.mxu0 0.0
    %2784 = vmatpush1.msra.mxu0 0.0
    %2785 = vmatprep.subr.mxu0 0.0
    %2786 = vmatpush1.msra.mxu0 0.0
    %2787 = vmatprep.subr.mxu0 0.0
    %2788 = vmatpush1.msra.mxu0 0.0
    %2789 = vmatprep.subr.mxu0 0.0
    %2790 = vmatpush1.msra.mxu0 0.0
    %2791 = vmatprep.subr.mxu0 0.0
    %2792 = vmatpush1.msra.mxu0 0.0
    %2793 = vmatprep.subr.mxu0 0.0
    %2794 = vmatpush1.msra.mxu0 0.0
    %2795 = vmatprep.subr.mxu0 0.0
    %2796 = vmatpush1.msra.mxu0 0.0
    %2797 = vmatprep.mubr.f32.mxu0 0.0
    %2798 = vmatmul.mubr.f32.gmra.mrb[0].mxu0 %v2725
    %v2799 = vpop.f32.mrb[0].mxu0
    %v2800 = vadd.f32 0.0, %v2799
    %v2801 = vpop.f32.mrb[0].mxu0
    %2802 = vmatprep.mubr.f32.mxu0 0.0
    %2803 = vmatmul.mubr.f32.gmra.mrb[0].mxu0 %v2728
    %v2804 = vpop.f32.mrb[0].mxu0
    %v2805 = vadd.f32 0.0, %v2804
    %v2806 = vpop.f32.mrb[0].mxu0
    %2807 = vmatprep.mubr.f32.mxu0 0.0
    %2808 = vmatmul.mubr.f32.gmra.mrb[0].mxu0 %v2731
    %v2809 = vpop.f32.mrb[0].mxu0
    %v2810 = vadd.f32 0.0, %v2809
    %v2811 = vpop.f32.mrb[0].mxu0
    %2812 = vdwg.mxu0
    %v2813 = vadd.f32 %v2632, %v2800
    %v2814 = vadd.f32 %v2633, %v2805
    %v2815 = vadd.f32 %v2634, %v2810
    %s2816 = scalar_lea.vmem %s3, 336
    %v2817 = vld [vmem:[%s2816] sm:$0xff]
    %v2818 = vld [vmem:[%s2816 + $0x8] sm:$0xff]
    %v2819 = vld [vmem:[%s2816 + $0x10] sm:$0x3]
    %2820 = vmatprep.subr.mxu0 0.0
    %2821 = vmatpush1.msra.mxu0 %v273
    %2822 = vmatprep.subr.mxu0 0.0
    %2823 = vmatpush1.msra.mxu0 %v274
    %2824 = vmatprep.subr.mxu0 0.0
    %2825 = vmatpush1.msra.mxu0 %v275
    %2826 = vmatprep.subr.mxu0 0.0
    %2827 = vmatpush1.msra.mxu0 %v276
    %2828 = vmatprep.subr.mxu0 0.0
    %2829 = vmatpush1.msra.mxu0 %v277
    %2830 = vmatprep.subr.mxu0 0.0
    %2831 = vmatpush1.msra.mxu0 %v278
    %2832 = vmatprep.subr.mxu0 0.0
    %2833 = vmatpush1.msra.mxu0 %v279
    %2834 = vmatprep.subr.mxu0 0.0
    %2835 = vmatpush1.msra.mxu0 %v280
    %2836 = vmatprep.subr.mxu0 0.0
    %2837 = vmatpush1.msra.mxu0 %v281
    %2838 = vmatprep.subr.mxu0 0.0
    %2839 = vmatpush1.msra.mxu0 %v282
    %2840 = vmatprep.subr.mxu0 0.0
    %2841 = vmatpush1.msra.mxu0 %v283
    %2842 = vmatprep.subr.mxu0 0.0
    %2843 = vmatpush1.msra.mxu0 %v284
    %2844 = vmatprep.subr.mxu0 0.0
    %2845 = vmatpush1.msra.mxu0 %v285
    %2846 = vmatprep.subr.mxu0 0.0
    %2847 = vmatpush1.msra.mxu0 %v286
    %2848 = vmatprep.subr.mxu0 0.0
    %2849 = vmatpush1.msra.mxu0 %v287
    %2850 = vmatprep.subr.mxu0 0.0
    %2851 = vmatpush1.msra.mxu0 %v288
    %2852 = vmatprep.subr.mxu0 0.0
    %2853 = vmatpush1.msra.mxu0 0.0
    %2854 = vmatprep.subr.mxu0 0.0
    %2855 = vmatpush1.msra.mxu0 0.0
    %2856 = vmatprep.subr.mxu0 0.0
    %2857 = vmatpush1.msra.mxu0 0.0
    %2858 = vmatprep.subr.mxu0 0.0
    %2859 = vmatpush1.msra.mxu0 0.0
    %2860 = vmatprep.subr.mxu0 0.0
    %2861 = vmatpush1.msra.mxu0 0.0
    %2862 = vmatprep.subr.mxu0 0.0
    %2863 = vmatpush1.msra.mxu0 0.0
    %2864 = vmatprep.subr.mxu0 0.0
    %2865 = vmatpush1.msra.mxu0 0.0
    %2866 = vmatprep.subr.mxu0 0.0
    %2867 = vmatpush1.msra.mxu0 0.0
    %2868 = vmatprep.subr.mxu0 0.0
    %2869 = vmatpush1.msra.mxu0 0.0
    %2870 = vmatprep.subr.mxu0 0.0
    %2871 = vmatpush1.msra.mxu0 0.0
    %2872 = vmatprep.subr.mxu0 0.0
    %2873 = vmatpush1.msra.mxu0 0.0
    %2874 = vmatprep.subr.mxu0 0.0
    %2875 = vmatpush1.msra.mxu0 0.0
    %2876 = vmatprep.subr.mxu0 0.0
    %2877 = vmatpush1.msra.mxu0 0.0
    %2878 = vmatprep.subr.mxu0 0.0
    %2879 = vmatpush1.msra.mxu0 0.0
    %2880 = vmatprep.subr.mxu0 0.0
    %2881 = vmatpush1.msra.mxu0 0.0
    %2882 = vmatprep.subr.mxu0 0.0
    %2883 = vmatpush1.msra.mxu0 0.0
    %2884 = vmatprep.mubr.f32.mxu0 0.0
    %2885 = vmatmul.mubr.f32.gmra.mrb[0].mxu0 %v2817
    %v2886 = vpop.f32.mrb[0].mxu0
    %v2887 = vadd.f32 0.0, %v2886
    %v2888 = vpop.f32.mrb[0].mxu0
    %2889 = vmatprep.mubr.f32.mxu0 0.0
    %2890 = vmatmul.mubr.f32.gmra.mrb[0].mxu0 %v2818
    %v2891 = vpop.f32.mrb[0].mxu0
    %v2892 = vadd.f32 0.0, %v2891
    %v2893 = vpop.f32.mrb[0].mxu0
    %2894 = vmatprep.mubr.f32.mxu0 0.0
    %2895 = vmatmul.mubr.f32.gmra.mrb[0].mxu0 %v2819
    %v2896 = vpop.f32.mrb[0].mxu0
    %v2897 = vadd.f32 0.0, %v2896
    %v2898 = vpop.f32.mrb[0].mxu0
    %2899 = vdwg.mxu0
    %s2900 = scalar_lea.vmem %s4, 448
    %v2901 = vld [vmem:[%s2900] sm:$0xff]
    %v2902 = vld [vmem:[%s2900 + $0x8] sm:$0xff]
    %v2903 = vld [vmem:[%s2900 + $0x10] sm:$0xff]
    %v2904 = vld [vmem:[%s2900 + $0x18] sm:$0xff]
    %v2906 = vsel %vm465, %v2887, 0
    %v2909 = vsel %vm465, %v2892, 0
    %v2912 = vsel %vm465, %v2897, 0
    %2914 = vmatprep.subr.mxu0 0.0
    %2915 = vmatpush1.msra.mxu0 %v2901
    %2916 = vmatprep.subr.mxu0 0.0
    %2917 = vmatpush1.msra.mxu0 %v2902
    %2918 = vmatprep.subr.mxu0 0.0
    %2919 = vmatpush1.msra.mxu0 %v2903
    %2920 = vmatprep.subr.mxu0 0.0
    %2921 = vmatpush1.msra.mxu0 %v2904
    %2922 = vmatprep.subr.mxu0 0.0
    %2923 = vmatpush1.msra.mxu0 0.0
    %2924 = vmatprep.subr.mxu0 0.0
    %2925 = vmatpush1.msra.mxu0 0.0
    %2926 = vmatprep.subr.mxu0 0.0
    %2927 = vmatpush1.msra.mxu0 0.0
    %2928 = vmatprep.subr.mxu0 0.0
    %2929 = vmatpush1.msra.mxu0 0.0
    %2930 = vmatprep.subr.mxu0 0.0
    %2931 = vmatpush1.msra.mxu0 0.0
    %2932 = vmatprep.subr.mxu0 0.0
    %2933 = vmatpush1.msra.mxu0 0.0
    %2934 = vmatprep.subr.mxu0 0.0
    %2935 = vmatpush1.msra.mxu0 0.0
    %2936 = vmatprep.subr.mxu0 0.0
    %2937 = vmatpush1.msra.mxu0 0.0
    %2938 = vmatprep.subr.mxu0 0.0
    %2939 = vmatpush1.msra.mxu0 0.0
    %2940 = vmatprep.subr.mxu0 0.0
    %2941 = vmatpush1.msra.mxu0 0.0
    %2942 = vmatprep.subr.mxu0 0.0
    %2943 = vmatpush1.msra.mxu0 0.0
    %2944 = vmatprep.subr.mxu0 0.0
    %2945 = vmatpush1.msra.mxu0 0.0
    %2946 = vmatprep.subr.mxu0 0.0
    %2947 = vmatpush1.msra.mxu0 0.0
    %2948 = vmatprep.subr.mxu0 0.0
    %2949 = vmatpush1.msra.mxu0 0.0
    %2950 = vmatprep.subr.mxu0 0.0
    %2951 = vmatpush1.msra.mxu0 0.0
    %2952 = vmatprep.subr.mxu0 0.0
    %2953 = vmatpush1.msra.mxu0 0.0
    %2954 = vmatprep.subr.mxu0 0.0
    %2955 = vmatpush1.msra.mxu0 0.0
    %2956 = vmatprep.subr.mxu0 0.0
    %2957 = vmatpush1.msra.mxu0 0.0
    %2958 = vmatprep.subr.mxu0 0.0
    %2959 = vmatpush1.msra.mxu0 0.0
    %2960 = vmatprep.subr.mxu0 0.0
    %2961 = vmatpush1.msra.mxu0 0.0
    %2962 = vmatprep.subr.mxu0 0.0
    %2963 = vmatpush1.msra.mxu0 0.0
    %2964 = vmatprep.subr.mxu0 0.0
    %2965 = vmatpush1.msra.mxu0 0.0
    %2966 = vmatprep.subr.mxu0 0.0
    %2967 = vmatpush1.msra.mxu0 0.0
    %2968 = vmatprep.subr.mxu0 0.0
    %2969 = vmatpush1.msra.mxu0 0.0
    %2970 = vmatprep.subr.mxu0 0.0
    %2971 = vmatpush1.msra.mxu0 0.0
    %2972 = vmatprep.subr.mxu0 0.0
    %2973 = vmatpush1.msra.mxu0 0.0
    %2974 = vmatprep.subr.mxu0 0.0
    %2975 = vmatpush1.msra.mxu0 0.0
    %2976 = vmatprep.subr.mxu0 0.0
    %2977 = vmatpush1.msra.mxu0 0.0
    %2978 = vmatprep.mubr.f32.mxu0 0.0
    %2979 = vmatmul.mubr.f32.gmra.mrb[0].mxu0 %v2906
    %v2980 = vpop.f32.mrb[0].mxu0
    %v2981 = vadd.f32 0.0, %v2980
    %v2982 = vpop.f32.mrb[0].mxu0
    %2983 = vmatprep.mubr.f32.mxu0 0.0
    %2984 = vmatmul.mubr.f32.gmra.mrb[0].mxu0 %v2909
    %v2985 = vpop.f32.mrb[0].mxu0
    %v2986 = vadd.f32 0.0, %v2985
    %v2987 = vpop.f32.mrb[0].mxu0
    %2988 = vmatprep.mubr.f32.mxu0 0.0
    %2989 = vmatmul.mubr.f32.gmra.mrb[0].mxu0 %v2912
    %v2990 = vpop.f32.mrb[0].mxu0
    %v2991 = vadd.f32 0.0, %v2990
    %v2992 = vpop.f32.mrb[0].mxu0
    %2993 = vdwg.mxu0
    %v2994 = vadd.f32 %v2813, %v2981
    %v2995 = vadd.f32 %v2814, %v2986
    %v2996 = vadd.f32 %v2815, %v2991
    %s2997 = scalar_lea.vmem %s3, 360
    %v2998 = vld [vmem:[%s2997] sm:$0xff]
    %v2999 = vld [vmem:[%s2997 + $0x8] sm:$0xff]
    %v3000 = vld [vmem:[%s2997 + $0x10] sm:$0x3]
    %3001 = vmatprep.subr.mxu0 0.0
    %3002 = vmatpush1.msra.mxu0 %v273
    %3003 = vmatprep.subr.mxu0 0.0
    %3004 = vmatpush1.msra.mxu0 %v274
    %3005 = vmatprep.subr.mxu0 0.0
    %3006 = vmatpush1.msra.mxu0 %v275
    %3007 = vmatprep.subr.mxu0 0.0
    %3008 = vmatpush1.msra.mxu0 %v276
    %3009 = vmatprep.subr.mxu0 0.0
    %3010 = vmatpush1.msra.mxu0 %v277
    %3011 = vmatprep.subr.mxu0 0.0
    %3012 = vmatpush1.msra.mxu0 %v278
    %3013 = vmatprep.subr.mxu0 0.0
    %3014 = vmatpush1.msra.mxu0 %v279
    %3015 = vmatprep.subr.mxu0 0.0
    %3016 = vmatpush1.msra.mxu0 %v280
    %3017 = vmatprep.subr.mxu0 0.0
    %3018 = vmatpush1.msra.mxu0 %v281
    %3019 = vmatprep.subr.mxu0 0.0
    %3020 = vmatpush1.msra.mxu0 %v282
    %3021 = vmatprep.subr.mxu0 0.0
    %3022 = vmatpush1.msra.mxu0 %v283
    %3023 = vmatprep.subr.mxu0 0.0
    %3024 = vmatpush1.msra.mxu0 %v284
    %3025 = vmatprep.subr.mxu0 0.0
    %3026 = vmatpush1.msra.mxu0 %v285
    %3027 = vmatprep.subr.mxu0 0.0
    %3028 = vmatpush1.msra.mxu0 %v286
    %3029 = vmatprep.subr.mxu0 0.0
    %3030 = vmatpush1.msra.mxu0 %v287
    %3031 = vmatprep.subr.mxu0 0.0
    %3032 = vmatpush1.msra.mxu0 %v288
    %3033 = vmatprep.subr.mxu0 0.0
    %3034 = vmatpush1.msra.mxu0 0.0
    %3035 = vmatprep.subr.mxu0 0.0
    %3036 = vmatpush1.msra.mxu0 0.0
    %3037 = vmatprep.subr.mxu0 0.0
    %3038 = vmatpush1.msra.mxu0 0.0
    %3039 = vmatprep.subr.mxu0 0.0
    %3040 = vmatpush1.msra.mxu0 0.0
    %3041 = vmatprep.subr.mxu0 0.0
    %3042 = vmatpush1.msra.mxu0 0.0
    %3043 = vmatprep.subr.mxu0 0.0
    %3044 = vmatpush1.msra.mxu0 0.0
    %3045 = vmatprep.subr.mxu0 0.0
    %3046 = vmatpush1.msra.mxu0 0.0
    %3047 = vmatprep.subr.mxu0 0.0
    %3048 = vmatpush1.msra.mxu0 0.0
    %3049 = vmatprep.subr.mxu0 0.0
    %3050 = vmatpush1.msra.mxu0 0.0
    %3051 = vmatprep.subr.mxu0 0.0
    %3052 = vmatpush1.msra.mxu0 0.0
    %3053 = vmatprep.subr.mxu0 0.0
    %3054 = vmatpush1.msra.mxu0 0.0
    %3055 = vmatprep.subr.mxu0 0.0
    %3056 = vmatpush1.msra.mxu0 0.0
    %3057 = vmatprep.subr.mxu0 0.0
    %3058 = vmatpush1.msra.mxu0 0.0
    %3059 = vmatprep.subr.mxu0 0.0
    %3060 = vmatpush1.msra.mxu0 0.0
    %3061 = vmatprep.subr.mxu0 0.0
    %3062 = vmatpush1.msra.mxu0 0.0
    %3063 = vmatprep.subr.mxu0 0.0
    %3064 = vmatpush1.msra.mxu0 0.0
    %3065 = vmatprep.mubr.f32.mxu0 0.0
    %3066 = vmatmul.mubr.f32.gmra.mrb[0].mxu0 %v2998
    %v3067 = vpop.f32.mrb[0].mxu0
    %v3068 = vadd.f32 0.0, %v3067
    %v3069 = vpop.f32.mrb[0].mxu0
    %3070 = vmatprep.mubr.f32.mxu0 0.0
    %3071 = vmatmul.mubr.f32.gmra.mrb[0].mxu0 %v2999
    %v3072 = vpop.f32.mrb[0].mxu0
    %v3073 = vadd.f32 0.0, %v3072
    %v3074 = vpop.f32.mrb[0].mxu0
    %3075 = vmatprep.mubr.f32.mxu0 0.0
    %3076 = vmatmul.mubr.f32.gmra.mrb[0].mxu0 %v3000
    %v3077 = vpop.f32.mrb[0].mxu0
    %v3078 = vadd.f32 0.0, %v3077
    %v3079 = vpop.f32.mrb[0].mxu0
    %3080 = vdwg.mxu0
    %s3081 = scalar_lea.vmem %s4, 480
    %v3082 = vld [vmem:[%s3081] sm:$0xff]
    %v3083 = vld [vmem:[%s3081 + $0x8] sm:$0xff]
    %v3084 = vld [vmem:[%s3081 + $0x10] sm:$0xff]
    %v3085 = vld [vmem:[%s3081 + $0x18] sm:$0xff]
    %v3087 = vsel %vm465, %v3068, 0
    %v3090 = vsel %vm465, %v3073, 0
    %v3093 = vsel %vm465, %v3078, 0
    %3095 = vmatprep.subr.mxu0 0.0
    %3096 = vmatpush1.msra.mxu0 %v3082
    %3097 = vmatprep.subr.mxu0 0.0
    %3098 = vmatpush1.msra.mxu0 %v3083
    %3099 = vmatprep.subr.mxu0 0.0
    %3100 = vmatpush1.msra.mxu0 %v3084
    %3101 = vmatprep.subr.mxu0 0.0
    %3102 = vmatpush1.msra.mxu0 %v3085
    %3103 = vmatprep.subr.mxu0 0.0
    %3104 = vmatpush1.msra.mxu0 0.0
    %3105 = vmatprep.subr.mxu0 0.0
    %3106 = vmatpush1.msra.mxu0 0.0
    %3107 = vmatprep.subr.mxu0 0.0
    %3108 = vmatpush1.msra.mxu0 0.0
    %3109 = vmatprep.subr.mxu0 0.0
    %3110 = vmatpush1.msra.mxu0 0.0
    %3111 = vmatprep.subr.mxu0 0.0
    %3112 = vmatpush1.msra.mxu0 0.0
    %3113 = vmatprep.subr.mxu0 0.0
    %3114 = vmatpush1.msra.mxu0 0.0
    %3115 = vmatprep.subr.mxu0 0.0
    %3116 = vmatpush1.msra.mxu0 0.0
    %3117 = vmatprep.subr.mxu0 0.0
    %3118 = vmatpush1.msra.mxu0 0.0
    %3119 = vmatprep.subr.mxu0 0.0
    %3120 = vmatpush1.msra.mxu0 0.0
    %3121 = vmatprep.subr.mxu0 0.0
    %3122 = vmatpush1.msra.mxu0 0.0
    %3123 = vmatprep.subr.mxu0 0.0
    %3124 = vmatpush1.msra.mxu0 0.0
    %3125 = vmatprep.subr.mxu0 0.0
    %3126 = vmatpush1.msra.mxu0 0.0
    %3127 = vmatprep.subr.mxu0 0.0
    %3128 = vmatpush1.msra.mxu0 0.0
    %3129 = vmatprep.subr.mxu0 0.0
    %3130 = vmatpush1.msra.mxu0 0.0
    %3131 = vmatprep.subr.mxu0 0.0
    %3132 = vmatpush1.msra.mxu0 0.0
    %3133 = vmatprep.subr.mxu0 0.0
    %3134 = vmatpush1.msra.mxu0 0.0
    %3135 = vmatprep.subr.mxu0 0.0
    %3136 = vmatpush1.msra.mxu0 0.0
    %3137 = vmatprep.subr.mxu0 0.0
    %3138 = vmatpush1.msra.mxu0 0.0
    %3139 = vmatprep.subr.mxu0 0.0
    %3140 = vmatpush1.msra.mxu0 0.0
    %3141 = vmatprep.subr.mxu0 0.0
    %3142 = vmatpush1.msra.mxu0 0.0
    %3143 = vmatprep.subr.mxu0 0.0
    %3144 = vmatpush1.msra.mxu0 0.0
    %3145 = vmatprep.subr.mxu0 0.0
    %3146 = vmatpush1.msra.mxu0 0.0
    %3147 = vmatprep.subr.mxu0 0.0
    %3148 = vmatpush1.msra.mxu0 0.0
    %3149 = vmatprep.subr.mxu0 0.0
    %3150 = vmatpush1.msra.mxu0 0.0
    %3151 = vmatprep.subr.mxu0 0.0
    %3152 = vmatpush1.msra.mxu0 0.0
    %3153 = vmatprep.subr.mxu0 0.0
    %3154 = vmatpush1.msra.mxu0 0.0
    %3155 = vmatprep.subr.mxu0 0.0
    %3156 = vmatpush1.msra.mxu0 0.0
    %3157 = vmatprep.subr.mxu0 0.0
    %3158 = vmatpush1.msra.mxu0 0.0
    %3159 = vmatprep.mubr.f32.mxu0 0.0
    %3160 = vmatmul.mubr.f32.gmra.mrb[0].mxu0 %v3087
    %v3161 = vpop.f32.mrb[0].mxu0
    %v3162 = vadd.f32 0.0, %v3161
    %v3163 = vpop.f32.mrb[0].mxu0
    %3164 = vmatprep.mubr.f32.mxu0 0.0
    %3165 = vmatmul.mubr.f32.gmra.mrb[0].mxu0 %v3090
    %v3166 = vpop.f32.mrb[0].mxu0
    %v3167 = vadd.f32 0.0, %v3166
    %v3168 = vpop.f32.mrb[0].mxu0
    %3169 = vmatprep.mubr.f32.mxu0 0.0
    %3170 = vmatmul.mubr.f32.gmra.mrb[0].mxu0 %v3093
    %v3171 = vpop.f32.mrb[0].mxu0
    %v3172 = vadd.f32 0.0, %v3171
    %v3173 = vpop.f32.mrb[0].mxu0
    %3174 = vdwg.mxu0
    %v3175 = vadd.f32 %v2994, %v3162
    %v3176 = vadd.f32 %v2995, %v3167
    %v3177 = vadd.f32 %v2996, %v3172
    %v3178 = vld [vmem:[%s5] sm:$0x1]
    %v3180 = vlaneseq
    %v3181 = vshrl.u32 %v3180, 7
    %v3182 = vsub.s32 0, %v3181
    %v3183 = vrot.slane %v3178, %v3182
    %v3185 = vadd.f32 %v3175, %v3183
    %v3186 = vadd.f32 %v3176, %v3183
    %v3187 = vadd.f32 %v3177, %v3183
    %v3188 = vmax.f32 %v3185, 0.0
    %v3189 = vmax.f32 %v3186, 0.0
    %v3190 = vmax.f32 %v3187, 0.0
    %v3191 = vld [vmem:[%s6] sm:$0x3]
    %vm3192 = vcmask 146432
    %v3194 = vsel %vm3192, %v3191, 0
    %vm3196 = vcmask 1041408
    %v3198 = vsel %vm3196, %v3190, 0
    %3200 = vmatprep.subr.mxu0 0.0
    %3201 = vmatpush1.msra.mxu0 %v3188
    %3202 = vmatprep.subr.mxu0 0.0
    %3203 = vmatpush1.msra.mxu0 %v3189
    %3204 = vmatprep.subr.mxu0 0.0
    %3205 = vmatpush1.msra.mxu0 %v3198
    %3206 = vmatprep.subr.mxu0 0.0
    %3207 = vmatpush1.msra.mxu0 0.0
    %3208 = vmatprep.subr.mxu0 0.0
    %3209 = vmatpush1.msra.mxu0 0.0
    %3210 = vmatprep.subr.mxu0 0.0
    %3211 = vmatpush1.msra.mxu0 0.0
    %3212 = vmatprep.subr.mxu0 0.0
    %3213 = vmatpush1.msra.mxu0 0.0
    %3214 = vmatprep.subr.mxu0 0.0
    %3215 = vmatpush1.msra.mxu0 0.0
    %3216 = vmatprep.subr.mxu0 0.0
    %3217 = vmatpush1.msra.mxu0 0.0
    %3218 = vmatprep.subr.mxu0 0.0
    %3219 = vmatpush1.msra.mxu0 0.0
    %3220 = vmatprep.subr.mxu0 0.0
    %3221 = vmatpush1.msra.mxu0 0.0
    %3222 = vmatprep.subr.mxu0 0.0
    %3223 = vmatpush1.msra.mxu0 0.0
    %3224 = vmatprep.subr.mxu0 0.0
    %3225 = vmatpush1.msra.mxu0 0.0
    %3226 = vmatprep.subr.mxu0 0.0
    %3227 = vmatpush1.msra.mxu0 0.0
    %3228 = vmatprep.subr.mxu0 0.0
    %3229 = vmatpush1.msra.mxu0 0.0
    %3230 = vmatprep.subr.mxu0 0.0
    %3231 = vmatpush1.msra.mxu0 0.0
    %3232 = vmatprep.subr.mxu0 0.0
    %3233 = vmatpush1.msra.mxu0 0.0
    %3234 = vmatprep.subr.mxu0 0.0
    %3235 = vmatpush1.msra.mxu0 0.0
    %3236 = vmatprep.subr.mxu0 0.0
    %3237 = vmatpush1.msra.mxu0 0.0
    %3238 = vmatprep.subr.mxu0 0.0
    %3239 = vmatpush1.msra.mxu0 0.0
    %3240 = vmatprep.subr.mxu0 0.0
    %3241 = vmatpush1.msra.mxu0 0.0
    %3242 = vmatprep.subr.mxu0 0.0
    %3243 = vmatpush1.msra.mxu0 0.0
    %3244 = vmatprep.subr.mxu0 0.0
    %3245 = vmatpush1.msra.mxu0 0.0
    %3246 = vmatprep.subr.mxu0 0.0
    %3247 = vmatpush1.msra.mxu0 0.0
    %3248 = vmatprep.subr.mxu0 0.0
    %3249 = vmatpush1.msra.mxu0 0.0
    %3250 = vmatprep.subr.mxu0 0.0
    %3251 = vmatpush1.msra.mxu0 0.0
    %3252 = vmatprep.subr.mxu0 0.0
    %3253 = vmatpush1.msra.mxu0 0.0
    %3254 = vmatprep.subr.mxu0 0.0
    %3255 = vmatpush1.msra.mxu0 0.0
    %3256 = vmatprep.subr.mxu0 0.0
    %3257 = vmatpush1.msra.mxu0 0.0
    %3258 = vmatprep.subr.mxu0 0.0
    %3259 = vmatpush1.msra.mxu0 0.0
    %3260 = vmatprep.subr.mxu0 0.0
    %3261 = vmatpush1.msra.mxu0 0.0
    %3262 = vmatprep.subr.mxu0 0.0
    %3263 = vmatpush1.msra.mxu0 0.0
    %3264 = vmatprep.mubr.f32.mxu0 0.0
    %3265 = vmatmul.mubr.f32.gmra.mrb[0].mxu0 %v3194
    %v3266 = vpop.f32.mrb[0].mxu0
    %v3267 = vadd.f32 0.0, %v3266
    %v3268 = vpop.f32.mrb[0].mxu0
    %3269 = vdwg.mxu0
    %v3270 = vld [vmem:[%s7] sm:$0xff]
    %v3271 = vld [vmem:[%s7 + $0x8] sm:$0xff]
    %v3272 = vld [vmem:[%s7 + $0x10] sm:$0xff]
    %v3273 = vld [vmem:[%s7 + $0x18] sm:$0xff]
    %v3274 = vld [vmem:[%s7 + $0x20] sm:$0xff]
    %v3275 = vld [vmem:[%s7 + $0x28] sm:$0xff]
    %v3276 = vld [vmem:[%s7 + $0x30] sm:$0xff]
    %v3277 = vld [vmem:[%s7 + $0x38] sm:$0xff]
    %s3278 = scalar_lea.vmem %s6, 2
    %v3279 = vld [vmem:[%s3278] sm:$0x3]
    %v3281 = vsel %vm3192, %v3279, 0
    %3283 = vmatprep.subr.mxu0 0.0
    %3284 = vmatpush1.msra.mxu0 %v3188
    %3285 = vmatprep.subr.mxu0 0.0
    %3286 = vmatpush1.msra.mxu0 %v3189
    %3287 = vmatprep.subr.mxu0 0.0
    %3288 = vmatpush1.msra.mxu0 %v3198
    %3289 = vmatprep.subr.mxu0 0.0
    %3290 = vmatpush1.msra.mxu0 0.0
    %3291 = vmatprep.subr.mxu0 0.0
    %3292 = vmatpush1.msra.mxu0 0.0
    %3293 = vmatprep.subr.mxu0 0.0
    %3294 = vmatpush1.msra.mxu0 0.0
    %3295 = vmatprep.subr.mxu0 0.0
    %3296 = vmatpush1.msra.mxu0 0.0
    %3297 = vmatprep.subr.mxu0 0.0
    %3298 = vmatpush1.msra.mxu0 0.0
    %3299 = vmatprep.subr.mxu0 0.0
    %3300 = vmatpush1.msra.mxu0 0.0
    %3301 = vmatprep.subr.mxu0 0.0
    %3302 = vmatpush1.msra.mxu0 0.0
    %3303 = vmatprep.subr.mxu0 0.0
    %3304 = vmatpush1.msra.mxu0 0.0
    %3305 = vmatprep.subr.mxu0 0.0
    %3306 = vmatpush1.msra.mxu0 0.0
    %3307 = vmatprep.subr.mxu0 0.0
    %3308 = vmatpush1.msra.mxu0 0.0
    %3309 = vmatprep.subr.mxu0 0.0
    %3310 = vmatpush1.msra.mxu0 0.0
    %3311 = vmatprep.subr.mxu0 0.0
    %3312 = vmatpush1.msra.mxu0 0.0
    %3313 = vmatprep.subr.mxu0 0.0
    %3314 = vmatpush1.msra.mxu0 0.0
    %3315 = vmatprep.subr.mxu0 0.0
    %3316 = vmatpush1.msra.mxu0 0.0
    %3317 = vmatprep.subr.mxu0 0.0
    %3318 = vmatpush1.msra.mxu0 0.0
    %3319 = vmatprep.subr.mxu0 0.0
    %3320 = vmatpush1.msra.mxu0 0.0
    %3321 = vmatprep.subr.mxu0 0.0
    %3322 = vmatpush1.msra.mxu0 0.0
    %3323 = vmatprep.subr.mxu0 0.0
    %3324 = vmatpush1.msra.mxu0 0.0
    %3325 = vmatprep.subr.mxu0 0.0
    %3326 = vmatpush1.msra.mxu0 0.0
    %3327 = vmatprep.subr.mxu0 0.0
    %3328 = vmatpush1.msra.mxu0 0.0
    %3329 = vmatprep.subr.mxu0 0.0
    %3330 = vmatpush1.msra.mxu0 0.0
    %3331 = vmatprep.subr.mxu0 0.0
    %3332 = vmatpush1.msra.mxu0 0.0
    %3333 = vmatprep.subr.mxu0 0.0
    %3334 = vmatpush1.msra.mxu0 0.0
    %3335 = vmatprep.subr.mxu0 0.0
    %3336 = vmatpush1.msra.mxu0 0.0
    %3337 = vmatprep.subr.mxu0 0.0
    %3338 = vmatpush1.msra.mxu0 0.0
    %3339 = vmatprep.subr.mxu0 0.0
    %3340 = vmatpush1.msra.mxu0 0.0
    %3341 = vmatprep.subr.mxu0 0.0
    %3342 = vmatpush1.msra.mxu0 0.0
    %3343 = vmatprep.subr.mxu0 0.0
    %3344 = vmatpush1.msra.mxu0 0.0
    %3345 = vmatprep.subr.mxu0 0.0
    %3346 = vmatpush1.msra.mxu0 0.0
    %3347 = vmatprep.mubr.f32.mxu0 0.0
    %3348 = vmatmul.mubr.f32.gmra.mrb[0].mxu0 %v3281
    %v3349 = vpop.f32.mrb[0].mxu0
    %v3350 = vadd.f32 0.0, %v3349
    %v3351 = vpop.f32.mrb[0].mxu0
    %3352 = vdwg.mxu0
    %s3353 = scalar_lea.vmem %s7, 64
    %v3354 = vld [vmem:[%s3353] sm:$0xff]
    %v3355 = vld [vmem:[%s3353 + $0x8] sm:$0xff]
    %v3356 = vld [vmem:[%s3353 + $0x10] sm:$0xff]
    %v3357 = vld [vmem:[%s3353 + $0x18] sm:$0xff]
    %v3358 = vld [vmem:[%s3353 + $0x20] sm:$0xff]
    %v3359 = vld [vmem:[%s3353 + $0x28] sm:$0xff]
    %v3360 = vld [vmem:[%s3353 + $0x30] sm:$0xff]
    %v3361 = vld [vmem:[%s3353 + $0x38] sm:$0xff]
    %vm3362 = vcmask 523264
    %v3364 = vsel %vm3362, %v3350, 0
    %3366 = vmatprep.subr.mxu0 0.0
    %3367 = vmatpush1.msra.mxu0 %v3354
    %3368 = vmatprep.subr.mxu0 0.0
    %3369 = vmatpush1.msra.mxu0 %v3355
    %3370 = vmatprep.subr.mxu0 0.0
    %3371 = vmatpush1.msra.mxu0 %v3356
    %3372 = vmatprep.subr.mxu0 0.0
    %3373 = vmatpush1.msra.mxu0 %v3357
    %3374 = vmatprep.subr.mxu0 0.0
    %3375 = vmatpush1.msra.mxu0 %v3358
    %3376 = vmatprep.subr.mxu0 0.0
    %3377 = vmatpush1.msra.mxu0 %v3359
    %3378 = vmatprep.subr.mxu0 0.0
    %3379 = vmatpush1.msra.mxu0 %v3360
    %3380 = vmatprep.subr.mxu0 0.0
    %3381 = vmatpush1.msra.mxu0 %v3361
    %3382 = vmatprep.subr.mxu0 0.0
    %3383 = vmatpush1.msra.mxu0 0.0
    %3384 = vmatprep.subr.mxu0 0.0
    %3385 = vmatpush1.msra.mxu0 0.0
    %3386 = vmatprep.subr.mxu0 0.0
    %3387 = vmatpush1.msra.mxu0 0.0
    %3388 = vmatprep.subr.mxu0 0.0
    %3389 = vmatpush1.msra.mxu0 0.0
    %3390 = vmatprep.subr.mxu0 0.0
    %3391 = vmatpush1.msra.mxu0 0.0
    %3392 = vmatprep.subr.mxu0 0.0
    %3393 = vmatpush1.msra.mxu0 0.0
    %3394 = vmatprep.subr.mxu0 0.0
    %3395 = vmatpush1.msra.mxu0 0.0
    %3396 = vmatprep.subr.mxu0 0.0
    %3397 = vmatpush1.msra.mxu0 0.0
    %3398 = vmatprep.subr.mxu0 0.0
    %3399 = vmatpush1.msra.mxu0 0.0
    %3400 = vmatprep.subr.mxu0 0.0
    %3401 = vmatpush1.msra.mxu0 0.0
    %3402 = vmatprep.subr.mxu0 0.0
    %3403 = vmatpush1.msra.mxu0 0.0
    %3404 = vmatprep.subr.mxu0 0.0
    %3405 = vmatpush1.msra.mxu0 0.0
    %3406 = vmatprep.subr.mxu0 0.0
    %3407 = vmatpush1.msra.mxu0 0.0
    %3408 = vmatprep.subr.mxu0 0.0
    %3409 = vmatpush1.msra.mxu0 0.0
    %3410 = vmatprep.subr.mxu0 0.0
    %3411 = vmatpush1.msra.mxu0 0.0
    %3412 = vmatprep.subr.mxu0 0.0
    %3413 = vmatpush1.msra.mxu0 0.0
    %3414 = vmatprep.subr.mxu0 0.0
    %3415 = vmatpush1.msra.mxu0 0.0
    %3416 = vmatprep.subr.mxu0 0.0
    %3417 = vmatpush1.msra.mxu0 0.0
    %3418 = vmatprep.subr.mxu0 0.0
    %3419 = vmatpush1.msra.mxu0 0.0
    %3420 = vmatprep.subr.mxu0 0.0
    %3421 = vmatpush1.msra.mxu0 0.0
    %3422 = vmatprep.subr.mxu0 0.0
    %3423 = vmatpush1.msra.mxu0 0.0
    %3424 = vmatprep.subr.mxu0 0.0
    %3425 = vmatpush1.msra.mxu0 0.0
    %3426 = vmatprep.subr.mxu0 0.0
    %3427 = vmatpush1.msra.mxu0 0.0
    %3428 = vmatprep.subr.mxu0 0.0
    %3429 = vmatpush1.msra.mxu0 0.0
    %3430 = vmatprep.mubr.f32.mxu0 0.0
    %3431 = vmatmul.mubr.f32.gmra.mrb[0].mxu0 %v3364
    %v3432 = vpop.f32.mrb[0].mxu0
    %v3433 = vadd.f32 0.0, %v3432
    %v3434 = vpop.f32.mrb[0].mxu0
    %3435 = vdwg.mxu0
    %v3437 = vsel %vm3362, %v3267, 0
    %3439 = vmatprep.subr.mxu0 0.0
    %3440 = vmatpush1.msra.mxu0 %v3270
    %3441 = vmatprep.subr.mxu0 0.0
    %3442 = vmatpush1.msra.mxu0 %v3271
    %3443 = vmatprep.subr.mxu0 0.0
    %3444 = vmatpush1.msra.mxu0 %v3272
    %3445 = vmatprep.subr.mxu0 0.0
    %3446 = vmatpush1.msra.mxu0 %v3273
    %3447 = vmatprep.subr.mxu0 0.0
    %3448 = vmatpush1.msra.mxu0 %v3274
    %3449 = vmatprep.subr.mxu0 0.0
    %3450 = vmatpush1.msra.mxu0 %v3275
    %3451 = vmatprep.subr.mxu0 0.0
    %3452 = vmatpush1.msra.mxu0 %v3276
    %3453 = vmatprep.subr.mxu0 0.0
    %3454 = vmatpush1.msra.mxu0 %v3277
    %3455 = vmatprep.subr.mxu0 0.0
    %3456 = vmatpush1.msra.mxu0 0.0
    %3457 = vmatprep.subr.mxu0 0.0
    %3458 = vmatpush1.msra.mxu0 0.0
    %3459 = vmatprep.subr.mxu0 0.0
    %3460 = vmatpush1.msra.mxu0 0.0
    %3461 = vmatprep.subr.mxu0 0.0
    %3462 = vmatpush1.msra.mxu0 0.0
    %3463 = vmatprep.subr.mxu0 0.0
    %3464 = vmatpush1.msra.mxu0 0.0
    %3465 = vmatprep.subr.mxu0 0.0
    %3466 = vmatpush1.msra.mxu0 0.0
    %3467 = vmatprep.subr.mxu0 0.0
    %3468 = vmatpush1.msra.mxu0 0.0
    %3469 = vmatprep.subr.mxu0 0.0
    %3470 = vmatpush1.msra.mxu0 0.0
    %3471 = vmatprep.subr.mxu0 0.0
    %3472 = vmatpush1.msra.mxu0 0.0
    %3473 = vmatprep.subr.mxu0 0.0
    %3474 = vmatpush1.msra.mxu0 0.0
    %3475 = vmatprep.subr.mxu0 0.0
    %3476 = vmatpush1.msra.mxu0 0.0
    %3477 = vmatprep.subr.mxu0 0.0
    %3478 = vmatpush1.msra.mxu0 0.0
    %3479 = vmatprep.subr.mxu0 0.0
    %3480 = vmatpush1.msra.mxu0 0.0
    %3481 = vmatprep.subr.mxu0 0.0
    %3482 = vmatpush1.msra.mxu0 0.0
    %3483 = vmatprep.subr.mxu0 0.0
    %3484 = vmatpush1.msra.mxu0 0.0
    %3485 = vmatprep.subr.mxu0 0.0
    %3486 = vmatpush1.msra.mxu0 0.0
    %3487 = vmatprep.subr.mxu0 0.0
    %3488 = vmatpush1.msra.mxu0 0.0
    %3489 = vmatprep.subr.mxu0 0.0
    %3490 = vmatpush1.msra.mxu0 0.0
    %3491 = vmatprep.subr.mxu0 0.0
    %3492 = vmatpush1.msra.mxu0 0.0
    %3493 = vmatprep.subr.mxu0 0.0
    %3494 = vmatpush1.msra.mxu0 0.0
    %3495 = vmatprep.subr.mxu0 0.0
    %3496 = vmatpush1.msra.mxu0 0.0
    %3497 = vmatprep.subr.mxu0 0.0
    %3498 = vmatpush1.msra.mxu0 0.0
    %3499 = vmatprep.subr.mxu0 0.0
    %3500 = vmatpush1.msra.mxu0 0.0
    %3501 = vmatprep.subr.mxu0 0.0
    %3502 = vmatpush1.msra.mxu0 0.0
    %3503 = vmatprep.mubr.f32.mxu0 0.0
    %3504 = vmatmul.mubr.f32.gmra.mrb[0].mxu0 %v3437
    %v3505 = vpop.f32.mrb[0].mxu0
    %v3506 = vadd.f32 %v3433, %v3505
    %v3507 = vpop.f32.mrb[0].mxu0
    %3508 = vdwg.mxu0
    %s3509 = scalar_lea.vmem %s6, 4
    %v3510 = vld [vmem:[%s3509] sm:$0x3]
    %v3512 = vsel %vm3192, %v3510, 0
    %3514 = vmatprep.subr.mxu0 0.0
    %3515 = vmatpush1.msra.mxu0 %v3188
    %3516 = vmatprep.subr.mxu0 0.0
    %3517 = vmatpush1.msra.mxu0 %v3189
    %3518 = vmatprep.subr.mxu0 0.0
    %3519 = vmatpush1.msra.mxu0 %v3198
    %3520 = vmatprep.subr.mxu0 0.0
    %3521 = vmatpush1.msra.mxu0 0.0
    %3522 = vmatprep.subr.mxu0 0.0
    %3523 = vmatpush1.msra.mxu0 0.0
    %3524 = vmatprep.subr.mxu0 0.0
    %3525 = vmatpush1.msra.mxu0 0.0
    %3526 = vmatprep.subr.mxu0 0.0
    %3527 = vmatpush1.msra.mxu0 0.0
    %3528 = vmatprep.subr.mxu0 0.0
    %3529 = vmatpush1.msra.mxu0 0.0
    %3530 = vmatprep.subr.mxu0 0.0
    %3531 = vmatpush1.msra.mxu0 0.0
    %3532 = vmatprep.subr.mxu0 0.0
    %3533 = vmatpush1.msra.mxu0 0.0
    %3534 = vmatprep.subr.mxu0 0.0
    %3535 = vmatpush1.msra.mxu0 0.0
    %3536 = vmatprep.subr.mxu0 0.0
    %3537 = vmatpush1.msra.mxu0 0.0
    %3538 = vmatprep.subr.mxu0 0.0
    %3539 = vmatpush1.msra.mxu0 0.0
    %3540 = vmatprep.subr.mxu0 0.0
    %3541 = vmatpush1.msra.mxu0 0.0
    %3542 = vmatprep.subr.mxu0 0.0
    %3543 = vmatpush1.msra.mxu0 0.0
    %3544 = vmatprep.subr.mxu0 0.0
    %3545 = vmatpush1.msra.mxu0 0.0
    %3546 = vmatprep.subr.mxu0 0.0
    %3547 = vmatpush1.msra.mxu0 0.0
    %3548 = vmatprep.subr.mxu0 0.0
    %3549 = vmatpush1.msra.mxu0 0.0
    %3550 = vmatprep.subr.mxu0 0.0
    %3551 = vmatpush1.msra.mxu0 0.0
    %3552 = vmatprep.subr.mxu0 0.0
    %3553 = vmatpush1.msra.mxu0 0.0
    %3554 = vmatprep.subr.mxu0 0.0
    %3555 = vmatpush1.msra.mxu0 0.0
    %3556 = vmatprep.subr.mxu0 0.0
    %3557 = vmatpush1.msra.mxu0 0.0
    %3558 = vmatprep.subr.mxu0 0.0
    %3559 = vmatpush1.msra.mxu0 0.0
    %3560 = vmatprep.subr.mxu0 0.0
    %3561 = vmatpush1.msra.mxu0 0.0
    %3562 = vmatprep.subr.mxu0 0.0
    %3563 = vmatpush1.msra.mxu0 0.0
    %3564 = vmatprep.subr.mxu0 0.0
    %3565 = vmatpush1.msra.mxu0 0.0
    %3566 = vmatprep.subr.mxu0 0.0
    %3567 = vmatpush1.msra.mxu0 0.0
    %3568 = vmatprep.subr.mxu0 0.0
    %3569 = vmatpush1.msra.mxu0 0.0
    %3570 = vmatprep.subr.mxu0 0.0
    %3571 = vmatpush1.msra.mxu0 0.0
    %3572 = vmatprep.subr.mxu0 0.0
    %3573 = vmatpush1.msra.mxu0 0.0
    %3574 = vmatprep.subr.mxu0 0.0
    %3575 = vmatpush1.msra.mxu0 0.0
    %3576 = vmatprep.subr.mxu0 0.0
    %3577 = vmatpush1.msra.mxu0 0.0
    %3578 = vmatprep.mubr.f32.mxu0 0.0
    %3579 = vmatmul.mubr.f32.gmra.mrb[0].mxu0 %v3512
    %v3580 = vpop.f32.mrb[0].mxu0
    %v3581 = vadd.f32 0.0, %v3580
    %v3582 = vpop.f32.mrb[0].mxu0
    %3583 = vdwg.mxu0
    %s3584 = scalar_lea.vmem %s7, 128
    %v3585 = vld [vmem:[%s3584] sm:$0xff]
    %v3586 = vld [vmem:[%s3584 + $0x8] sm:$0xff]
    %v3587 = vld [vmem:[%s3584 + $0x10] sm:$0xff]
    %v3588 = vld [vmem:[%s3584 + $0x18] sm:$0xff]
    %v3589 = vld [vmem:[%s3584 + $0x20] sm:$0xff]
    %v3590 = vld [vmem:[%s3584 + $0x28] sm:$0xff]
    %v3591 = vld [vmem:[%s3584 + $0x30] sm:$0xff]
    %v3592 = vld [vmem:[%s3584 + $0x38] sm:$0xff]
    %v3594 = vsel %vm3362, %v3581, 0
    %3596 = vmatprep.subr.mxu0 0.0
    %3597 = vmatpush1.msra.mxu0 %v3585
    %3598 = vmatprep.subr.mxu0 0.0
    %3599 = vmatpush1.msra.mxu0 %v3586
    %3600 = vmatprep.subr.mxu0 0.0
    %3601 = vmatpush1.msra.mxu0 %v3587
    %3602 = vmatprep.subr.mxu0 0.0
    %3603 = vmatpush1.msra.mxu0 %v3588
    %3604 = vmatprep.subr.mxu0 0.0
    %3605 = vmatpush1.msra.mxu0 %v3589
    %3606 = vmatprep.subr.mxu0 0.0
    %3607 = vmatpush1.msra.mxu0 %v3590
    %3608 = vmatprep.subr.mxu0 0.0
    %3609 = vmatpush1.msra.mxu0 %v3591
    %3610 = vmatprep.subr.mxu0 0.0
    %3611 = vmatpush1.msra.mxu0 %v3592
    %3612 = vmatprep.subr.mxu0 0.0
    %3613 = vmatpush1.msra.mxu0 0.0
    %3614 = vmatprep.subr.mxu0 0.0
    %3615 = vmatpush1.msra.mxu0 0.0
    %3616 = vmatprep.subr.mxu0 0.0
    %3617 = vmatpush1.msra.mxu0 0.0
    %3618 = vmatprep.subr.mxu0 0.0
    %3619 = vmatpush1.msra.mxu0 0.0
    %3620 = vmatprep.subr.mxu0 0.0
    %3621 = vmatpush1.msra.mxu0 0.0
    %3622 = vmatprep.subr.mxu0 0.0
    %3623 = vmatpush1.msra.mxu0 0.0
    %3624 = vmatprep.subr.mxu0 0.0
    %3625 = vmatpush1.msra.mxu0 0.0
    %3626 = vmatprep.subr.mxu0 0.0
    %3627 = vmatpush1.msra.mxu0 0.0
    %3628 = vmatprep.subr.mxu0 0.0
    %3629 = vmatpush1.msra.mxu0 0.0
    %3630 = vmatprep.subr.mxu0 0.0
    %3631 = vmatpush1.msra.mxu0 0.0
    %3632 = vmatprep.subr.mxu0 0.0
    %3633 = vmatpush1.msra.mxu0 0.0
    %3634 = vmatprep.subr.mxu0 0.0
    %3635 = vmatpush1.msra.mxu0 0.0
    %3636 = vmatprep.subr.mxu0 0.0
    %3637 = vmatpush1.msra.mxu0 0.0
    %3638 = vmatprep.subr.mxu0 0.0
    %3639 = vmatpush1.msra.mxu0 0.0
    %3640 = vmatprep.subr.mxu0 0.0
    %3641 = vmatpush1.msra.mxu0 0.0
    %3642 = vmatprep.subr.mxu0 0.0
    %3643 = vmatpush1.msra.mxu0 0.0
    %3644 = vmatprep.subr.mxu0 0.0
    %3645 = vmatpush1.msra.mxu0 0.0
    %3646 = vmatprep.subr.mxu0 0.0
    %3647 = vmatpush1.msra.mxu0 0.0
    %3648 = vmatprep.subr.mxu0 0.0
    %3649 = vmatpush1.msra.mxu0 0.0
    %3650 = vmatprep.subr.mxu0 0.0
    %3651 = vmatpush1.msra.mxu0 0.0
    %3652 = vmatprep.subr.mxu0 0.0
    %3653 = vmatpush1.msra.mxu0 0.0
    %3654 = vmatprep.subr.mxu0 0.0
    %3655 = vmatpush1.msra.mxu0 0.0
    %3656 = vmatprep.subr.mxu0 0.0
    %3657 = vmatpush1.msra.mxu0 0.0
    %3658 = vmatprep.subr.mxu0 0.0
    %3659 = vmatpush1.msra.mxu0 0.0
    %3660 = vmatprep.mubr.f32.mxu0 0.0
    %3661 = vmatmul.mubr.f32.gmra.mrb[0].mxu0 %v3594
    %v3662 = vpop.f32.mrb[0].mxu0
    %v3663 = vadd.f32 0.0, %v3662
    %v3664 = vpop.f32.mrb[0].mxu0
    %3665 = vdwg.mxu0
    %v3666 = vadd.f32 %v3506, %v3663
    %s3667 = scalar_lea.vmem %s6, 6
    %v3668 = vld [vmem:[%s3667] sm:$0x3]
    %v3670 = vsel %vm3192, %v3668, 0
    %3672 = vmatprep.subr.mxu0 0.0
    %3673 = vmatpush1.msra.mxu0 %v3188
    %3674 = vmatprep.subr.mxu0 0.0
    %3675 = vmatpush1.msra.mxu0 %v3189
    %3676 = vmatprep.subr.mxu0 0.0
    %3677 = vmatpush1.msra.mxu0 %v3198
    %3678 = vmatprep.subr.mxu0 0.0
    %3679 = vmatpush1.msra.mxu0 0.0
    %3680 = vmatprep.subr.mxu0 0.0
    %3681 = vmatpush1.msra.mxu0 0.0
    %3682 = vmatprep.subr.mxu0 0.0
    %3683 = vmatpush1.msra.mxu0 0.0
    %3684 = vmatprep.subr.mxu0 0.0
    %3685 = vmatpush1.msra.mxu0 0.0
    %3686 = vmatprep.subr.mxu0 0.0
    %3687 = vmatpush1.msra.mxu0 0.0
    %3688 = vmatprep.subr.mxu0 0.0
    %3689 = vmatpush1.msra.mxu0 0.0
    %3690 = vmatprep.subr.mxu0 0.0
    %3691 = vmatpush1.msra.mxu0 0.0
    %3692 = vmatprep.subr.mxu0 0.0
    %3693 = vmatpush1.msra.mxu0 0.0
    %3694 = vmatprep.subr.mxu0 0.0
    %3695 = vmatpush1.msra.mxu0 0.0
    %3696 = vmatprep.subr.mxu0 0.0
    %3697 = vmatpush1.msra.mxu0 0.0
    %3698 = vmatprep.subr.mxu0 0.0
    %3699 = vmatpush1.msra.mxu0 0.0
    %3700 = vmatprep.subr.mxu0 0.0
    %3701 = vmatpush1.msra.mxu0 0.0
    %3702 = vmatprep.subr.mxu0 0.0
    %3703 = vmatpush1.msra.mxu0 0.0
    %3704 = vmatprep.subr.mxu0 0.0
    %3705 = vmatpush1.msra.mxu0 0.0
    %3706 = vmatprep.subr.mxu0 0.0
    %3707 = vmatpush1.msra.mxu0 0.0
    %3708 = vmatprep.subr.mxu0 0.0
    %3709 = vmatpush1.msra.mxu0 0.0
    %3710 = vmatprep.subr.mxu0 0.0
    %3711 = vmatpush1.msra.mxu0 0.0
    %3712 = vmatprep.subr.mxu0 0.0
    %3713 = vmatpush1.msra.mxu0 0.0
    %3714 = vmatprep.subr.mxu0 0.0
    %3715 = vmatpush1.msra.mxu0 0.0
    %3716 = vmatprep.subr.mxu0 0.0
    %3717 = vmatpush1.msra.mxu0 0.0
    %3718 = vmatprep.subr.mxu0 0.0
    %3719 = vmatpush1.msra.mxu0 0.0
    %3720 = vmatprep.subr.mxu0 0.0
    %3721 = vmatpush1.msra.mxu0 0.0
    %3722 = vmatprep.subr.mxu0 0.0
    %3723 = vmatpush1.msra.mxu0 0.0
    %3724 = vmatprep.subr.mxu0 0.0
    %3725 = vmatpush1.msra.mxu0 0.0
    %3726 = vmatprep.subr.mxu0 0.0
    %3727 = vmatpush1.msra.mxu0 0.0
    %3728 = vmatprep.subr.mxu0 0.0
    %3729 = vmatpush1.msra.mxu0 0.0
    %3730 = vmatprep.subr.mxu0 0.0
    %3731 = vmatpush1.msra.mxu0 0.0
    %3732 = vmatprep.subr.mxu0 0.0
    %3733 = vmatpush1.msra.mxu0 0.0
    %3734 = vmatprep.subr.mxu0 0.0
    %3735 = vmatpush1.msra.mxu0 0.0
    %3736 = vmatprep.mubr.f32.mxu0 0.0
    %3737 = vmatmul.mubr.f32.gmra.mrb[0].mxu0 %v3670
    %v3738 = vpop.f32.mrb[0].mxu0
    %v3739 = vadd.f32 0.0, %v3738
    %v3740 = vpop.f32.mrb[0].mxu0
    %3741 = vdwg.mxu0
    %s3742 = scalar_lea.vmem %s7, 192
    %v3743 = vld [vmem:[%s3742] sm:$0xff]
    %v3744 = vld [vmem:[%s3742 + $0x8] sm:$0xff]
    %v3745 = vld [vmem:[%s3742 + $0x10] sm:$0xff]
    %v3746 = vld [vmem:[%s3742 + $0x18] sm:$0xff]
    %v3747 = vld [vmem:[%s3742 + $0x20] sm:$0xff]
    %v3748 = vld [vmem:[%s3742 + $0x28] sm:$0xff]
    %v3749 = vld [vmem:[%s3742 + $0x30] sm:$0xff]
    %v3750 = vld [vmem:[%s3742 + $0x38] sm:$0xff]
    %v3752 = vsel %vm3362, %v3739, 0
    %3754 = vmatprep.subr.mxu0 0.0
    %3755 = vmatpush1.msra.mxu0 %v3743
    %3756 = vmatprep.subr.mxu0 0.0
    %3757 = vmatpush1.msra.mxu0 %v3744
    %3758 = vmatprep.subr.mxu0 0.0
    %3759 = vmatpush1.msra.mxu0 %v3745
    %3760 = vmatprep.subr.mxu0 0.0
    %3761 = vmatpush1.msra.mxu0 %v3746
    %3762 = vmatprep.subr.mxu0 0.0
    %3763 = vmatpush1.msra.mxu0 %v3747
    %3764 = vmatprep.subr.mxu0 0.0
    %3765 = vmatpush1.msra.mxu0 %v3748
    %3766 = vmatprep.subr.mxu0 0.0
    %3767 = vmatpush1.msra.mxu0 %v3749
    %3768 = vmatprep.subr.mxu0 0.0
    %3769 = vmatpush1.msra.mxu0 %v3750
    %3770 = vmatprep.subr.mxu0 0.0
    %3771 = vmatpush1.msra.mxu0 0.0
    %3772 = vmatprep.subr.mxu0 0.0
    %3773 = vmatpush1.msra.mxu0 0.0
    %3774 = vmatprep.subr.mxu0 0.0
    %3775 = vmatpush1.msra.mxu0 0.0
    %3776 = vmatprep.subr.mxu0 0.0
    %3777 = vmatpush1.msra.mxu0 0.0
    %3778 = vmatprep.subr.mxu0 0.0
    %3779 = vmatpush1.msra.mxu0 0.0
    %3780 = vmatprep.subr.mxu0 0.0
    %3781 = vmatpush1.msra.mxu0 0.0
    %3782 = vmatprep.subr.mxu0 0.0
    %3783 = vmatpush1.msra.mxu0 0.0
    %3784 = vmatprep.subr.mxu0 0.0
    %3785 = vmatpush1.msra.mxu0 0.0
    %3786 = vmatprep.subr.mxu0 0.0
    %3787 = vmatpush1.msra.mxu0 0.0
    %3788 = vmatprep.subr.mxu0 0.0
    %3789 = vmatpush1.msra.mxu0 0.0
    %3790 = vmatprep.subr.mxu0 0.0
    %3791 = vmatpush1.msra.mxu0 0.0
    %3792 = vmatprep.subr.mxu0 0.0
    %3793 = vmatpush1.msra.mxu0 0.0
    %3794 = vmatprep.subr.mxu0 0.0
    %3795 = vmatpush1.msra.mxu0 0.0
    %3796 = vmatprep.subr.mxu0 0.0
    %3797 = vmatpush1.msra.mxu0 0.0
    %3798 = vmatprep.subr.mxu0 0.0
    %3799 = vmatpush1.msra.mxu0 0.0
    %3800 = vmatprep.subr.mxu0 0.0
    %3801 = vmatpush1.msra.mxu0 0.0
    %3802 = vmatprep.subr.mxu0 0.0
    %3803 = vmatpush1.msra.mxu0 0.0
    %3804 = vmatprep.subr.mxu0 0.0
    %3805 = vmatpush1.msra.mxu0 0.0
    %3806 = vmatprep.subr.mxu0 0.0
    %3807 = vmatpush1.msra.mxu0 0.0
    %3808 = vmatprep.subr.mxu0 0.0
    %3809 = vmatpush1.msra.mxu0 0.0
    %3810 = vmatprep.subr.mxu0 0.0
    %3811 = vmatpush1.msra.mxu0 0.0
    %3812 = vmatprep.subr.mxu0 0.0
    %3813 = vmatpush1.msra.mxu0 0.0
    %3814 = vmatprep.subr.mxu0 0.0
    %3815 = vmatpush1.msra.mxu0 0.0
    %3816 = vmatprep.subr.mxu0 0.0
    %3817 = vmatpush1.msra.mxu0 0.0
    %3818 = vmatprep.mubr.f32.mxu0 0.0
    %3819 = vmatmul.mubr.f32.gmra.mrb[0].mxu0 %v3752
    %v3820 = vpop.f32.mrb[0].mxu0
    %v3821 = vadd.f32 0.0, %v3820
    %v3822 = vpop.f32.mrb[0].mxu0
    %3823 = vdwg.mxu0
    %v3824 = vadd.f32 %v3666, %v3821
    %s3825 = scalar_lea.vmem %s6, 8
    %v3826 = vld [vmem:[%s3825] sm:$0x3]
    %v3828 = vsel %vm3192, %v3826, 0
    %3830 = vmatprep.subr.mxu0 0.0
    %3831 = vmatpush1.msra.mxu0 %v3188
    %3832 = vmatprep.subr.mxu0 0.0
    %3833 = vmatpush1.msra.mxu0 %v3189
    %3834 = vmatprep.subr.mxu0 0.0
    %3835 = vmatpush1.msra.mxu0 %v3198
    %3836 = vmatprep.subr.mxu0 0.0
    %3837 = vmatpush1.msra.mxu0 0.0
    %3838 = vmatprep.subr.mxu0 0.0
    %3839 = vmatpush1.msra.mxu0 0.0
    %3840 = vmatprep.subr.mxu0 0.0
    %3841 = vmatpush1.msra.mxu0 0.0
    %3842 = vmatprep.subr.mxu0 0.0
    %3843 = vmatpush1.msra.mxu0 0.0
    %3844 = vmatprep.subr.mxu0 0.0
    %3845 = vmatpush1.msra.mxu0 0.0
    %3846 = vmatprep.subr.mxu0 0.0
    %3847 = vmatpush1.msra.mxu0 0.0
    %3848 = vmatprep.subr.mxu0 0.0
    %3849 = vmatpush1.msra.mxu0 0.0
    %3850 = vmatprep.subr.mxu0 0.0
    %3851 = vmatpush1.msra.mxu0 0.0
    %3852 = vmatprep.subr.mxu0 0.0
    %3853 = vmatpush1.msra.mxu0 0.0
    %3854 = vmatprep.subr.mxu0 0.0
    %3855 = vmatpush1.msra.mxu0 0.0
    %3856 = vmatprep.subr.mxu0 0.0
    %3857 = vmatpush1.msra.mxu0 0.0
    %3858 = vmatprep.subr.mxu0 0.0
    %3859 = vmatpush1.msra.mxu0 0.0
    %3860 = vmatprep.subr.mxu0 0.0
    %3861 = vmatpush1.msra.mxu0 0.0
    %3862 = vmatprep.subr.mxu0 0.0
    %3863 = vmatpush1.msra.mxu0 0.0
    %3864 = vmatprep.subr.mxu0 0.0
    %3865 = vmatpush1.msra.mxu0 0.0
    %3866 = vmatprep.subr.mxu0 0.0
    %3867 = vmatpush1.msra.mxu0 0.0
    %3868 = vmatprep.subr.mxu0 0.0
    %3869 = vmatpush1.msra.mxu0 0.0
    %3870 = vmatprep.subr.mxu0 0.0
    %3871 = vmatpush1.msra.mxu0 0.0
    %3872 = vmatprep.subr.mxu0 0.0
    %3873 = vmatpush1.msra.mxu0 0.0
    %3874 = vmatprep.subr.mxu0 0.0
    %3875 = vmatpush1.msra.mxu0 0.0
    %3876 = vmatprep.subr.mxu0 0.0
    %3877 = vmatpush1.msra.mxu0 0.0
    %3878 = vmatprep.subr.mxu0 0.0
    %3879 = vmatpush1.msra.mxu0 0.0
    %3880 = vmatprep.subr.mxu0 0.0
    %3881 = vmatpush1.msra.mxu0 0.0
    %3882 = vmatprep.subr.mxu0 0.0
    %3883 = vmatpush1.msra.mxu0 0.0
    %3884 = vmatprep.subr.mxu0 0.0
    %3885 = vmatpush1.msra.mxu0 0.0
    %3886 = vmatprep.subr.mxu0 0.0
    %3887 = vmatpush1.msra.mxu0 0.0
    %3888 = vmatprep.subr.mxu0 0.0
    %3889 = vmatpush1.msra.mxu0 0.0
    %3890 = vmatprep.subr.mxu0 0.0
    %3891 = vmatpush1.msra.mxu0 0.0
    %3892 = vmatprep.subr.mxu0 0.0
    %3893 = vmatpush1.msra.mxu0 0.0
    %3894 = vmatprep.mubr.f32.mxu0 0.0
    %3895 = vmatmul.mubr.f32.gmra.mrb[0].mxu0 %v3828
    %v3896 = vpop.f32.mrb[0].mxu0
    %v3897 = vadd.f32 0.0, %v3896
    %v3898 = vpop.f32.mrb[0].mxu0
    %3899 = vdwg.mxu0
    %s3900 = scalar_lea.vmem %s7, 256
    %v3901 = vld [vmem:[%s3900] sm:$0xff]
    %v3902 = vld [vmem:[%s3900 + $0x8] sm:$0xff]
    %v3903 = vld [vmem:[%s3900 + $0x10] sm:$0xff]
    %v3904 = vld [vmem:[%s3900 + $0x18] sm:$0xff]
    %v3905 = vld [vmem:[%s3900 + $0x20] sm:$0xff]
    %v3906 = vld [vmem:[%s3900 + $0x28] sm:$0xff]
    %v3907 = vld [vmem:[%s3900 + $0x30] sm:$0xff]
    %v3908 = vld [vmem:[%s3900 + $0x38] sm:$0xff]
    %v3910 = vsel %vm3362, %v3897, 0
    %3912 = vmatprep.subr.mxu0 0.0
    %3913 = vmatpush1.msra.mxu0 %v3901
    %3914 = vmatprep.subr.mxu0 0.0
    %3915 = vmatpush1.msra.mxu0 %v3902
    %3916 = vmatprep.subr.mxu0 0.0
    %3917 = vmatpush1.msra.mxu0 %v3903
    %3918 = vmatprep.subr.mxu0 0.0
    %3919 = vmatpush1.msra.mxu0 %v3904
    %3920 = vmatprep.subr.mxu0 0.0
    %3921 = vmatpush1.msra.mxu0 %v3905
    %3922 = vmatprep.subr.mxu0 0.0
    %3923 = vmatpush1.msra.mxu0 %v3906
    %3924 = vmatprep.subr.mxu0 0.0
    %3925 = vmatpush1.msra.mxu0 %v3907
    %3926 = vmatprep.subr.mxu0 0.0
    %3927 = vmatpush1.msra.mxu0 %v3908
    %3928 = vmatprep.subr.mxu0 0.0
    %3929 = vmatpush1.msra.mxu0 0.0
    %3930 = vmatprep.subr.mxu0 0.0
    %3931 = vmatpush1.msra.mxu0 0.0
    %3932 = vmatprep.subr.mxu0 0.0
    %3933 = vmatpush1.msra.mxu0 0.0
    %3934 = vmatprep.subr.mxu0 0.0
    %3935 = vmatpush1.msra.mxu0 0.0
    %3936 = vmatprep.subr.mxu0 0.0
    %3937 = vmatpush1.msra.mxu0 0.0
    %3938 = vmatprep.subr.mxu0 0.0
    %3939 = vmatpush1.msra.mxu0 0.0
    %3940 = vmatprep.subr.mxu0 0.0
    %3941 = vmatpush1.msra.mxu0 0.0
    %3942 = vmatprep.subr.mxu0 0.0
    %3943 = vmatpush1.msra.mxu0 0.0
    %3944 = vmatprep.subr.mxu0 0.0
    %3945 = vmatpush1.msra.mxu0 0.0
    %3946 = vmatprep.subr.mxu0 0.0
    %3947 = vmatpush1.msra.mxu0 0.0
    %3948 = vmatprep.subr.mxu0 0.0
    %3949 = vmatpush1.msra.mxu0 0.0
    %3950 = vmatprep.subr.mxu0 0.0
    %3951 = vmatpush1.msra.mxu0 0.0
    %3952 = vmatprep.subr.mxu0 0.0
    %3953 = vmatpush1.msra.mxu0 0.0
    %3954 = vmatprep.subr.mxu0 0.0
    %3955 = vmatpush1.msra.mxu0 0.0
    %3956 = vmatprep.subr.mxu0 0.0
    %3957 = vmatpush1.msra.mxu0 0.0
    %3958 = vmatprep.subr.mxu0 0.0
    %3959 = vmatpush1.msra.mxu0 0.0
    %3960 = vmatprep.subr.mxu0 0.0
    %3961 = vmatpush1.msra.mxu0 0.0
    %3962 = vmatprep.subr.mxu0 0.0
    %3963 = vmatpush1.msra.mxu0 0.0
    %3964 = vmatprep.subr.mxu0 0.0
    %3965 = vmatpush1.msra.mxu0 0.0
    %3966 = vmatprep.subr.mxu0 0.0
    %3967 = vmatpush1.msra.mxu0 0.0
    %3968 = vmatprep.subr.mxu0 0.0
    %3969 = vmatpush1.msra.mxu0 0.0
    %3970 = vmatprep.subr.mxu0 0.0
    %3971 = vmatpush1.msra.mxu0 0.0
    %3972 = vmatprep.subr.mxu0 0.0
    %3973 = vmatpush1.msra.mxu0 0.0
    %3974 = vmatprep.subr.mxu0 0.0
    %3975 = vmatpush1.msra.mxu0 0.0
    %3976 = vmatprep.mubr.f32.mxu0 0.0
    %3977 = vmatmul.mubr.f32.gmra.mrb[0].mxu0 %v3910
    %v3978 = vpop.f32.mrb[0].mxu0
    %v3979 = vadd.f32 0.0, %v3978
    %v3980 = vpop.f32.mrb[0].mxu0
    %3981 = vdwg.mxu0
    %v3982 = vadd.f32 %v3824, %v3979
    %s3983 = scalar_lea.vmem %s6, 10
    %v3984 = vld [vmem:[%s3983] sm:$0x3]
    %v3986 = vsel %vm3192, %v3984, 0
    %3988 = vmatprep.subr.mxu0 0.0
    %3989 = vmatpush1.msra.mxu0 %v3188
    %3990 = vmatprep.subr.mxu0 0.0
    %3991 = vmatpush1.msra.mxu0 %v3189
    %3992 = vmatprep.subr.mxu0 0.0
    %3993 = vmatpush1.msra.mxu0 %v3198
    %3994 = vmatprep.subr.mxu0 0.0
    %3995 = vmatpush1.msra.mxu0 0.0
    %3996 = vmatprep.subr.mxu0 0.0
    %3997 = vmatpush1.msra.mxu0 0.0
    %3998 = vmatprep.subr.mxu0 0.0
    %3999 = vmatpush1.msra.mxu0 0.0
    %4000 = vmatprep.subr.mxu0 0.0
    %4001 = vmatpush1.msra.mxu0 0.0
    %4002 = vmatprep.subr.mxu0 0.0
    %4003 = vmatpush1.msra.mxu0 0.0
    %4004 = vmatprep.subr.mxu0 0.0
    %4005 = vmatpush1.msra.mxu0 0.0
    %4006 = vmatprep.subr.mxu0 0.0
    %4007 = vmatpush1.msra.mxu0 0.0
    %4008 = vmatprep.subr.mxu0 0.0
    %4009 = vmatpush1.msra.mxu0 0.0
    %4010 = vmatprep.subr.mxu0 0.0
    %4011 = vmatpush1.msra.mxu0 0.0
    %4012 = vmatprep.subr.mxu0 0.0
    %4013 = vmatpush1.msra.mxu0 0.0
    %4014 = vmatprep.subr.mxu0 0.0
    %4015 = vmatpush1.msra.mxu0 0.0
    %4016 = vmatprep.subr.mxu0 0.0
    %4017 = vmatpush1.msra.mxu0 0.0
    %4018 = vmatprep.subr.mxu0 0.0
    %4019 = vmatpush1.msra.mxu0 0.0
    %4020 = vmatprep.subr.mxu0 0.0
    %4021 = vmatpush1.msra.mxu0 0.0
    %4022 = vmatprep.subr.mxu0 0.0
    %4023 = vmatpush1.msra.mxu0 0.0
    %4024 = vmatprep.subr.mxu0 0.0
    %4025 = vmatpush1.msra.mxu0 0.0
    %4026 = vmatprep.subr.mxu0 0.0
    %4027 = vmatpush1.msra.mxu0 0.0
    %4028 = vmatprep.subr.mxu0 0.0
    %4029 = vmatpush1.msra.mxu0 0.0
    %4030 = vmatprep.subr.mxu0 0.0
    %4031 = vmatpush1.msra.mxu0 0.0
    %4032 = vmatprep.subr.mxu0 0.0
    %4033 = vmatpush1.msra.mxu0 0.0
    %4034 = vmatprep.subr.mxu0 0.0
    %4035 = vmatpush1.msra.mxu0 0.0
    %4036 = vmatprep.subr.mxu0 0.0
    %4037 = vmatpush1.msra.mxu0 0.0
    %4038 = vmatprep.subr.mxu0 0.0
    %4039 = vmatpush1.msra.mxu0 0.0
    %4040 = vmatprep.subr.mxu0 0.0
    %4041 = vmatpush1.msra.mxu0 0.0
    %4042 = vmatprep.subr.mxu0 0.0
    %4043 = vmatpush1.msra.mxu0 0.0
    %4044 = vmatprep.subr.mxu0 0.0
    %4045 = vmatpush1.msra.mxu0 0.0
    %4046 = vmatprep.subr.mxu0 0.0
    %4047 = vmatpush1.msra.mxu0 0.0
    %4048 = vmatprep.subr.mxu0 0.0
    %4049 = vmatpush1.msra.mxu0 0.0
    %4050 = vmatprep.subr.mxu0 0.0
    %4051 = vmatpush1.msra.mxu0 0.0
    %4052 = vmatprep.mubr.f32.mxu0 0.0
    %4053 = vmatmul.mubr.f32.gmra.mrb[0].mxu0 %v3986
    %v4054 = vpop.f32.mrb[0].mxu0
    %v4055 = vadd.f32 0.0, %v4054
    %v4056 = vpop.f32.mrb[0].mxu0
    %4057 = vdwg.mxu0
    %s4058 = scalar_lea.vmem %s7, 320
    %v4059 = vld [vmem:[%s4058] sm:$0xff]
    %v4060 = vld [vmem:[%s4058 + $0x8] sm:$0xff]
    %v4061 = vld [vmem:[%s4058 + $0x10] sm:$0xff]
    %v4062 = vld [vmem:[%s4058 + $0x18] sm:$0xff]
    %v4063 = vld [vmem:[%s4058 + $0x20] sm:$0xff]
    %v4064 = vld [vmem:[%s4058 + $0x28] sm:$0xff]
    %v4065 = vld [vmem:[%s4058 + $0x30] sm:$0xff]
    %v4066 = vld [vmem:[%s4058 + $0x38] sm:$0xff]
    %v4068 = vsel %vm3362, %v4055, 0
    %4070 = vmatprep.subr.mxu0 0.0
    %4071 = vmatpush1.msra.mxu0 %v4059
    %4072 = vmatprep.subr.mxu0 0.0
    %4073 = vmatpush1.msra.mxu0 %v4060
    %4074 = vmatprep.subr.mxu0 0.0
    %4075 = vmatpush1.msra.mxu0 %v4061
    %4076 = vmatprep.subr.mxu0 0.0
    %4077 = vmatpush1.msra.mxu0 %v4062
    %4078 = vmatprep.subr.mxu0 0.0
    %4079 = vmatpush1.msra.mxu0 %v4063
    %4080 = vmatprep.subr.mxu0 0.0
    %4081 = vmatpush1.msra.mxu0 %v4064
    %4082 = vmatprep.subr.mxu0 0.0
    %4083 = vmatpush1.msra.mxu0 %v4065
    %4084 = vmatprep.subr.mxu0 0.0
    %4085 = vmatpush1.msra.mxu0 %v4066
    %4086 = vmatprep.subr.mxu0 0.0
    %4087 = vmatpush1.msra.mxu0 0.0
    %4088 = vmatprep.subr.mxu0 0.0
    %4089 = vmatpush1.msra.mxu0 0.0
    %4090 = vmatprep.subr.mxu0 0.0
    %4091 = vmatpush1.msra.mxu0 0.0
    %4092 = vmatprep.subr.mxu0 0.0
    %4093 = vmatpush1.msra.mxu0 0.0
    %4094 = vmatprep.subr.mxu0 0.0
    %4095 = vmatpush1.msra.mxu0 0.0
    %4096 = vmatprep.subr.mxu0 0.0
    %4097 = vmatpush1.msra.mxu0 0.0
    %4098 = vmatprep.subr.mxu0 0.0
    %4099 = vmatpush1.msra.mxu0 0.0
    %4100 = vmatprep.subr.mxu0 0.0
    %4101 = vmatpush1.msra.mxu0 0.0
    %4102 = vmatprep.subr.mxu0 0.0
    %4103 = vmatpush1.msra.mxu0 0.0
    %4104 = vmatprep.subr.mxu0 0.0
    %4105 = vmatpush1.msra.mxu0 0.0
    %4106 = vmatprep.subr.mxu0 0.0
    %4107 = vmatpush1.msra.mxu0 0.0
    %4108 = vmatprep.subr.mxu0 0.0
    %4109 = vmatpush1.msra.mxu0 0.0
    %4110 = vmatprep.subr.mxu0 0.0
    %4111 = vmatpush1.msra.mxu0 0.0
    %4112 = vmatprep.subr.mxu0 0.0
    %4113 = vmatpush1.msra.mxu0 0.0
    %4114 = vmatprep.subr.mxu0 0.0
    %4115 = vmatpush1.msra.mxu0 0.0
    %4116 = vmatprep.subr.mxu0 0.0
    %4117 = vmatpush1.msra.mxu0 0.0
    %4118 = vmatprep.subr.mxu0 0.0
    %4119 = vmatpush1.msra.mxu0 0.0
    %4120 = vmatprep.subr.mxu0 0.0
    %4121 = vmatpush1.msra.mxu0 0.0
    %4122 = vmatprep.subr.mxu0 0.0
    %4123 = vmatpush1.msra.mxu0 0.0
    %4124 = vmatprep.subr.mxu0 0.0
    %4125 = vmatpush1.msra.mxu0 0.0
    %4126 = vmatprep.subr.mxu0 0.0
    %4127 = vmatpush1.msra.mxu0 0.0
    %4128 = vmatprep.subr.mxu0 0.0
    %4129 = vmatpush1.msra.mxu0 0.0
    %4130 = vmatprep.subr.mxu0 0.0
    %4131 = vmatpush1.msra.mxu0 0.0
    %4132 = vmatprep.subr.mxu0 0.0
    %4133 = vmatpush1.msra.mxu0 0.0
    %4134 = vmatprep.mubr.f32.mxu0 0.0
    %4135 = vmatmul.mubr.f32.gmra.mrb[0].mxu0 %v4068
    %v4136 = vpop.f32.mrb[0].mxu0
    %v4137 = vadd.f32 0.0, %v4136
    %v4138 = vpop.f32.mrb[0].mxu0
    %4139 = vdwg.mxu0
    %v4140 = vadd.f32 %v3982, %v4137
    %s4141 = scalar_lea.vmem %s6, 12
    %v4142 = vld [vmem:[%s4141] sm:$0x3]
    %v4144 = vsel %vm3192, %v4142, 0
    %4146 = vmatprep.subr.mxu0 0.0
    %4147 = vmatpush1.msra.mxu0 %v3188
    %4148 = vmatprep.subr.mxu0 0.0
    %4149 = vmatpush1.msra.mxu0 %v3189
    %4150 = vmatprep.subr.mxu0 0.0
    %4151 = vmatpush1.msra.mxu0 %v3198
    %4152 = vmatprep.subr.mxu0 0.0
    %4153 = vmatpush1.msra.mxu0 0.0
    %4154 = vmatprep.subr.mxu0 0.0
    %4155 = vmatpush1.msra.mxu0 0.0
    %4156 = vmatprep.subr.mxu0 0.0
    %4157 = vmatpush1.msra.mxu0 0.0
    %4158 = vmatprep.subr.mxu0 0.0
    %4159 = vmatpush1.msra.mxu0 0.0
    %4160 = vmatprep.subr.mxu0 0.0
    %4161 = vmatpush1.msra.mxu0 0.0
    %4162 = vmatprep.subr.mxu0 0.0
    %4163 = vmatpush1.msra.mxu0 0.0
    %4164 = vmatprep.subr.mxu0 0.0
    %4165 = vmatpush1.msra.mxu0 0.0
    %4166 = vmatprep.subr.mxu0 0.0
    %4167 = vmatpush1.msra.mxu0 0.0
    %4168 = vmatprep.subr.mxu0 0.0
    %4169 = vmatpush1.msra.mxu0 0.0
    %4170 = vmatprep.subr.mxu0 0.0
    %4171 = vmatpush1.msra.mxu0 0.0
    %4172 = vmatprep.subr.mxu0 0.0
    %4173 = vmatpush1.msra.mxu0 0.0
    %4174 = vmatprep.subr.mxu0 0.0
    %4175 = vmatpush1.msra.mxu0 0.0
    %4176 = vmatprep.subr.mxu0 0.0
    %4177 = vmatpush1.msra.mxu0 0.0
    %4178 = vmatprep.subr.mxu0 0.0
    %4179 = vmatpush1.msra.mxu0 0.0
    %4180 = vmatprep.subr.mxu0 0.0
    %4181 = vmatpush1.msra.mxu0 0.0
    %4182 = vmatprep.subr.mxu0 0.0
    %4183 = vmatpush1.msra.mxu0 0.0
    %4184 = vmatprep.subr.mxu0 0.0
    %4185 = vmatpush1.msra.mxu0 0.0
    %4186 = vmatprep.subr.mxu0 0.0
    %4187 = vmatpush1.msra.mxu0 0.0
    %4188 = vmatprep.subr.mxu0 0.0
    %4189 = vmatpush1.msra.mxu0 0.0
    %4190 = vmatprep.subr.mxu0 0.0
    %4191 = vmatpush1.msra.mxu0 0.0
    %4192 = vmatprep.subr.mxu0 0.0
    %4193 = vmatpush1.msra.mxu0 0.0
    %4194 = vmatprep.subr.mxu0 0.0
    %4195 = vmatpush1.msra.mxu0 0.0
    %4196 = vmatprep.subr.mxu0 0.0
    %4197 = vmatpush1.msra.mxu0 0.0
    %4198 = vmatprep.subr.mxu0 0.0
    %4199 = vmatpush1.msra.mxu0 0.0
    %4200 = vmatprep.subr.mxu0 0.0
    %4201 = vmatpush1.msra.mxu0 0.0
    %4202 = vmatprep.subr.mxu0 0.0
    %4203 = vmatpush1.msra.mxu0 0.0
    %4204 = vmatprep.subr.mxu0 0.0
    %4205 = vmatpush1.msra.mxu0 0.0
    %4206 = vmatprep.subr.mxu0 0.0
    %4207 = vmatpush1.msra.mxu0 0.0
    %4208 = vmatprep.subr.mxu0 0.0
    %4209 = vmatpush1.msra.mxu0 0.0
    %4210 = vmatprep.mubr.f32.mxu0 0.0
    %4211 = vmatmul.mubr.f32.gmra.mrb[0].mxu0 %v4144
    %v4212 = vpop.f32.mrb[0].mxu0
    %v4213 = vadd.f32 0.0, %v4212
    %v4214 = vpop.f32.mrb[0].mxu0
    %4215 = vdwg.mxu0
    %s4216 = scalar_lea.vmem %s7, 384
    %v4217 = vld [vmem:[%s4216] sm:$0xff]
    %v4218 = vld [vmem:[%s4216 + $0x8] sm:$0xff]
    %v4219 = vld [vmem:[%s4216 + $0x10] sm:$0xff]
    %v4220 = vld [vmem:[%s4216 + $0x18] sm:$0xff]
    %v4221 = vld [vmem:[%s4216 + $0x20] sm:$0xff]
    %v4222 = vld [vmem:[%s4216 + $0x28] sm:$0xff]
    %v4223 = vld [vmem:[%s4216 + $0x30] sm:$0xff]
    %v4224 = vld [vmem:[%s4216 + $0x38] sm:$0xff]
    %v4226 = vsel %vm3362, %v4213, 0
    %4228 = vmatprep.subr.mxu0 0.0
    %4229 = vmatpush1.msra.mxu0 %v4217
    %4230 = vmatprep.subr.mxu0 0.0
    %4231 = vmatpush1.msra.mxu0 %v4218
    %4232 = vmatprep.subr.mxu0 0.0
    %4233 = vmatpush1.msra.mxu0 %v4219
    %4234 = vmatprep.subr.mxu0 0.0
    %4235 = vmatpush1.msra.mxu0 %v4220
    %4236 = vmatprep.subr.mxu0 0.0
    %4237 = vmatpush1.msra.mxu0 %v4221
    %4238 = vmatprep.subr.mxu0 0.0
    %4239 = vmatpush1.msra.mxu0 %v4222
    %4240 = vmatprep.subr.mxu0 0.0
    %4241 = vmatpush1.msra.mxu0 %v4223
    %4242 = vmatprep.subr.mxu0 0.0
    %4243 = vmatpush1.msra.mxu0 %v4224
    %4244 = vmatprep.subr.mxu0 0.0
    %4245 = vmatpush1.msra.mxu0 0.0
    %4246 = vmatprep.subr.mxu0 0.0
    %4247 = vmatpush1.msra.mxu0 0.0
    %4248 = vmatprep.subr.mxu0 0.0
    %4249 = vmatpush1.msra.mxu0 0.0
    %4250 = vmatprep.subr.mxu0 0.0
    %4251 = vmatpush1.msra.mxu0 0.0
    %4252 = vmatprep.subr.mxu0 0.0
    %4253 = vmatpush1.msra.mxu0 0.0
    %4254 = vmatprep.subr.mxu0 0.0
    %4255 = vmatpush1.msra.mxu0 0.0
    %4256 = vmatprep.subr.mxu0 0.0
    %4257 = vmatpush1.msra.mxu0 0.0
    %4258 = vmatprep.subr.mxu0 0.0
    %4259 = vmatpush1.msra.mxu0 0.0
    %4260 = vmatprep.subr.mxu0 0.0
    %4261 = vmatpush1.msra.mxu0 0.0
    %4262 = vmatprep.subr.mxu0 0.0
    %4263 = vmatpush1.msra.mxu0 0.0
    %4264 = vmatprep.subr.mxu0 0.0
    %4265 = vmatpush1.msra.mxu0 0.0
    %4266 = vmatprep.subr.mxu0 0.0
    %4267 = vmatpush1.msra.mxu0 0.0
    %4268 = vmatprep.subr.mxu0 0.0
    %4269 = vmatpush1.msra.mxu0 0.0
    %4270 = vmatprep.subr.mxu0 0.0
    %4271 = vmatpush1.msra.mxu0 0.0
    %4272 = vmatprep.subr.mxu0 0.0
    %4273 = vmatpush1.msra.mxu0 0.0
    %4274 = vmatprep.subr.mxu0 0.0
    %4275 = vmatpush1.msra.mxu0 0.0
    %4276 = vmatprep.subr.mxu0 0.0
    %4277 = vmatpush1.msra.mxu0 0.0
    %4278 = vmatprep.subr.mxu0 0.0
    %4279 = vmatpush1.msra.mxu0 0.0
    %4280 = vmatprep.subr.mxu0 0.0
    %4281 = vmatpush1.msra.mxu0 0.0
    %4282 = vmatprep.subr.mxu0 0.0
    %4283 = vmatpush1.msra.mxu0 0.0
    %4284 = vmatprep.subr.mxu0 0.0
    %4285 = vmatpush1.msra.mxu0 0.0
    %4286 = vmatprep.subr.mxu0 0.0
    %4287 = vmatpush1.msra.mxu0 0.0
    %4288 = vmatprep.subr.mxu0 0.0
    %4289 = vmatpush1.msra.mxu0 0.0
    %4290 = vmatprep.subr.mxu0 0.0
    %4291 = vmatpush1.msra.mxu0 0.0
    %4292 = vmatprep.mubr.f32.mxu0 0.0
    %4293 = vmatmul.mubr.f32.gmra.mrb[0].mxu0 %v4226
    %v4294 = vpop.f32.mrb[0].mxu0
    %v4295 = vadd.f32 0.0, %v4294
    %v4296 = vpop.f32.mrb[0].mxu0
    %4297 = vdwg.mxu0
    %v4298 = vadd.f32 %v4140, %v4295
    %s4299 = scalar_lea.vmem %s6, 14
    %v4300 = vld [vmem:[%s4299] sm:$0x3]
    %v4302 = vsel %vm3192, %v4300, 0
    %4304 = vmatprep.subr.mxu0 0.0
    %4305 = vmatpush1.msra.mxu0 %v3188
    %4306 = vmatprep.subr.mxu0 0.0
    %4307 = vmatpush1.msra.mxu0 %v3189
    %4308 = vmatprep.subr.mxu0 0.0
    %4309 = vmatpush1.msra.mxu0 %v3198
    %4310 = vmatprep.subr.mxu0 0.0
    %4311 = vmatpush1.msra.mxu0 0.0
    %4312 = vmatprep.subr.mxu0 0.0
    %4313 = vmatpush1.msra.mxu0 0.0
    %4314 = vmatprep.subr.mxu0 0.0
    %4315 = vmatpush1.msra.mxu0 0.0
    %4316 = vmatprep.subr.mxu0 0.0
    %4317 = vmatpush1.msra.mxu0 0.0
    %4318 = vmatprep.subr.mxu0 0.0
    %4319 = vmatpush1.msra.mxu0 0.0
    %4320 = vmatprep.subr.mxu0 0.0
    %4321 = vmatpush1.msra.mxu0 0.0
    %4322 = vmatprep.subr.mxu0 0.0
    %4323 = vmatpush1.msra.mxu0 0.0
    %4324 = vmatprep.subr.mxu0 0.0
    %4325 = vmatpush1.msra.mxu0 0.0
    %4326 = vmatprep.subr.mxu0 0.0
    %4327 = vmatpush1.msra.mxu0 0.0
    %4328 = vmatprep.subr.mxu0 0.0
    %4329 = vmatpush1.msra.mxu0 0.0
    %4330 = vmatprep.subr.mxu0 0.0
    %4331 = vmatpush1.msra.mxu0 0.0
    %4332 = vmatprep.subr.mxu0 0.0
    %4333 = vmatpush1.msra.mxu0 0.0
    %4334 = vmatprep.subr.mxu0 0.0
    %4335 = vmatpush1.msra.mxu0 0.0
    %4336 = vmatprep.subr.mxu0 0.0
    %4337 = vmatpush1.msra.mxu0 0.0
    %4338 = vmatprep.subr.mxu0 0.0
    %4339 = vmatpush1.msra.mxu0 0.0
    %4340 = vmatprep.subr.mxu0 0.0
    %4341 = vmatpush1.msra.mxu0 0.0
    %4342 = vmatprep.subr.mxu0 0.0
    %4343 = vmatpush1.msra.mxu0 0.0
    %4344 = vmatprep.subr.mxu0 0.0
    %4345 = vmatpush1.msra.mxu0 0.0
    %4346 = vmatprep.subr.mxu0 0.0
    %4347 = vmatpush1.msra.mxu0 0.0
    %4348 = vmatprep.subr.mxu0 0.0
    %4349 = vmatpush1.msra.mxu0 0.0
    %4350 = vmatprep.subr.mxu0 0.0
    %4351 = vmatpush1.msra.mxu0 0.0
    %4352 = vmatprep.subr.mxu0 0.0
    %4353 = vmatpush1.msra.mxu0 0.0
    %4354 = vmatprep.subr.mxu0 0.0
    %4355 = vmatpush1.msra.mxu0 0.0
    %4356 = vmatprep.subr.mxu0 0.0
    %4357 = vmatpush1.msra.mxu0 0.0
    %4358 = vmatprep.subr.mxu0 0.0
    %4359 = vmatpush1.msra.mxu0 0.0
    %4360 = vmatprep.subr.mxu0 0.0
    %4361 = vmatpush1.msra.mxu0 0.0
    %4362 = vmatprep.subr.mxu0 0.0
    %4363 = vmatpush1.msra.mxu0 0.0
    %4364 = vmatprep.subr.mxu0 0.0
    %4365 = vmatpush1.msra.mxu0 0.0
    %4366 = vmatprep.subr.mxu0 0.0
    %4367 = vmatpush1.msra.mxu0 0.0
    %4368 = vmatprep.mubr.f32.mxu0 0.0
    %4369 = vmatmul.mubr.f32.gmra.mrb[0].mxu0 %v4302
    %v4370 = vpop.f32.mrb[0].mxu0
    %v4371 = vadd.f32 0.0, %v4370
    %v4372 = vpop.f32.mrb[0].mxu0
    %4373 = vdwg.mxu0
    %s4374 = scalar_lea.vmem %s7, 448
    %v4375 = vld [vmem:[%s4374] sm:$0xff]
    %v4376 = vld [vmem:[%s4374 + $0x8] sm:$0xff]
    %v4377 = vld [vmem:[%s4374 + $0x10] sm:$0xff]
    %v4378 = vld [vmem:[%s4374 + $0x18] sm:$0xff]
    %v4379 = vld [vmem:[%s4374 + $0x20] sm:$0xff]
    %v4380 = vld [vmem:[%s4374 + $0x28] sm:$0xff]
    %v4381 = vld [vmem:[%s4374 + $0x30] sm:$0xff]
    %v4382 = vld [vmem:[%s4374 + $0x38] sm:$0xff]
    %v4384 = vsel %vm3362, %v4371, 0
    %4386 = vmatprep.subr.mxu0 0.0
    %4387 = vmatpush1.msra.mxu0 %v4375
    %4388 = vmatprep.subr.mxu0 0.0
    %4389 = vmatpush1.msra.mxu0 %v4376
    %4390 = vmatprep.subr.mxu0 0.0
    %4391 = vmatpush1.msra.mxu0 %v4377
    %4392 = vmatprep.subr.mxu0 0.0
    %4393 = vmatpush1.msra.mxu0 %v4378
    %4394 = vmatprep.subr.mxu0 0.0
    %4395 = vmatpush1.msra.mxu0 %v4379
    %4396 = vmatprep.subr.mxu0 0.0
    %4397 = vmatpush1.msra.mxu0 %v4380
    %4398 = vmatprep.subr.mxu0 0.0
    %4399 = vmatpush1.msra.mxu0 %v4381
    %4400 = vmatprep.subr.mxu0 0.0
    %4401 = vmatpush1.msra.mxu0 %v4382
    %4402 = vmatprep.subr.mxu0 0.0
    %4403 = vmatpush1.msra.mxu0 0.0
    %4404 = vmatprep.subr.mxu0 0.0
    %4405 = vmatpush1.msra.mxu0 0.0
    %4406 = vmatprep.subr.mxu0 0.0
    %4407 = vmatpush1.msra.mxu0 0.0
    %4408 = vmatprep.subr.mxu0 0.0
    %4409 = vmatpush1.msra.mxu0 0.0
    %4410 = vmatprep.subr.mxu0 0.0
    %4411 = vmatpush1.msra.mxu0 0.0
    %4412 = vmatprep.subr.mxu0 0.0
    %4413 = vmatpush1.msra.mxu0 0.0
    %4414 = vmatprep.subr.mxu0 0.0
    %4415 = vmatpush1.msra.mxu0 0.0
    %4416 = vmatprep.subr.mxu0 0.0
    %4417 = vmatpush1.msra.mxu0 0.0
    %4418 = vmatprep.subr.mxu0 0.0
    %4419 = vmatpush1.msra.mxu0 0.0
    %4420 = vmatprep.subr.mxu0 0.0
    %4421 = vmatpush1.msra.mxu0 0.0
    %4422 = vmatprep.subr.mxu0 0.0
    %4423 = vmatpush1.msra.mxu0 0.0
    %4424 = vmatprep.subr.mxu0 0.0
    %4425 = vmatpush1.msra.mxu0 0.0
    %4426 = vmatprep.subr.mxu0 0.0
    %4427 = vmatpush1.msra.mxu0 0.0
    %4428 = vmatprep.subr.mxu0 0.0
    %4429 = vmatpush1.msra.mxu0 0.0
    %4430 = vmatprep.subr.mxu0 0.0
    %4431 = vmatpush1.msra.mxu0 0.0
    %4432 = vmatprep.subr.mxu0 0.0
    %4433 = vmatpush1.msra.mxu0 0.0
    %4434 = vmatprep.subr.mxu0 0.0
    %4435 = vmatpush1.msra.mxu0 0.0
    %4436 = vmatprep.subr.mxu0 0.0
    %4437 = vmatpush1.msra.mxu0 0.0
    %4438 = vmatprep.subr.mxu0 0.0
    %4439 = vmatpush1.msra.mxu0 0.0
    %4440 = vmatprep.subr.mxu0 0.0
    %4441 = vmatpush1.msra.mxu0 0.0
    %4442 = vmatprep.subr.mxu0 0.0
    %4443 = vmatpush1.msra.mxu0 0.0
    %4444 = vmatprep.subr.mxu0 0.0
    %4445 = vmatpush1.msra.mxu0 0.0
    %4446 = vmatprep.subr.mxu0 0.0
    %4447 = vmatpush1.msra.mxu0 0.0
    %4448 = vmatprep.subr.mxu0 0.0
    %4449 = vmatpush1.msra.mxu0 0.0
    %4450 = vmatprep.mubr.f32.mxu0 0.0
    %4451 = vmatmul.mubr.f32.gmra.mrb[0].mxu0 %v4384
    %v4452 = vpop.f32.mrb[0].mxu0
    %v4453 = vadd.f32 0.0, %v4452
    %v4454 = vpop.f32.mrb[0].mxu0
    %4455 = vdwg.mxu0
    %v4456 = vadd.f32 %v4298, %v4453
    %s4457 = scalar_lea.vmem %s6, 16
    %v4458 = vld [vmem:[%s4457] sm:$0x3]
    %v4460 = vsel %vm3192, %v4458, 0
    %4462 = vmatprep.subr.mxu0 0.0
    %4463 = vmatpush1.msra.mxu0 %v3188
    %4464 = vmatprep.subr.mxu0 0.0
    %4465 = vmatpush1.msra.mxu0 %v3189
    %4466 = vmatprep.subr.mxu0 0.0
    %4467 = vmatpush1.msra.mxu0 %v3198
    %4468 = vmatprep.subr.mxu0 0.0
    %4469 = vmatpush1.msra.mxu0 0.0
    %4470 = vmatprep.subr.mxu0 0.0
    %4471 = vmatpush1.msra.mxu0 0.0
    %4472 = vmatprep.subr.mxu0 0.0
    %4473 = vmatpush1.msra.mxu0 0.0
    %4474 = vmatprep.subr.mxu0 0.0
    %4475 = vmatpush1.msra.mxu0 0.0
    %4476 = vmatprep.subr.mxu0 0.0
    %4477 = vmatpush1.msra.mxu0 0.0
    %4478 = vmatprep.subr.mxu0 0.0
    %4479 = vmatpush1.msra.mxu0 0.0
    %4480 = vmatprep.subr.mxu0 0.0
    %4481 = vmatpush1.msra.mxu0 0.0
    %4482 = vmatprep.subr.mxu0 0.0
    %4483 = vmatpush1.msra.mxu0 0.0
    %4484 = vmatprep.subr.mxu0 0.0
    %4485 = vmatpush1.msra.mxu0 0.0
    %4486 = vmatprep.subr.mxu0 0.0
    %4487 = vmatpush1.msra.mxu0 0.0
    %4488 = vmatprep.subr.mxu0 0.0
    %4489 = vmatpush1.msra.mxu0 0.0
    %4490 = vmatprep.subr.mxu0 0.0
    %4491 = vmatpush1.msra.mxu0 0.0
    %4492 = vmatprep.subr.mxu0 0.0
    %4493 = vmatpush1.msra.mxu0 0.0
    %4494 = vmatprep.subr.mxu0 0.0
    %4495 = vmatpush1.msra.mxu0 0.0
    %4496 = vmatprep.subr.mxu0 0.0
    %4497 = vmatpush1.msra.mxu0 0.0
    %4498 = vmatprep.subr.mxu0 0.0
    %4499 = vmatpush1.msra.mxu0 0.0
    %4500 = vmatprep.subr.mxu0 0.0
    %4501 = vmatpush1.msra.mxu0 0.0
    %4502 = vmatprep.subr.mxu0 0.0
    %4503 = vmatpush1.msra.mxu0 0.0
    %4504 = vmatprep.subr.mxu0 0.0
    %4505 = vmatpush1.msra.mxu0 0.0
    %4506 = vmatprep.subr.mxu0 0.0
    %4507 = vmatpush1.msra.mxu0 0.0
    %4508 = vmatprep.subr.mxu0 0.0
    %4509 = vmatpush1.msra.mxu0 0.0
    %4510 = vmatprep.subr.mxu0 0.0
    %4511 = vmatpush1.msra.mxu0 0.0
    %4512 = vmatprep.subr.mxu0 0.0
    %4513 = vmatpush1.msra.mxu0 0.0
    %4514 = vmatprep.subr.mxu0 0.0
    %4515 = vmatpush1.msra.mxu0 0.0
    %4516 = vmatprep.subr.mxu0 0.0
    %4517 = vmatpush1.msra.mxu0 0.0
    %4518 = vmatprep.subr.mxu0 0.0
    %4519 = vmatpush1.msra.mxu0 0.0
    %4520 = vmatprep.subr.mxu0 0.0
    %4521 = vmatpush1.msra.mxu0 0.0
    %4522 = vmatprep.subr.mxu0 0.0
    %4523 = vmatpush1.msra.mxu0 0.0
    %4524 = vmatprep.subr.mxu0 0.0
    %4525 = vmatpush1.msra.mxu0 0.0
    %4526 = vmatprep.mubr.f32.mxu0 0.0
    %4527 = vmatmul.mubr.f32.gmra.mrb[0].mxu0 %v4460
    %v4528 = vpop.f32.mrb[0].mxu0
    %v4529 = vadd.f32 0.0, %v4528
    %v4530 = vpop.f32.mrb[0].mxu0
    %4531 = vdwg.mxu0
    %s4532 = scalar_lea.vmem %s7, 512
    %v4533 = vld [vmem:[%s4532] sm:$0xff]
    %v4534 = vld [vmem:[%s4532 + $0x8] sm:$0xff]
    %v4535 = vld [vmem:[%s4532 + $0x10] sm:$0xff]
    %v4536 = vld [vmem:[%s4532 + $0x18] sm:$0xff]
    %v4537 = vld [vmem:[%s4532 + $0x20] sm:$0xff]
    %v4538 = vld [vmem:[%s4532 + $0x28] sm:$0xff]
    %v4539 = vld [vmem:[%s4532 + $0x30] sm:$0xff]
    %v4540 = vld [vmem:[%s4532 + $0x38] sm:$0xff]
    %v4542 = vsel %vm3362, %v4529, 0
    %4544 = vmatprep.subr.mxu0 0.0
    %4545 = vmatpush1.msra.mxu0 %v4533
    %4546 = vmatprep.subr.mxu0 0.0
    %4547 = vmatpush1.msra.mxu0 %v4534
    %4548 = vmatprep.subr.mxu0 0.0
    %4549 = vmatpush1.msra.mxu0 %v4535
    %4550 = vmatprep.subr.mxu0 0.0
    %4551 = vmatpush1.msra.mxu0 %v4536
    %4552 = vmatprep.subr.mxu0 0.0
    %4553 = vmatpush1.msra.mxu0 %v4537
    %4554 = vmatprep.subr.mxu0 0.0
    %4555 = vmatpush1.msra.mxu0 %v4538
    %4556 = vmatprep.subr.mxu0 0.0
    %4557 = vmatpush1.msra.mxu0 %v4539
    %4558 = vmatprep.subr.mxu0 0.0
    %4559 = vmatpush1.msra.mxu0 %v4540
    %4560 = vmatprep.subr.mxu0 0.0
    %4561 = vmatpush1.msra.mxu0 0.0
    %4562 = vmatprep.subr.mxu0 0.0
    %4563 = vmatpush1.msra.mxu0 0.0
    %4564 = vmatprep.subr.mxu0 0.0
    %4565 = vmatpush1.msra.mxu0 0.0
    %4566 = vmatprep.subr.mxu0 0.0
    %4567 = vmatpush1.msra.mxu0 0.0
    %4568 = vmatprep.subr.mxu0 0.0
    %4569 = vmatpush1.msra.mxu0 0.0
    %4570 = vmatprep.subr.mxu0 0.0
    %4571 = vmatpush1.msra.mxu0 0.0
    %4572 = vmatprep.subr.mxu0 0.0
    %4573 = vmatpush1.msra.mxu0 0.0
    %4574 = vmatprep.subr.mxu0 0.0
    %4575 = vmatpush1.msra.mxu0 0.0
    %4576 = vmatprep.subr.mxu0 0.0
    %4577 = vmatpush1.msra.mxu0 0.0
    %4578 = vmatprep.subr.mxu0 0.0
    %4579 = vmatpush1.msra.mxu0 0.0
    %4580 = vmatprep.subr.mxu0 0.0
    %4581 = vmatpush1.msra.mxu0 0.0
    %4582 = vmatprep.subr.mxu0 0.0
    %4583 = vmatpush1.msra.mxu0 0.0
    %4584 = vmatprep.subr.mxu0 0.0
    %4585 = vmatpush1.msra.mxu0 0.0
    %4586 = vmatprep.subr.mxu0 0.0
    %4587 = vmatpush1.msra.mxu0 0.0
    %4588 = vmatprep.subr.mxu0 0.0
    %4589 = vmatpush1.msra.mxu0 0.0
    %4590 = vmatprep.subr.mxu0 0.0
    %4591 = vmatpush1.msra.mxu0 0.0
    %4592 = vmatprep.subr.mxu0 0.0
    %4593 = vmatpush1.msra.mxu0 0.0
    %4594 = vmatprep.subr.mxu0 0.0
    %4595 = vmatpush1.msra.mxu0 0.0
    %4596 = vmatprep.subr.mxu0 0.0
    %4597 = vmatpush1.msra.mxu0 0.0
    %4598 = vmatprep.subr.mxu0 0.0
    %4599 = vmatpush1.msra.mxu0 0.0
    %4600 = vmatprep.subr.mxu0 0.0
    %4601 = vmatpush1.msra.mxu0 0.0
    %4602 = vmatprep.subr.mxu0 0.0
    %4603 = vmatpush1.msra.mxu0 0.0
    %4604 = vmatprep.subr.mxu0 0.0
    %4605 = vmatpush1.msra.mxu0 0.0
    %4606 = vmatprep.subr.mxu0 0.0
    %4607 = vmatpush1.msra.mxu0 0.0
    %4608 = vmatprep.mubr.f32.mxu0 0.0
    %4609 = vmatmul.mubr.f32.gmra.mrb[0].mxu0 %v4542
    %v4610 = vpop.f32.mrb[0].mxu0
    %v4611 = vadd.f32 0.0, %v4610
    %v4612 = vpop.f32.mrb[0].mxu0
    %4613 = vdwg.mxu0
    %v4614 = vadd.f32 %v4456, %v4611
    %v4615 = vld [vmem:[%s8] sm:$0x1]
    %v4617 = vlaneseq
    %v4618 = vshrl.u32 %v4617, 7
    %v4619 = vsub.s32 0, %v4618
    %v4620 = vrot.slane %v4615, %v4619
    %v4622 = vadd.f32 %v4614, %v4620
    %v4623 = vmax.f32 %v4622, 0.0
    %v4624 = vld [vmem:[%s9] sm:$0xff]
    %v4625 = vld [vmem:[%s9 + $0x8] sm:$0xff]
    %v4626 = vld [vmem:[%s9 + $0x10] sm:$0xff]
    %v4627 = vld [vmem:[%s9 + $0x18] sm:$0xff]
    %v4628 = vld [vmem:[%s9 + $0x20] sm:$0xff]
    %v4629 = vld [vmem:[%s9 + $0x28] sm:$0xff]
    %v4630 = vld [vmem:[%s9 + $0x30] sm:$0xff]
    %v4631 = vld [vmem:[%s9 + $0x38] sm:$0xff]
    %v4632 = vld [vmem:[%s9 + $0x40] sm:$0xff]
    %v4633 = vld [vmem:[%s9 + $0x48] sm:$0xff]
    %v4634 = vld [vmem:[%s9 + $0x50] sm:$0xff]
    %v4635 = vld [vmem:[%s9 + $0x58] sm:$0xff]
    %v4636 = vld [vmem:[%s9 + $0x60] sm:$0xff]
    %v4637 = vld [vmem:[%s9 + $0x68] sm:$0xff]
    %v4638 = vld [vmem:[%s9 + $0x70] sm:$0xff]
    %v4639 = vld [vmem:[%s9 + $0x78] sm:$0xff]
    %v4640 = vld [vmem:[%s9 + $0x80] sm:$0xff]
    %v4641 = vld [vmem:[%s9 + $0x88] sm:$0xff]
    %v4642 = vld [vmem:[%s9 + $0x90] sm:$0xff]
    %v4643 = vld [vmem:[%s9 + $0x98] sm:$0xff]
    %v4644 = vld [vmem:[%s9 + $0xa0] sm:$0xff]
    %v4645 = vld [vmem:[%s9 + $0xa8] sm:$0xff]
    %v4646 = vld [vmem:[%s9 + $0xb0] sm:$0xff]
    %v4647 = vld [vmem:[%s9 + $0xb8] sm:$0xff]
    %v4648 = vld [vmem:[%s9 + $0xc0] sm:$0xff]
    %v4649 = vld [vmem:[%s9 + $0xc8] sm:$0xff]
    %v4650 = vld [vmem:[%s9 + $0xd0] sm:$0xff]
    %v4651 = vld [vmem:[%s9 + $0xd8] sm:$0xff]
    %v4652 = vld [vmem:[%s9 + $0xe0] sm:$0xff]
    %v4653 = vld [vmem:[%s9 + $0xe8] sm:$0xff]
    %v4654 = vld [vmem:[%s9 + $0xf0] sm:$0xff]
    %v4655 = vld [vmem:[%s9 + $0xf8] sm:$0xff]
    %v4656 = vld [vmem:[%s10] sm:$0xf]
    %v4658 = vlaneseq
    %v4659 = vshrl.u32 %v4658, 7
    %v4660 = vsub.s32 0, %v4659
    %v4661 = vrot.slane %v4656, %v4660
    %v4662 = vlaneseq
    %v4663 = vshrl.u32 %v4662, 7
    %v4664 = vsub.s32 1, %v4663
    %v4665 = vrot.slane %v4656, %v4664
    %v4666 = vlaneseq
    %v4667 = vshrl.u32 %v4666, 7
    %v4668 = vsub.s32 2, %v4667
    %v4669 = vrot.slane %v4656, %v4668
    %v4670 = vlaneseq
    %v4671 = vshrl.u32 %v4670, 7
    %v4672 = vsub.s32 3, %v4671
    %v4673 = vrot.slane %v4656, %v4672
    %v4679 = vsel %vm3362, %v4623, 0
    %4681 = vmatprep.subr.mxu0 %v4625
    %4682 = vmatpush1.msra.mxu0 %v4624
    %4683 = vmatprep.subr.mxu0 %v4629
    %4684 = vmatpush1.msra.mxu0 %v4628
    %4685 = vmatprep.subr.mxu0 %v4633
    %4686 = vmatpush1.msra.mxu0 %v4632
    %4687 = vmatprep.subr.mxu0 %v4637
    %4688 = vmatpush1.msra.mxu0 %v4636
    %4689 = vmatprep.subr.mxu0 %v4641
    %4690 = vmatpush1.msra.mxu0 %v4640
    %4691 = vmatprep.subr.mxu0 %v4645
    %4692 = vmatpush1.msra.mxu0 %v4644
    %4693 = vmatprep.subr.mxu0 %v4649
    %4694 = vmatpush1.msra.mxu0 %v4648
    %4695 = vmatprep.subr.mxu0 %v4653
    %4696 = vmatpush1.msra.mxu0 %v4652
    %4697 = vmatprep.subr.mxu0 0.0
    %4698 = vmatpush1.msra.mxu0 0.0
    %4699 = vmatprep.subr.mxu0 0.0
    %4700 = vmatpush1.msra.mxu0 0.0
    %4701 = vmatprep.subr.mxu0 0.0
    %4702 = vmatpush1.msra.mxu0 0.0
    %4703 = vmatprep.subr.mxu0 0.0
    %4704 = vmatpush1.msra.mxu0 0.0
    %4705 = vmatprep.subr.mxu0 0.0
    %4706 = vmatpush1.msra.mxu0 0.0
    %4707 = vmatprep.subr.mxu0 0.0
    %4708 = vmatpush1.msra.mxu0 0.0
    %4709 = vmatprep.subr.mxu0 0.0
    %4710 = vmatpush1.msra.mxu0 0.0
    %4711 = vmatprep.subr.mxu0 0.0
    %4712 = vmatpush1.msra.mxu0 0.0
    %4713 = vmatprep.subr.mxu0 0.0
    %4714 = vmatpush1.msra.mxu0 0.0
    %4715 = vmatprep.subr.mxu0 0.0
    %4716 = vmatpush1.msra.mxu0 0.0
    %4717 = vmatprep.subr.mxu0 0.0
    %4718 = vmatpush1.msra.mxu0 0.0
    %4719 = vmatprep.subr.mxu0 0.0
    %4720 = vmatpush1.msra.mxu0 0.0
    %4721 = vmatprep.subr.mxu0 0.0
    %4722 = vmatpush1.msra.mxu0 0.0
    %4723 = vmatprep.subr.mxu0 0.0
    %4724 = vmatpush1.msra.mxu0 0.0
    %4725 = vmatprep.subr.mxu0 0.0
    %4726 = vmatpush1.msra.mxu0 0.0
    %4727 = vmatprep.subr.mxu0 0.0
    %4728 = vmatpush1.msra.mxu0 0.0
    %4729 = vmatprep.subr.mxu0 0.0
    %4730 = vmatpush1.msra.mxu0 0.0
    %4731 = vmatprep.subr.mxu0 0.0
    %4732 = vmatpush1.msra.mxu0 0.0
    %4733 = vmatprep.subr.mxu0 0.0
    %4734 = vmatpush1.msra.mxu0 0.0
    %4735 = vmatprep.subr.mxu0 0.0
    %4736 = vmatpush1.msra.mxu0 0.0
    %4737 = vmatprep.subr.mxu0 0.0
    %4738 = vmatpush1.msra.mxu0 0.0
    %4739 = vmatprep.subr.mxu0 0.0
    %4740 = vmatpush1.msra.mxu0 0.0
    %4741 = vmatprep.subr.mxu0 0.0
    %4742 = vmatpush1.msra.mxu0 0.0
    %4743 = vmatprep.subr.mxu0 0.0
    %4744 = vmatpush1.msra.mxu0 0.0
    %4745 = vmatprep.mubr.f32.mxu0 0.0
    %4746 = vmatmul.mubr.f32.gmra.mrb[0].mxu0 %v4679
    %v4747 = vpop.f32.mrb[0].mxu0
    %v4748 = vadd.f32 %v4661, %v4747
    %v4749 = vpop.f32.mrb[0].mxu0
    %v4750 = vadd.f32 %v4665, %v4749
    %4751 = vdwg.mxu0
    %4752 = vmatprep.subr.mxu0 %v4627
    %4753 = vmatpush1.msra.mxu0 %v4626
    %4754 = vmatprep.subr.mxu0 %v4631
    %4755 = vmatpush1.msra.mxu0 %v4630
    %4756 = vmatprep.subr.mxu0 %v4635
    %4757 = vmatpush1.msra.mxu0 %v4634
    %4758 = vmatprep.subr.mxu0 %v4639
    %4759 = vmatpush1.msra.mxu0 %v4638
    %4760 = vmatprep.subr.mxu0 %v4643
    %4761 = vmatpush1.msra.mxu0 %v4642
    %4762 = vmatprep.subr.mxu0 %v4647
    %4763 = vmatpush1.msra.mxu0 %v4646
    %4764 = vmatprep.subr.mxu0 %v4651
    %4765 = vmatpush1.msra.mxu0 %v4650
    %4766 = vmatprep.subr.mxu0 %v4655
    %4767 = vmatpush1.msra.mxu0 %v4654
    %4768 = vmatprep.subr.mxu0 0.0
    %4769 = vmatpush1.msra.mxu0 0.0
    %4770 = vmatprep.subr.mxu0 0.0
    %4771 = vmatpush1.msra.mxu0 0.0
    %4772 = vmatprep.subr.mxu0 0.0
    %4773 = vmatpush1.msra.mxu0 0.0
    %4774 = vmatprep.subr.mxu0 0.0
    %4775 = vmatpush1.msra.mxu0 0.0
    %4776 = vmatprep.subr.mxu0 0.0
    %4777 = vmatpush1.msra.mxu0 0.0
    %4778 = vmatprep.subr.mxu0 0.0
    %4779 = vmatpush1.msra.mxu0 0.0
    %4780 = vmatprep.subr.mxu0 0.0
    %4781 = vmatpush1.msra.mxu0 0.0
    %4782 = vmatprep.subr.mxu0 0.0
    %4783 = vmatpush1.msra.mxu0 0.0
    %4784 = vmatprep.subr.mxu0 0.0
    %4785 = vmatpush1.msra.mxu0 0.0
    %4786 = vmatprep.subr.mxu0 0.0
    %4787 = vmatpush1.msra.mxu0 0.0
    %4788 = vmatprep.subr.mxu0 0.0
    %4789 = vmatpush1.msra.mxu0 0.0
    %4790 = vmatprep.subr.mxu0 0.0
    %4791 = vmatpush1.msra.mxu0 0.0
    %4792 = vmatprep.subr.mxu0 0.0
    %4793 = vmatpush1.msra.mxu0 0.0
    %4794 = vmatprep.subr.mxu0 0.0
    %4795 = vmatpush1.msra.mxu0 0.0
    %4796 = vmatprep.subr.mxu0 0.0
    %4797 = vmatpush1.msra.mxu0 0.0
    %4798 = vmatprep.subr.mxu0 0.0
    %4799 = vmatpush1.msra.mxu0 0.0
    %4800 = vmatprep.subr.mxu0 0.0
    %4801 = vmatpush1.msra.mxu0 0.0
    %4802 = vmatprep.subr.mxu0 0.0
    %4803 = vmatpush1.msra.mxu0 0.0
    %4804 = vmatprep.subr.mxu0 0.0
    %4805 = vmatpush1.msra.mxu0 0.0
    %4806 = vmatprep.subr.mxu0 0.0
    %4807 = vmatpush1.msra.mxu0 0.0
    %4808 = vmatprep.subr.mxu0 0.0
    %4809 = vmatpush1.msra.mxu0 0.0
    %4810 = vmatprep.subr.mxu0 0.0
    %4811 = vmatpush1.msra.mxu0 0.0
    %4812 = vmatprep.subr.mxu0 0.0
    %4813 = vmatpush1.msra.mxu0 0.0
    %4814 = vmatprep.subr.mxu0 0.0
    %4815 = vmatpush1.msra.mxu0 0.0
    %4816 = vmatprep.mubr.f32.mxu0 0.0
    %4817 = vmatmul.mubr.f32.gmra.mrb[0].mxu0 %v4679
    %v4818 = vpop.f32.mrb[0].mxu0
    %v4819 = vadd.f32 %v4669, %v4818
    %v4820 = vpop.f32.mrb[0].mxu0
    %v4821 = vadd.f32 %v4673, %v4820
    %4822 = vdwg.mxu0
    %v4823 = vmax.f32 %v4748, 0.0
    %v4824 = vmax.f32 %v4750, 0.0
    %v4825 = vmax.f32 %v4819, 0.0
    %v4826 = vmax.f32 %v4821, 0.0
    %v4827 = vld [vmem:[%s11] sm:$0xff]
    %v4828 = vld [vmem:[%s11 + $0x8] sm:$0xff]
    %v4829 = vld [vmem:[%s11 + $0x10] sm:$0xff]
    %v4830 = vld [vmem:[%s11 + $0x18] sm:$0xff]
    %v4831 = vld [vmem:[%s11 + $0x20] sm:$0xff]
    %v4832 = vld [vmem:[%s11 + $0x28] sm:$0xff]
    %v4833 = vld [vmem:[%s11 + $0x30] sm:$0xff]
    %v4834 = vld [vmem:[%s11 + $0x38] sm:$0xff]
    %v4835 = vld [vmem:[%s11 + $0x40] sm:$0xff]
    %v4836 = vld [vmem:[%s11 + $0x48] sm:$0xff]
    %v4837 = vld [vmem:[%s11 + $0x50] sm:$0xff]
    %v4838 = vld [vmem:[%s11 + $0x58] sm:$0xff]
    %v4839 = vld [vmem:[%s11 + $0x60] sm:$0xff]
    %v4840 = vld [vmem:[%s11 + $0x68] sm:$0xff]
    %v4841 = vld [vmem:[%s11 + $0x70] sm:$0xff]
    %v4842 = vld [vmem:[%s11 + $0x78] sm:$0xff]
    %v4843 = vld [vmem:[%s11 + $0x80] sm:$0xff]
    %v4844 = vld [vmem:[%s11 + $0x88] sm:$0xff]
    %v4845 = vld [vmem:[%s11 + $0x90] sm:$0xff]
    %v4846 = vld [vmem:[%s11 + $0x98] sm:$0xff]
    %v4847 = vld [vmem:[%s11 + $0xa0] sm:$0xff]
    %v4848 = vld [vmem:[%s11 + $0xa8] sm:$0xff]
    %v4849 = vld [vmem:[%s11 + $0xb0] sm:$0xff]
    %v4850 = vld [vmem:[%s11 + $0xb8] sm:$0xff]
    %v4851 = vld [vmem:[%s11 + $0xc0] sm:$0xff]
    %v4852 = vld [vmem:[%s11 + $0xc8] sm:$0xff]
    %v4853 = vld [vmem:[%s11 + $0xd0] sm:$0xff]
    %v4854 = vld [vmem:[%s11 + $0xd8] sm:$0xff]
    %v4855 = vld [vmem:[%s11 + $0xe0] sm:$0xff]
    %v4856 = vld [vmem:[%s11 + $0xe8] sm:$0xff]
    %v4857 = vld [vmem:[%s11 + $0xf0] sm:$0xff]
    %v4858 = vld [vmem:[%s11 + $0xf8] sm:$0xff]
    %v4859 = vld [vmem:[%s11 + $0x100] sm:$0xff]
    %v4860 = vld [vmem:[%s11 + $0x108] sm:$0xff]
    %v4861 = vld [vmem:[%s11 + $0x110] sm:$0xff]
    %v4862 = vld [vmem:[%s11 + $0x118] sm:$0xff]
    %v4863 = vld [vmem:[%s11 + $0x120] sm:$0xff]
    %v4864 = vld [vmem:[%s11 + $0x128] sm:$0xff]
    %v4865 = vld [vmem:[%s11 + $0x130] sm:$0xff]
    %v4866 = vld [vmem:[%s11 + $0x138] sm:$0xff]
    %v4867 = vld [vmem:[%s11 + $0x140] sm:$0xff]
    %v4868 = vld [vmem:[%s11 + $0x148] sm:$0xff]
    %v4869 = vld [vmem:[%s11 + $0x150] sm:$0xff]
    %v4870 = vld [vmem:[%s11 + $0x158] sm:$0xff]
    %v4871 = vld [vmem:[%s11 + $0x160] sm:$0xff]
    %v4872 = vld [vmem:[%s11 + $0x168] sm:$0xff]
    %v4873 = vld [vmem:[%s11 + $0x170] sm:$0xff]
    %v4874 = vld [vmem:[%s11 + $0x178] sm:$0xff]
    %v4875 = vld [vmem:[%s11 + $0x180] sm:$0xff]
    %v4876 = vld [vmem:[%s11 + $0x188] sm:$0xff]
    %v4877 = vld [vmem:[%s11 + $0x190] sm:$0xff]
    %v4878 = vld [vmem:[%s11 + $0x198] sm:$0xff]
    %v4879 = vld [vmem:[%s11 + $0x1a0] sm:$0xff]
    %v4880 = vld [vmem:[%s11 + $0x1a8] sm:$0xff]
    %v4881 = vld [vmem:[%s11 + $0x1b0] sm:$0xff]
    %v4882 = vld [vmem:[%s11 + $0x1b8] sm:$0xff]
    %v4883 = vld [vmem:[%s11 + $0x1c0] sm:$0xff]
    %v4884 = vld [vmem:[%s11 + $0x1c8] sm:$0xff]
    %v4885 = vld [vmem:[%s11 + $0x1d0] sm:$0xff]
    %v4886 = vld [vmem:[%s11 + $0x1d8] sm:$0xff]
    %v4887 = vld [vmem:[%s11 + $0x1e0] sm:$0xff]
    %v4888 = vld [vmem:[%s11 + $0x1e8] sm:$0xff]
    %v4889 = vld [vmem:[%s11 + $0x1f0] sm:$0xff]
    %v4890 = vld [vmem:[%s11 + $0x1f8] sm:$0xff]
    %v4891 = vld [vmem:[%s12] sm:$0x1]
    %v4893 = vlaneseq
    %v4894 = vshrl.u32 %v4893, 7
    %v4895 = vsub.s32 0, %v4894
    %v4896 = vrot.slane %v4891, %v4895
    %4898 = vmatprep.subr.mxu0 0.0
    %4899 = vmatpush1.msra.mxu0 %v4827
    %4900 = vmatprep.subr.mxu0 0.0
    %4901 = vmatpush1.msra.mxu0 %v4828
    %4902 = vmatprep.subr.mxu0 0.0
    %4903 = vmatpush1.msra.mxu0 %v4829
    %4904 = vmatprep.subr.mxu0 0.0
    %4905 = vmatpush1.msra.mxu0 %v4830
    %4906 = vmatprep.subr.mxu0 0.0
    %4907 = vmatpush1.msra.mxu0 %v4831
    %4908 = vmatprep.subr.mxu0 0.0
    %4909 = vmatpush1.msra.mxu0 %v4832
    %4910 = vmatprep.subr.mxu0 0.0
    %4911 = vmatpush1.msra.mxu0 %v4833
    %4912 = vmatprep.subr.mxu0 0.0
    %4913 = vmatpush1.msra.mxu0 %v4834
    %4914 = vmatprep.subr.mxu0 0.0
    %4915 = vmatpush1.msra.mxu0 %v4835
    %4916 = vmatprep.subr.mxu0 0.0
    %4917 = vmatpush1.msra.mxu0 %v4836
    %4918 = vmatprep.subr.mxu0 0.0
    %4919 = vmatpush1.msra.mxu0 %v4837
    %4920 = vmatprep.subr.mxu0 0.0
    %4921 = vmatpush1.msra.mxu0 %v4838
    %4922 = vmatprep.subr.mxu0 0.0
    %4923 = vmatpush1.msra.mxu0 %v4839
    %4924 = vmatprep.subr.mxu0 0.0
    %4925 = vmatpush1.msra.mxu0 %v4840
    %4926 = vmatprep.subr.mxu0 0.0
    %4927 = vmatpush1.msra.mxu0 %v4841
    %4928 = vmatprep.subr.mxu0 0.0
    %4929 = vmatpush1.msra.mxu0 %v4842
    %4930 = vmatprep.subr.mxu0 0.0
    %4931 = vmatpush1.msra.mxu0 %v4843
    %4932 = vmatprep.subr.mxu0 0.0
    %4933 = vmatpush1.msra.mxu0 %v4844
    %4934 = vmatprep.subr.mxu0 0.0
    %4935 = vmatpush1.msra.mxu0 %v4845
    %4936 = vmatprep.subr.mxu0 0.0
    %4937 = vmatpush1.msra.mxu0 %v4846
    %4938 = vmatprep.subr.mxu0 0.0
    %4939 = vmatpush1.msra.mxu0 %v4847
    %4940 = vmatprep.subr.mxu0 0.0
    %4941 = vmatpush1.msra.mxu0 %v4848
    %4942 = vmatprep.subr.mxu0 0.0
    %4943 = vmatpush1.msra.mxu0 %v4849
    %4944 = vmatprep.subr.mxu0 0.0
    %4945 = vmatpush1.msra.mxu0 %v4850
    %4946 = vmatprep.subr.mxu0 0.0
    %4947 = vmatpush1.msra.mxu0 %v4851
    %4948 = vmatprep.subr.mxu0 0.0
    %4949 = vmatpush1.msra.mxu0 %v4852
    %4950 = vmatprep.subr.mxu0 0.0
    %4951 = vmatpush1.msra.mxu0 %v4853
    %4952 = vmatprep.subr.mxu0 0.0
    %4953 = vmatpush1.msra.mxu0 %v4854
    %4954 = vmatprep.subr.mxu0 0.0
    %4955 = vmatpush1.msra.mxu0 %v4855
    %4956 = vmatprep.subr.mxu0 0.0
    %4957 = vmatpush1.msra.mxu0 %v4856
    %4958 = vmatprep.subr.mxu0 0.0
    %4959 = vmatpush1.msra.mxu0 %v4857
    %4960 = vmatprep.subr.mxu0 0.0
    %4961 = vmatpush1.msra.mxu0 %v4858
    %4962 = vmatprep.mubr.f32.mxu0 %v4824
    %4963 = vmatmul.mubr.f32.gmra.mrb[0].mxu0 %v4823
    %v4964 = vpop.f32.mrb[0].mxu0
    %v4965 = vadd.f32 %v4896, %v4964
    %v4966 = vpop.f32.mrb[0].mxu0
    %4967 = vdwg.mxu0
    %4968 = vmatprep.subr.mxu0 0.0
    %4969 = vmatpush1.msra.mxu0 %v4859
    %4970 = vmatprep.subr.mxu0 0.0
    %4971 = vmatpush1.msra.mxu0 %v4860
    %4972 = vmatprep.subr.mxu0 0.0
    %4973 = vmatpush1.msra.mxu0 %v4861
    %4974 = vmatprep.subr.mxu0 0.0
    %4975 = vmatpush1.msra.mxu0 %v4862
    %4976 = vmatprep.subr.mxu0 0.0
    %4977 = vmatpush1.msra.mxu0 %v4863
    %4978 = vmatprep.subr.mxu0 0.0
    %4979 = vmatpush1.msra.mxu0 %v4864
    %4980 = vmatprep.subr.mxu0 0.0
    %4981 = vmatpush1.msra.mxu0 %v4865
    %4982 = vmatprep.subr.mxu0 0.0
    %4983 = vmatpush1.msra.mxu0 %v4866
    %4984 = vmatprep.subr.mxu0 0.0
    %4985 = vmatpush1.msra.mxu0 %v4867
    %4986 = vmatprep.subr.mxu0 0.0
    %4987 = vmatpush1.msra.mxu0 %v4868
    %4988 = vmatprep.subr.mxu0 0.0
    %4989 = vmatpush1.msra.mxu0 %v4869
    %4990 = vmatprep.subr.mxu0 0.0
    %4991 = vmatpush1.msra.mxu0 %v4870
    %4992 = vmatprep.subr.mxu0 0.0
    %4993 = vmatpush1.msra.mxu0 %v4871
    %4994 = vmatprep.subr.mxu0 0.0
    %4995 = vmatpush1.msra.mxu0 %v4872
    %4996 = vmatprep.subr.mxu0 0.0
    %4997 = vmatpush1.msra.mxu0 %v4873
    %4998 = vmatprep.subr.mxu0 0.0
    %4999 = vmatpush1.msra.mxu0 %v4874
    %5000 = vmatprep.subr.mxu0 0.0
    %5001 = vmatpush1.msra.mxu0 %v4875
    %5002 = vmatprep.subr.mxu0 0.0
    %5003 = vmatpush1.msra.mxu0 %v4876
    %5004 = vmatprep.subr.mxu0 0.0
    %5005 = vmatpush1.msra.mxu0 %v4877
    %5006 = vmatprep.subr.mxu0 0.0
    %5007 = vmatpush1.msra.mxu0 %v4878
    %5008 = vmatprep.subr.mxu0 0.0
    %5009 = vmatpush1.msra.mxu0 %v4879
    %5010 = vmatprep.subr.mxu0 0.0
    %5011 = vmatpush1.msra.mxu0 %v4880
    %5012 = vmatprep.subr.mxu0 0.0
    %5013 = vmatpush1.msra.mxu0 %v4881
    %5014 = vmatprep.subr.mxu0 0.0
    %5015 = vmatpush1.msra.mxu0 %v4882
    %5016 = vmatprep.subr.mxu0 0.0
    %5017 = vmatpush1.msra.mxu0 %v4883
    %5018 = vmatprep.subr.mxu0 0.0
    %5019 = vmatpush1.msra.mxu0 %v4884
    %5020 = vmatprep.subr.mxu0 0.0
    %5021 = vmatpush1.msra.mxu0 %v4885
    %5022 = vmatprep.subr.mxu0 0.0
    %5023 = vmatpush1.msra.mxu0 %v4886
    %5024 = vmatprep.subr.mxu0 0.0
    %5025 = vmatpush1.msra.mxu0 %v4887
    %5026 = vmatprep.subr.mxu0 0.0
    %5027 = vmatpush1.msra.mxu0 %v4888
    %5028 = vmatprep.subr.mxu0 0.0
    %5029 = vmatpush1.msra.mxu0 %v4889
    %5030 = vmatprep.subr.mxu0 0.0
    %5031 = vmatpush1.msra.mxu0 %v4890
    %5032 = vmatprep.mubr.f32.mxu0 %v4826
    %5033 = vmatmul.mubr.f32.gmra.mrb[0].mxu0 %v4825
    %v5034 = vpop.f32.mrb[0].mxu0
    %v5035 = vadd.f32 %v4965, %v5034
    %v5036 = vpop.f32.mrb[0].mxu0
    %5037 = vdwg.mxu0
    %v5038 = vmax.f32 %v5035, 0.0
    %v5039 = vld [vmem:[%s13] sm:$0xff]
    %v5040 = vld [vmem:[%s13 + $0x8] sm:$0xff]
    %v5041 = vld [vmem:[%s13 + $0x10] sm:$0xff]
    %v5042 = vld [vmem:[%s13 + $0x18] sm:$0xff]
    %v5043 = vld [vmem:[%s13 + $0x20] sm:$0xff]
    %v5044 = vld [vmem:[%s13 + $0x28] sm:$0xff]
    %v5045 = vld [vmem:[%s13 + $0x30] sm:$0xff]
    %v5046 = vld [vmem:[%s13 + $0x38] sm:$0xff]
    %v5047 = vld [vmem:[%s14] sm:$0x1]
    %v5049 = vlaneseq
    %v5050 = vshrl.u32 %v5049, 7
    %v5051 = vsub.s32 0, %v5050
    %v5052 = vrot.slane %v5047, %v5051
    %v5055 = vsel %vm3362, %v5038, 0
    %5057 = vmatprep.subr.mxu0 0.0
    %5058 = vmatpush1.msra.mxu0 %v5039
    %5059 = vmatprep.subr.mxu0 0.0
    %5060 = vmatpush1.msra.mxu0 %v5040
    %5061 = vmatprep.subr.mxu0 0.0
    %5062 = vmatpush1.msra.mxu0 %v5041
    %5063 = vmatprep.subr.mxu0 0.0
    %5064 = vmatpush1.msra.mxu0 %v5042
    %5065 = vmatprep.subr.mxu0 0.0
    %5066 = vmatpush1.msra.mxu0 %v5043
    %5067 = vmatprep.subr.mxu0 0.0
    %5068 = vmatpush1.msra.mxu0 %v5044
    %5069 = vmatprep.subr.mxu0 0.0
    %5070 = vmatpush1.msra.mxu0 %v5045
    %5071 = vmatprep.subr.mxu0 0.0
    %5072 = vmatpush1.msra.mxu0 %v5046
    %5073 = vmatprep.subr.mxu0 0.0
    %5074 = vmatpush1.msra.mxu0 0.0
    %5075 = vmatprep.subr.mxu0 0.0
    %5076 = vmatpush1.msra.mxu0 0.0
    %5077 = vmatprep.subr.mxu0 0.0
    %5078 = vmatpush1.msra.mxu0 0.0
    %5079 = vmatprep.subr.mxu0 0.0
    %5080 = vmatpush1.msra.mxu0 0.0
    %5081 = vmatprep.subr.mxu0 0.0
    %5082 = vmatpush1.msra.mxu0 0.0
    %5083 = vmatprep.subr.mxu0 0.0
    %5084 = vmatpush1.msra.mxu0 0.0
    %5085 = vmatprep.subr.mxu0 0.0
    %5086 = vmatpush1.msra.mxu0 0.0
    %5087 = vmatprep.subr.mxu0 0.0
    %5088 = vmatpush1.msra.mxu0 0.0
    %5089 = vmatprep.subr.mxu0 0.0
    %5090 = vmatpush1.msra.mxu0 0.0
    %5091 = vmatprep.subr.mxu0 0.0
    %5092 = vmatpush1.msra.mxu0 0.0
    %5093 = vmatprep.subr.mxu0 0.0
    %5094 = vmatpush1.msra.mxu0 0.0
    %5095 = vmatprep.subr.mxu0 0.0
    %5096 = vmatpush1.msra.mxu0 0.0
    %5097 = vmatprep.subr.mxu0 0.0
    %5098 = vmatpush1.msra.mxu0 0.0
    %5099 = vmatprep.subr.mxu0 0.0
    %5100 = vmatpush1.msra.mxu0 0.0
    %5101 = vmatprep.subr.mxu0 0.0
    %5102 = vmatpush1.msra.mxu0 0.0
    %5103 = vmatprep.subr.mxu0 0.0
    %5104 = vmatpush1.msra.mxu0 0.0
    %5105 = vmatprep.subr.mxu0 0.0
    %5106 = vmatpush1.msra.mxu0 0.0
    %5107 = vmatprep.subr.mxu0 0.0
    %5108 = vmatpush1.msra.mxu0 0.0
    %5109 = vmatprep.subr.mxu0 0.0
    %5110 = vmatpush1.msra.mxu0 0.0
    %5111 = vmatprep.subr.mxu0 0.0
    %5112 = vmatpush1.msra.mxu0 0.0
    %5113 = vmatprep.subr.mxu0 0.0
    %5114 = vmatpush1.msra.mxu0 0.0
    %5115 = vmatprep.subr.mxu0 0.0
    %5116 = vmatpush1.msra.mxu0 0.0
    %5117 = vmatprep.subr.mxu0 0.0
    %5118 = vmatpush1.msra.mxu0 0.0
    %5119 = vmatprep.subr.mxu0 0.0
    %5120 = vmatpush1.msra.mxu0 0.0
    %5121 = vmatprep.mubr.f32.mxu0 0.0
    %5122 = vmatmul.mubr.f32.gmra.mrb[0].mxu0 %v5055
    %v5123 = vpop.f32.mrb[0].mxu0
    %v5124 = vadd.f32 %v5052, %v5123
    %v5125 = vpop.f32.mrb[0].mxu0
    %5126 = vdwg.mxu0
    %v5127 = vmax.f32 %v5124, 0.0
    %v5128 = vld [vmem:[%s15] sm:$0xff]
    %v5129 = vld [vmem:[%s15 + $0x8] sm:$0xff]
    %v5130 = vld [vmem:[%s15 + $0x10] sm:$0xff]
    %v5131 = vld [vmem:[%s15 + $0x18] sm:$0xff]
    %v5132 = vld [vmem:[%s15 + $0x20] sm:$0xff]
    %v5133 = vld [vmem:[%s15 + $0x28] sm:$0xff]
    %v5134 = vld [vmem:[%s15 + $0x30] sm:$0xff]
    %v5135 = vld [vmem:[%s15 + $0x38] sm:$0xff]
    %v5136 = vld [vmem:[%s16] sm:$0x1]
    %v5138 = vlaneseq
    %v5139 = vshrl.u32 %v5138, 7
    %v5140 = vsub.s32 0, %v5139
    %v5141 = vrot.slane %v5136, %v5140
    %v5144 = vsel %vm3362, %v5127, 0
    %5146 = vmatprep.subr.mxu0 0.0
    %5147 = vmatpush1.msra.mxu0 %v5128
    %5148 = vmatprep.subr.mxu0 0.0
    %5149 = vmatpush1.msra.mxu0 %v5129
    %5150 = vmatprep.subr.mxu0 0.0
    %5151 = vmatpush1.msra.mxu0 %v5130
    %5152 = vmatprep.subr.mxu0 0.0
    %5153 = vmatpush1.msra.mxu0 %v5131
    %5154 = vmatprep.subr.mxu0 0.0
    %5155 = vmatpush1.msra.mxu0 %v5132
    %5156 = vmatprep.subr.mxu0 0.0
    %5157 = vmatpush1.msra.mxu0 %v5133
    %5158 = vmatprep.subr.mxu0 0.0
    %5159 = vmatpush1.msra.mxu0 %v5134
    %5160 = vmatprep.subr.mxu0 0.0
    %5161 = vmatpush1.msra.mxu0 %v5135
    %5162 = vmatprep.subr.mxu0 0.0
    %5163 = vmatpush1.msra.mxu0 0.0
    %5164 = vmatprep.subr.mxu0 0.0
    %5165 = vmatpush1.msra.mxu0 0.0
    %5166 = vmatprep.subr.mxu0 0.0
    %5167 = vmatpush1.msra.mxu0 0.0
    %5168 = vmatprep.subr.mxu0 0.0
    %5169 = vmatpush1.msra.mxu0 0.0
    %5170 = vmatprep.subr.mxu0 0.0
    %5171 = vmatpush1.msra.mxu0 0.0
    %5172 = vmatprep.subr.mxu0 0.0
    %5173 = vmatpush1.msra.mxu0 0.0
    %5174 = vmatprep.subr.mxu0 0.0
    %5175 = vmatpush1.msra.mxu0 0.0
    %5176 = vmatprep.subr.mxu0 0.0
    %5177 = vmatpush1.msra.mxu0 0.0
    %5178 = vmatprep.subr.mxu0 0.0
    %5179 = vmatpush1.msra.mxu0 0.0
    %5180 = vmatprep.subr.mxu0 0.0
    %5181 = vmatpush1.msra.mxu0 0.0
    %5182 = vmatprep.subr.mxu0 0.0
    %5183 = vmatpush1.msra.mxu0 0.0
    %5184 = vmatprep.subr.mxu0 0.0
    %5185 = vmatpush1.msra.mxu0 0.0
    %5186 = vmatprep.subr.mxu0 0.0
    %5187 = vmatpush1.msra.mxu0 0.0
    %5188 = vmatprep.subr.mxu0 0.0
    %5189 = vmatpush1.msra.mxu0 0.0
    %5190 = vmatprep.subr.mxu0 0.0
    %5191 = vmatpush1.msra.mxu0 0.0
    %5192 = vmatprep.subr.mxu0 0.0
    %5193 = vmatpush1.msra.mxu0 0.0
    %5194 = vmatprep.subr.mxu0 0.0
    %5195 = vmatpush1.msra.mxu0 0.0
    %5196 = vmatprep.subr.mxu0 0.0
    %5197 = vmatpush1.msra.mxu0 0.0
    %5198 = vmatprep.subr.mxu0 0.0
    %5199 = vmatpush1.msra.mxu0 0.0
    %5200 = vmatprep.subr.mxu0 0.0
    %5201 = vmatpush1.msra.mxu0 0.0
    %5202 = vmatprep.subr.mxu0 0.0
    %5203 = vmatpush1.msra.mxu0 0.0
    %5204 = vmatprep.subr.mxu0 0.0
    %5205 = vmatpush1.msra.mxu0 0.0
    %5206 = vmatprep.subr.mxu0 0.0
    %5207 = vmatpush1.msra.mxu0 0.0
    %5208 = vmatprep.subr.mxu0 0.0
    %5209 = vmatpush1.msra.mxu0 0.0
    %5210 = vmatprep.mubr.f32.mxu0 0.0
    %5211 = vmatmul.mubr.f32.gmra.mrb[0].mxu0 %v5144
    %v5212 = vpop.f32.mrb[0].mxu0
    %v5213 = vadd.f32 %v5141, %v5212
    %v5214 = vpop.f32.mrb[0].mxu0
    %5215 = vdwg.mxu0
    %vm5216 = vcmask 41984
    %5217 = vst.msk [vmem:[#allocation2] sm:$0x3] %vm5216, %v5213
    // Predicated region
    $region70: #{cnn_forward.1} parent=1 // pred_check
      _
    $region71: #{cnn_forward.1} parent=1 // pred_check_branch
      %5219 = sbr.rel (0) target = $region73
    $region72: #{cnn_forward.1} parent=1 // pred_region
      %s5221 = ssub.s32 32, 32
      %5222 = vsyncadd [#allocation3], %s5221
      %s5224 = sshll.u32 [#allocation2], 4
      %s5225 = int_to_ptr.vmem [resolvable:$true] %s5224
      %5227 = dma.vmem_to_hbm [thread:$0]  %s5225, 32, %s17, [#allocation3]
    $region73: #{cnn_forward.1} parent=1 // pred_fallthru
      _
    // Predicated region
    $region74: #{cnn_forward.1} parent=1 // pred_check
      _
    $region75: #{cnn_forward.1} parent=1 // pred_check_branch
      %5229 = sbr.rel (0) target = $region77
    $region76: #{cnn_forward.1} parent=1 // pred_region
      %5230 = dma.done [#allocation3], 32
    $region77: #{cnn_forward.1} parent=1 // pred_fallthru
      _
    %5231 = vsyncpa [#allocation3], 1

</llo_original>
